<compile_context>
chip_gen: v7x
topology: tpu7x:2x2x1
jax: 0.10.0
libtpu: 0.0.40
codegen_flags: <defaults>
</compile_context>

<pallas_src>
import functools

import jax
import jax.numpy as jnp
from jax.experimental import pallas as pl
from jax.experimental.pallas import tpu as pltpu


def _attention_kernel(x_ref, wqkv_ref, wout_ref, bout_ref, o_ref, *,
                      heads, dim_head, scale):
    # x_ref:   (1, C, N)        one batch element, channel-major, lane-dense
    # wqkv_ref:(3*hidden, C)    to_qkv 1x1-conv weight
    # wout_ref:(C, hidden)      to_out 1x1-conv weight
    # bout_ref:(C, 1)           to_out bias
    # o_ref:   (1, C, N)
    hidden = heads * dim_head

    x = x_ref[0].astype(jnp.float32)                      # (C, N)
    w_qkv = wqkv_ref[...].astype(jnp.float32)             # (3*hidden, C)

    # 1x1 conv == channel matmul (NN on MXU): (3*hidden, C) @ (C, N) -> (3*hidden, N)
    qkv = jnp.dot(w_qkv, x, preferred_element_type=jnp.float32)

    outs = []
    for h in range(heads):                                # static unroll over heads
        lo = h * dim_head
        q = qkv[lo:lo + dim_head, :]                      # (D, N)
        k = qkv[hidden + lo:hidden + lo + dim_head, :]    # (D, N)
        v = qkv[2 * hidden + lo:2 * hidden + lo + dim_head, :]  # (D, N)

        qt = q.T * scale                                  # (N, D)  small XLU transpose
        sim = jnp.dot(qt, k, preferred_element_type=jnp.float32)  # (N, N)
        sim = sim - jnp.max(sim, axis=-1, keepdims=True)  # numerically-stable softmax
        p = jnp.exp(sim)
        attn = p / jnp.sum(p, axis=-1, keepdims=True)

        # out_h[d, i] = sum_j v[d, j] * attn[i, j]  (NT dot on MXU) -> (D, N)
        out_h = jax.lax.dot_general(
            v, attn, (((1,), (1,)), ((), ())),
            preferred_element_type=jnp.float32)
        outs.append(out_h)

    # rearrange 'b h (xy) d -> b (h d) (xy)': concat heads along the channel axis
    out_hidden = jnp.concatenate(outs, axis=0)            # (hidden, N)

    w_out = wout_ref[...].astype(jnp.float32)             # (C, hidden)
    b_out = bout_ref[...].astype(jnp.float32)             # (C, 1)
    y = jnp.dot(w_out, out_hidden, preferred_element_type=jnp.float32) + b_out
    o_ref[0] = y.astype(o_ref.dtype)                      # lane-dense (C, N) store


@functools.partial(jax.jit, static_argnames=("heads", "dim_head"))
def attention_forward(x, w_qkv, w_out, b_out, *, heads, dim_head):
    """Full Attention forward on NCHW input via a single fused Pallas kernel."""
    B, C, H, W = x.shape
    N = H * W
    hidden = heads * dim_head
    scale = float(dim_head) ** -0.5

    # Lane-dense layout: flatten spatial dims so the last dim is N (multiple of 128 here).
    x3 = x.reshape(B, C, N)
    bout2 = b_out.reshape(C, 1)

    kernel = functools.partial(_attention_kernel, heads=heads,
                               dim_head=dim_head, scale=scale)

    out = pl.pallas_call(
        kernel,
        out_shape=jax.ShapeDtypeStruct((B, C, N), x.dtype),
        grid_spec=pltpu.PrefetchScalarGridSpec(
            num_scalar_prefetch=0,
            grid=(B,),
            in_specs=[
                pl.BlockSpec((1, C, N), lambda b: (b, 0, 0)),        # activations
                pl.BlockSpec((3 * hidden, C), lambda b: (0, 0)),     # to_qkv weight
                pl.BlockSpec((C, hidden), lambda b: (0, 0)),         # to_out weight
                pl.BlockSpec((C, 1), lambda b: (0, 0)),              # to_out bias
            ],
            out_specs=pl.BlockSpec((1, C, N), lambda b: (b, 0, 0)),
        ),
        compiler_params=pltpu.CompilerParams(
            dimension_semantics=("parallel",)),
        # TODO(synk): for large H*W (N^2 attention matrix) add a query-tile grid axis
        # with online softmax instead of materializing the full (N, N) sim in VMEM.
    )(x3, w_qkv, w_out, bout2)
    return out.reshape(B, C, H, W)


class Attention:
    """JAX/Pallas equivalent of the PyTorch Attention module (NCHW)."""

    def __init__(self, dim, heads=4, dim_head=32, key=None, dtype=jnp.float32):
        self.heads = heads
        self.dim_head = dim_head
        hidden = heads * dim_head
        if key is None:
            key = jax.random.PRNGKey(0)
        k1, k2, k3 = jax.random.split(key, 3)
        # Match PyTorch Conv2d default init: U(-1/sqrt(fan_in), 1/sqrt(fan_in)).
        b_qkv = 1.0 / (dim ** 0.5)
        b_out = 1.0 / (hidden ** 0.5)
        self.w_qkv = jax.random.uniform(k1, (3 * hidden, dim), dtype, -b_qkv, b_qkv)
        self.w_out = jax.random.uniform(k2, (dim, hidden), dtype, -b_out, b_out)
        self.b_out = jax.random.uniform(k3, (dim,), dtype, -b_out, b_out)

    def __call__(self, x):
        return attention_forward(x, self.w_qkv, self.w_out, self.b_out,
                                 heads=self.heads, dim_head=self.dim_head)


def attention_ref(x, w_qkv, w_out, b_out, heads, dim_head):
    """Pure-JAX reference matching the PyTorch forward exactly."""
    B, C, H, W = x.shape
    N = H * W
    hidden = heads * dim_head
    scale = float(dim_head) ** -0.5
    x3 = x.reshape(B, C, N).astype(jnp.float32)
    qkv = jnp.einsum('oc,bcn->bon', w_qkv.astype(jnp.float32), x3)   # (B, 3*hidden, N)
    q, k, v = jnp.split(qkv, 3, axis=1)
    q = q.reshape(B, heads, dim_head, N) * scale
    k = k.reshape(B, heads, dim_head, N)
    v = v.reshape(B, heads, dim_head, N)
    sim = jnp.einsum('bhdi,bhdj->bhij', q, k)
    sim = sim - jnp.max(sim, axis=-1, keepdims=True)
    p = jnp.exp(sim)
    attn = p / jnp.sum(p, axis=-1, keepdims=True)
    out = jnp.einsum('bhij,bhdj->bhid', attn, v)                     # (B, h, N, D)
    out = jnp.transpose(out, (0, 1, 3, 2)).reshape(B, hidden, N)     # b (h d) (xy)
    y = jnp.einsum('cm,bmn->bcn', w_out.astype(jnp.float32), out)
    y = y + b_out.reshape(1, C, 1)
    return y.reshape(B, C, H, W).astype(x.dtype)


if __name__ == "__main__":
    key = jax.random.PRNGKey(0)
    B, C, H, W = 2, 4, 16, 16
    heads, dim_head = 4, 32

    kx, kp = jax.random.split(key)
    x = jax.random.normal(kx, (B, C, H, W), dtype=jnp.float32)

    module = Attention(C, heads=heads, dim_head=dim_head, key=kp)
    out = jax.block_until_ready(module(x))

    ref = attention_ref(x, module.w_qkv, module.w_out, module.b_out, heads, dim_head)

    assert out.shape == (B, C, H, W)
    max_err = jnp.max(jnp.abs(out - ref))
    assert jnp.allclose(out, ref, atol=1e-4, rtol=1e-4), f"max abs err {max_err}"
    print("KERNEL_OK")
</pallas_src>

<mosaic_0001>
module attributes {stable_mosaic.version = 11 : i64} {
  func.func @_attention_kernel(%arg0: i32, %arg1: memref<1x4x256xf32, #tpu.memory_space<vmem>>, %arg2: memref<384x4xf32, #tpu.memory_space<vmem>>, %arg3: memref<4x128xf32, #tpu.memory_space<vmem>>, %arg4: memref<4x1xf32, #tpu.memory_space<vmem>>, %arg5: memref<1x4x256xf32, #tpu.memory_space<vmem>>) attributes {dimension_semantics = [#tpu.dimension_semantics<parallel>], iteration_bounds = array<i64: 2>, scalar_prefetch = 0 : i64, scratch_operands = 0 : i64, tpu.core_type = #tpu.core_type<tc>, window_params = [{transform_indices = @transform_0, window_bounds = array<i64: 1, 4, 256>}, {pipeline_mode = #tpu.pipeline_mode<synchronous>, transform_indices = @transform_1, window_bounds = array<i64: 384, 4>}, {pipeline_mode = #tpu.pipeline_mode<synchronous>, transform_indices = @transform_2, window_bounds = array<i64: 4, 128>}, {pipeline_mode = #tpu.pipeline_mode<synchronous>, transform_indices = @transform_3, window_bounds = array<i64: 4, 1>}, {transform_indices = @transform_4, window_bounds = array<i64: 1, 4, 256>}]} {
    %c0 = arith.constant 0 : index
    %c0_0 = arith.constant 0 : index
    %c0_1 = arith.constant 0 : index
    %0 = vector.load %arg1[%c0, %c0_0, %c0_1] : memref<1x4x256xf32, #tpu.memory_space<vmem>>, vector<1x4x256xf32>
    %1 = vector.shape_cast %0 : vector<1x4x256xf32> to vector<4x256xf32>
    %c0_2 = arith.constant 0 : index
    %c0_3 = arith.constant 0 : index
    %2 = vector.load %arg2[%c0_2, %c0_3] : memref<384x4xf32, #tpu.memory_space<vmem>>, vector<384x4xf32>
    %cst = arith.constant dense<0.000000e+00> : vector<384x256xf32>
    %3 = tpu.matmul %2, %1, %cst {dimension_numbers = #tpu.dot_dimension_numbers<[1], [0], [0], [1], [0, 0, 1, 1], [], []>} : vector<384x4xf32>, vector<4x256xf32>, vector<384x256xf32> -> vector<384x256xf32>
    %4 = vector.extract_strided_slice %3 {offsets = [0, 0], sizes = [32, 256], strides = [1, 1]} : vector<384x256xf32> to vector<32x256xf32>
    %5 = vector.extract_strided_slice %3 {offsets = [128, 0], sizes = [32, 256], strides = [1, 1]} : vector<384x256xf32> to vector<32x256xf32>
    %6 = vector.extract_strided_slice %3 {offsets = [256, 0], sizes = [32, 256], strides = [1, 1]} : vector<384x256xf32> to vector<32x256xf32>
    %7 = tpu.transpose %4, [1, 0] : vector<32x256xf32> -> vector<256x32xf32>
    %cst_4 = arith.constant 0.176776692 : f32
    %8 = vector.broadcast %cst_4 : f32 to vector<256x32xf32>
    %9 = arith.mulf %7, %8 : vector<256x32xf32>
    %cst_5 = arith.constant dense<0.000000e+00> : vector<256x256xf32>
    %10 = tpu.matmul %9, %5, %cst_5 {dimension_numbers = #tpu.dot_dimension_numbers<[1], [0], [0], [1], [0, 0, 1, 1], [], []>} : vector<256x32xf32>, vector<32x256xf32>, vector<256x256xf32> -> vector<256x256xf32>
    %cst_6 = arith.constant dense<0xFF800000> : vector<256xf32>
    %11 = vector.multi_reduction <maximumf>, %10, %cst_6 [1] : vector<256x256xf32> to vector<256xf32>
    %12 = vector.shape_cast %11 : vector<256xf32> to vector<256x1xf32>
    %13 = vector.broadcast %12 : vector<256x1xf32> to vector<256x256xf32>
    %14 = arith.subf %10, %13 : vector<256x256xf32>
    %15 = math.exp %14 : vector<256x256xf32>
    %cst_7 = arith.constant dense<0.000000e+00> : vector<256xf32>
    %16 = vector.multi_reduction <add>, %15, %cst_7 [1] : vector<256x256xf32> to vector<256xf32>
    %17 = vector.shape_cast %16 : vector<256xf32> to vector<256x1xf32>
    %18 = vector.broadcast %17 : vector<256x1xf32> to vector<256x256xf32>
    %19 = arith.divf %15, %18 : vector<256x256xf32>
    %cst_8 = arith.constant dense<0.000000e+00> : vector<32x256xf32>
    %20 = tpu.matmul %6, %19, %cst_8 {dimension_numbers = #tpu.dot_dimension_numbers<[1], [1], [0], [0], [0, 0, 1, 0], [], []>} : vector<32x256xf32>, vector<256x256xf32>, vector<32x256xf32> -> vector<32x256xf32>
    %21 = vector.extract_strided_slice %3 {offsets = [32, 0], sizes = [32, 256], strides = [1, 1]} : vector<384x256xf32> to vector<32x256xf32>
    %22 = vector.extract_strided_slice %3 {offsets = [160, 0], sizes = [32, 256], strides = [1, 1]} : vector<384x256xf32> to vector<32x256xf32>
    %23 = vector.extract_strided_slice %3 {offsets = [288, 0], sizes = [32, 256], strides = [1, 1]} : vector<384x256xf32> to vector<32x256xf32>
    %24 = tpu.transpose %21, [1, 0] : vector<32x256xf32> -> vector<256x32xf32>
    %cst_9 = arith.constant 0.176776692 : f32
    %25 = vector.broadcast %cst_9 : f32 to vector<256x32xf32>
    %26 = arith.mulf %24, %25 : vector<256x32xf32>
    %cst_10 = arith.constant dense<0.000000e+00> : vector<256x256xf32>
    %27 = tpu.matmul %26, %22, %cst_10 {dimension_numbers = #tpu.dot_dimension_numbers<[1], [0], [0], [1], [0, 0, 1, 1], [], []>} : vector<256x32xf32>, vector<32x256xf32>, vector<256x256xf32> -> vector<256x256xf32>
    %cst_11 = arith.constant dense<0xFF800000> : vector<256xf32>
    %28 = vector.multi_reduction <maximumf>, %27, %cst_11 [1] : vector<256x256xf32> to vector<256xf32>
    %29 = vector.shape_cast %28 : vector<256xf32> to vector<256x1xf32>
    %30 = vector.broadcast %29 : vector<256x1xf32> to vector<256x256xf32>
    %31 = arith.subf %27, %30 : vector<256x256xf32>
    %32 = math.exp %31 : vector<256x256xf32>
    %cst_12 = arith.constant dense<0.000000e+00> : vector<256xf32>
    %33 = vector.multi_reduction <add>, %32, %cst_12 [1] : vector<256x256xf32> to vector<256xf32>
    %34 = vector.shape_cast %33 : vector<256xf32> to vector<256x1xf32>
    %35 = vector.broadcast %34 : vector<256x1xf32> to vector<256x256xf32>
    %36 = arith.divf %32, %35 : vector<256x256xf32>
    %cst_13 = arith.constant dense<0.000000e+00> : vector<32x256xf32>
    %37 = tpu.matmul %23, %36, %cst_13 {dimension_numbers = #tpu.dot_dimension_numbers<[1], [1], [0], [0], [0, 0, 1, 0], [], []>} : vector<32x256xf32>, vector<256x256xf32>, vector<32x256xf32> -> vector<32x256xf32>
    %38 = vector.extract_strided_slice %3 {offsets = [64, 0], sizes = [32, 256], strides = [1, 1]} : vector<384x256xf32> to vector<32x256xf32>
    %39 = vector.extract_strided_slice %3 {offsets = [192, 0], sizes = [32, 256], strides = [1, 1]} : vector<384x256xf32> to vector<32x256xf32>
    %40 = vector.extract_strided_slice %3 {offsets = [320, 0], sizes = [32, 256], strides = [1, 1]} : vector<384x256xf32> to vector<32x256xf32>
    %41 = tpu.transpose %38, [1, 0] : vector<32x256xf32> -> vector<256x32xf32>
    %cst_14 = arith.constant 0.176776692 : f32
    %42 = vector.broadcast %cst_14 : f32 to vector<256x32xf32>
    %43 = arith.mulf %41, %42 : vector<256x32xf32>
    %cst_15 = arith.constant dense<0.000000e+00> : vector<256x256xf32>
    %44 = tpu.matmul %43, %39, %cst_15 {dimension_numbers = #tpu.dot_dimension_numbers<[1], [0], [0], [1], [0, 0, 1, 1], [], []>} : vector<256x32xf32>, vector<32x256xf32>, vector<256x256xf32> -> vector<256x256xf32>
    %cst_16 = arith.constant dense<0xFF800000> : vector<256xf32>
    %45 = vector.multi_reduction <maximumf>, %44, %cst_16 [1] : vector<256x256xf32> to vector<256xf32>
    %46 = vector.shape_cast %45 : vector<256xf32> to vector<256x1xf32>
    %47 = vector.broadcast %46 : vector<256x1xf32> to vector<256x256xf32>
    %48 = arith.subf %44, %47 : vector<256x256xf32>
    %49 = math.exp %48 : vector<256x256xf32>
    %cst_17 = arith.constant dense<0.000000e+00> : vector<256xf32>
    %50 = vector.multi_reduction <add>, %49, %cst_17 [1] : vector<256x256xf32> to vector<256xf32>
    %51 = vector.shape_cast %50 : vector<256xf32> to vector<256x1xf32>
    %52 = vector.broadcast %51 : vector<256x1xf32> to vector<256x256xf32>
    %53 = arith.divf %49, %52 : vector<256x256xf32>
    %cst_18 = arith.constant dense<0.000000e+00> : vector<32x256xf32>
    %54 = tpu.matmul %40, %53, %cst_18 {dimension_numbers = #tpu.dot_dimension_numbers<[1], [1], [0], [0], [0, 0, 1, 0], [], []>} : vector<32x256xf32>, vector<256x256xf32>, vector<32x256xf32> -> vector<32x256xf32>
    %55 = vector.extract_strided_slice %3 {offsets = [96, 0], sizes = [32, 256], strides = [1, 1]} : vector<384x256xf32> to vector<32x256xf32>
    %56 = vector.extract_strided_slice %3 {offsets = [224, 0], sizes = [32, 256], strides = [1, 1]} : vector<384x256xf32> to vector<32x256xf32>
    %57 = vector.extract_strided_slice %3 {offsets = [352, 0], sizes = [32, 256], strides = [1, 1]} : vector<384x256xf32> to vector<32x256xf32>
    %58 = tpu.transpose %55, [1, 0] : vector<32x256xf32> -> vector<256x32xf32>
    %cst_19 = arith.constant 0.176776692 : f32
    %59 = vector.broadcast %cst_19 : f32 to vector<256x32xf32>
    %60 = arith.mulf %58, %59 : vector<256x32xf32>
    %cst_20 = arith.constant dense<0.000000e+00> : vector<256x256xf32>
    %61 = tpu.matmul %60, %56, %cst_20 {dimension_numbers = #tpu.dot_dimension_numbers<[1], [0], [0], [1], [0, 0, 1, 1], [], []>} : vector<256x32xf32>, vector<32x256xf32>, vector<256x256xf32> -> vector<256x256xf32>
    %cst_21 = arith.constant dense<0xFF800000> : vector<256xf32>
    %62 = vector.multi_reduction <maximumf>, %61, %cst_21 [1] : vector<256x256xf32> to vector<256xf32>
    %63 = vector.shape_cast %62 : vector<256xf32> to vector<256x1xf32>
    %64 = vector.broadcast %63 : vector<256x1xf32> to vector<256x256xf32>
    %65 = arith.subf %61, %64 : vector<256x256xf32>
    %66 = math.exp %65 : vector<256x256xf32>
    %cst_22 = arith.constant dense<0.000000e+00> : vector<256xf32>
    %67 = vector.multi_reduction <add>, %66, %cst_22 [1] : vector<256x256xf32> to vector<256xf32>
    %68 = vector.shape_cast %67 : vector<256xf32> to vector<256x1xf32>
    %69 = vector.broadcast %68 : vector<256x1xf32> to vector<256x256xf32>
    %70 = arith.divf %66, %69 : vector<256x256xf32>
    %cst_23 = arith.constant dense<0.000000e+00> : vector<32x256xf32>
    %71 = tpu.matmul %57, %70, %cst_23 {dimension_numbers = #tpu.dot_dimension_numbers<[1], [1], [0], [0], [0, 0, 1, 0], [], []>} : vector<32x256xf32>, vector<256x256xf32>, vector<32x256xf32> -> vector<32x256xf32>
    %72 = tpu.concatenate %20, %37, %54, %71 in 0 : vector<32x256xf32>, vector<32x256xf32>, vector<32x256xf32>, vector<32x256xf32> -> vector<128x256xf32>
    %c0_24 = arith.constant 0 : index
    %c0_25 = arith.constant 0 : index
    %73 = vector.load %arg3[%c0_24, %c0_25] : memref<4x128xf32, #tpu.memory_space<vmem>>, vector<4x128xf32>
    %c0_26 = arith.constant 0 : index
    %c0_27 = arith.constant 0 : index
    %74 = vector.load %arg4[%c0_26, %c0_27] : memref<4x1xf32, #tpu.memory_space<vmem>>, vector<4x1xf32>
    %cst_28 = arith.constant dense<0.000000e+00> : vector<4x256xf32>
    %75 = tpu.matmul %73, %72, %cst_28 {dimension_numbers = #tpu.dot_dimension_numbers<[1], [0], [0], [1], [0, 0, 1, 1], [], []>} : vector<4x128xf32>, vector<128x256xf32>, vector<4x256xf32> -> vector<4x256xf32>
    %76 = vector.broadcast %74 : vector<4x1xf32> to vector<4x256xf32>
    %77 = arith.addf %75, %76 : vector<4x256xf32>
    %c0_29 = arith.constant 0 : index
    %c0_30 = arith.constant 0 : index
    %c0_31 = arith.constant 0 : index
    %78 = vector.load %arg5[%c0_29, %c0_30, %c0_31] : memref<1x4x256xf32, #tpu.memory_space<vmem>>, vector<1x4x256xf32>
    %79 = vector.shape_cast %78 : vector<1x4x256xf32> to vector<4x256xf32>
    %80 = vector.shape_cast %77 : vector<4x256xf32> to vector<1x4x256xf32>
    tpu.vector_store %arg5[%c0_29, %c0_30, %c0_31], %80 {strides = array<i32>} : memref<1x4x256xf32, #tpu.memory_space<vmem>>, vector<1x4x256xf32>,
    return
  }
  func.func @transform_0(%arg0: i32) -> (i32, i32, i32) {
    %c0_i32 = arith.constant 0 : i32
    %c0_i32_0 = arith.constant 0 : i32
    %c0_i32_1 = arith.constant 0 : i32
    return %arg0, %c0_i32, %c0_i32_0 : i32, i32, i32
  }
  func.func @transform_1(%arg0: i32) -> (i32, i32) {
    %c0_i32 = arith.constant 0 : i32
    %c0_i32_0 = arith.constant 0 : i32
    %c0_i32_1 = arith.constant 0 : i32
    return %c0_i32, %c0_i32_0 : i32, i32
  }
  func.func @transform_2(%arg0: i32) -> (i32, i32) {
    %c0_i32 = arith.constant 0 : i32
    %c0_i32_0 = arith.constant 0 : i32
    %c0_i32_1 = arith.constant 0 : i32
    return %c0_i32, %c0_i32_0 : i32, i32
  }
  func.func @transform_3(%arg0: i32) -> (i32, i32) {
    %c0_i32 = arith.constant 0 : i32
    %c0_i32_0 = arith.constant 0 : i32
    %c0_i32_1 = arith.constant 0 : i32
    return %c0_i32, %c0_i32_0 : i32, i32
  }
  func.func @transform_4(%arg0: i32) -> (i32, i32, i32) {
    %c0_i32 = arith.constant 0 : i32
    %c0_i32_0 = arith.constant 0 : i32
    %c0_i32_1 = arith.constant 0 : i32
    return %arg0, %c0_i32, %c0_i32_0 : i32, i32, i32
  }
}

</mosaic_0001>

<llo_original>
// kernel: attention_forward.1
$region0: #{attention_forward.1}
  #allocation0 [shape = 'u32[]', space=smem, size = 0x4, offset = 0x4, fixed_abs, tag = 'smem constant byte address 0x4 - core index']
  #allocation1 [shape = 'u32[144,128]{1,0:T(1,128)}', space=vmem, size = 0x12000, scoped, tag = 'internal scratch']
  %s0 = inlined_call_operand.vmem [shape: f32[2,4,256], index: 0, kind: input, shape index: {}]
  %s1 = inlined_call_operand.vmem [shape: f32[384,4], index: 1, kind: input, shape index: {}]
  %s2 = inlined_call_operand.vmem [shape: f32[4,128], index: 2, kind: input, shape index: {}]
  %s3 = inlined_call_operand.vmem [shape: f32[4,1], index: 3, kind: input, shape index: {}]
  %s4 = inlined_call_operand.vmem [shape: f32[2,4,256], index: 4, kind: output, shape index: {}]
  %s5 = sld [smem:[#allocation0]]
  $region49: #{attention_forward.1} parent=0
    _
  %s7 = ssub.s32 1, %s5
  %s8 = scalar_select 0, %s7, %s5
  loop: start=0, step=1, limit=4
  $region2: #{attention_forward.1} parent=0 // loop_pre_header
    _
  $region3: #{attention_forward.1} parent=0 // loop_header
    %s10 = sphi 0, %s14
    %p11 = scmp.ge.s32.totalorder %s10, 4
    %s20 = sphi 0, %s22
    %s23 = sphi 0, %s20
    %s24 = sphi 0, %s23
    %s40 = sphi 0, %s24
    %s44 = sphi 0, %s44
    %s46 = sphi 0, %s44
    %s47 = sphi 0, %s46
    %s61 = sphi 0, %s47
    %s65 = sphi 0, %s65
    %s67 = sphi 0, %s65
    %s68 = sphi 0, %s67
    %s82 = sphi 0, %s68
    %s86 = sphi 0, %s86
    %s88 = sphi 0, %s86
    %s89 = sphi 0, %s88
    %s103 = sphi 0, %s89
    %s109 = sphi 0, %s111
    %s112 = sphi 0, %s109
    %s113 = sphi 0, %s112
    %s129 = sphi 0, %s113
  $region4: #{attention_forward.1} parent=0 // loop_header_branch
    %13 = sbr.rel (%p11) target = $region8
  $region5: #{attention_forward.1} parent=0 // loop_body
    %s15 = ssub.s32 %s10, 1
    %s16 = ssub.s32 %s10, 2
    %s17 = sadd.s32 %s10, 1
    %s18 = ssub.s32 %s10, %s17
    %p19 = scmp.eq.s32.totalorder %s18, 0
    %s21 = sadd.s32 %s20, 1
    %s22 = scalar_select %p19, %s20, %s21
    %p25 = pneg %p19
    %p26 = scmp.eq.s32.totalorder %s10, 1
    %p27 = por %p25, %p26
    %p28 = scmp.ne.s32.totalorder %s20, %s23
    %p29 = scmp.eq.s32.totalorder %s10, 0
    %p30 = por %p28, %p29
    %p31 = scmp.ne.s32.totalorder %s20, %s23
    %p32 = scmp.eq.s32.totalorder %s15, 1
    %p33 = por %p31, %p32
    %p34 = scmp.ne.s32.totalorder %s23, %s24
    %p35 = scmp.eq.s32.totalorder %s15, 0
    %p36 = por %p34, %p35
    %p37 = scmp.ne.s32.totalorder %s23, %s24
    %p38 = scmp.eq.s32.totalorder %s16, 1
    %p39 = por %p37, %p38
    %p41 = scmp.ne.s32.totalorder %s24, %s40
    %p42 = scmp.eq.s32.totalorder %s16, 0
    %p43 = por %p41, %p42
    %s45 = sadd.s32 %s44, 1
    %p48 = scmp.eq.s32.totalorder %s10, 1
    %p49 = scmp.ne.s32.totalorder %s44, %s46
    %p50 = scmp.eq.s32.totalorder %s10, 0
    %p51 = por %p49, %p50
    %p52 = scmp.ne.s32.totalorder %s44, %s46
    %p53 = scmp.eq.s32.totalorder %s15, 1
    %p54 = por %p52, %p53
    %p55 = scmp.ne.s32.totalorder %s46, %s47
    %p56 = scmp.eq.s32.totalorder %s15, 0
    %p57 = por %p55, %p56
    %p58 = scmp.ne.s32.totalorder %s46, %s47
    %p59 = scmp.eq.s32.totalorder %s16, 1
    %p60 = por %p58, %p59
    %p62 = scmp.ne.s32.totalorder %s47, %s61
    %p63 = scmp.eq.s32.totalorder %s16, 0
    %p64 = por %p62, %p63
    %s66 = sadd.s32 %s65, 1
    %p69 = scmp.eq.s32.totalorder %s10, 1
    %p70 = scmp.ne.s32.totalorder %s65, %s67
    %p71 = scmp.eq.s32.totalorder %s10, 0
    %p72 = por %p70, %p71
    %p73 = scmp.ne.s32.totalorder %s65, %s67
    %p74 = scmp.eq.s32.totalorder %s15, 1
    %p75 = por %p73, %p74
    %p76 = scmp.ne.s32.totalorder %s67, %s68
    %p77 = scmp.eq.s32.totalorder %s15, 0
    %p78 = por %p76, %p77
    %p79 = scmp.ne.s32.totalorder %s67, %s68
    %p80 = scmp.eq.s32.totalorder %s16, 1
    %p81 = por %p79, %p80
    %p83 = scmp.ne.s32.totalorder %s68, %s82
    %p84 = scmp.eq.s32.totalorder %s16, 0
    %p85 = por %p83, %p84
    %s87 = sadd.s32 %s86, 1
    %p90 = scmp.eq.s32.totalorder %s10, 1
    %p91 = scmp.ne.s32.totalorder %s86, %s88
    %p92 = scmp.eq.s32.totalorder %s10, 0
    %p93 = por %p91, %p92
    %p94 = scmp.ne.s32.totalorder %s86, %s88
    %p95 = scmp.eq.s32.totalorder %s15, 1
    %p96 = por %p94, %p95
    %p97 = scmp.ne.s32.totalorder %s88, %s89
    %p98 = scmp.eq.s32.totalorder %s15, 0
    %p99 = por %p97, %p98
    %p100 = scmp.ne.s32.totalorder %s88, %s89
    %p101 = scmp.eq.s32.totalorder %s16, 1
    %p102 = por %p100, %p101
    %p104 = scmp.ne.s32.totalorder %s89, %s103
    %p105 = scmp.eq.s32.totalorder %s16, 0
    %p106 = por %p104, %p105
    %s107 = ssub.s32 %s10, %s17
    %p108 = scmp.eq.s32.totalorder %s107, 0
    %s110 = sadd.s32 %s109, 1
    %s111 = scalar_select %p108, %s109, %s110
    %p114 = pneg %p108
    %p115 = scmp.eq.s32.totalorder %s10, 1
    %p116 = por %p114, %p115
    %p117 = scmp.ne.s32.totalorder %s109, %s112
    %p118 = scmp.eq.s32.totalorder %s10, 0
    %p119 = por %p117, %p118
    %p120 = scmp.ne.s32.totalorder %s109, %s112
    %p121 = scmp.eq.s32.totalorder %s15, 1
    %p122 = por %p120, %p121
    %p123 = scmp.ne.s32.totalorder %s112, %s113
    %p124 = scmp.eq.s32.totalorder %s15, 0
    %p125 = por %p123, %p124
    %p126 = scmp.ne.s32.totalorder %s112, %s113
    %p127 = scmp.eq.s32.totalorder %s16, 1
    %p128 = por %p126, %p127
    %p130 = scmp.ne.s32.totalorder %s113, %s129
    %p131 = scmp.eq.s32.totalorder %s16, 0
    %p132 = por %p130, %p131
    %p133 = scmp.le.s32.totalorder 1, %s10
    %p134 = scmp.lt.s32.totalorder %s10, 3
    %p135 = pnand %p133, %p134
    %p136 = pneg %p135
    // Predicated region
    $region9: #{attention_forward.1} parent=5 // pred_check
      _
    $region10: #{attention_forward.1} parent=5 // pred_check_branch
      %138 = sbr.rel (%p135) target = $region12
    $region11: #{attention_forward.1} parent=5 // pred_region
      %s139 = ssub.s32 %s10, 1
      // Predicated region
      $region13: #{attention_forward.1} parent=11 // pred_check
        %p140 = pneg %p57
      $region14: #{attention_forward.1} parent=11 // pred_check_branch
        %142 = sbr.rel (%p140) target = $region16
      $region15: #{attention_forward.1} parent=11 // pred_region
        _
      $region16: #{attention_forward.1} parent=11 // pred_fallthru
        _
      // Predicated region
      $region17: #{attention_forward.1} parent=11 // pred_check
        %p143 = pneg %p78
      $region18: #{attention_forward.1} parent=11 // pred_check_branch
        %145 = sbr.rel (%p143) target = $region20
      $region19: #{attention_forward.1} parent=11 // pred_region
        _
      $region20: #{attention_forward.1} parent=11 // pred_fallthru
        _
      // Predicated region
      $region21: #{attention_forward.1} parent=11 // pred_check
        %p146 = pneg %p99
      $region22: #{attention_forward.1} parent=11 // pred_check_branch
        %148 = sbr.rel (%p146) target = $region24
      $region23: #{attention_forward.1} parent=11 // pred_region
        _
      $region24: #{attention_forward.1} parent=11 // pred_fallthru
        _
    $region12: #{attention_forward.1} parent=5 // pred_fallthru
      _
    %p149 = scmp.lt.s32.totalorder %s10, 2
    // Predicated region
    $region25: #{attention_forward.1} parent=5 // pred_check
      %p150 = pneg %p149
    $region26: #{attention_forward.1} parent=5 // pred_check_branch
      %152 = sbr.rel (%p150) target = $region28
    $region27: #{attention_forward.1} parent=5 // pred_region
      // Predicated region
      $region29: #{attention_forward.1} parent=27 // pred_check
        %p153 = pneg %p30
      $region30: #{attention_forward.1} parent=27 // pred_check_branch
        %155 = sbr.rel (%p153) target = $region32
      $region31: #{attention_forward.1} parent=27 // pred_region
        %p156 = scmp.lt.s32.totalorder %s10, 1
        %s157 = scalar_select %p156, %s10, 1
        %s158 = smul.addr %s157, 2
        %s159 = smul.addr %s158, 4
        %s160 = scalar_lea.vmem %s0, %s159
      $region32: #{attention_forward.1} parent=27 // pred_fallthru
        _
    $region28: #{attention_forward.1} parent=5 // pred_fallthru
      _
    %p161 = scmp.le.s32.totalorder 1, %s10
    %p162 = scmp.lt.s32.totalorder %s10, 3
    %p163 = pnand %p161, %p162
    %p164 = pneg %p163
    // Predicated region
    $region33: #{attention_forward.1} parent=5 // pred_check
      _
    $region34: #{attention_forward.1} parent=5 // pred_check_branch
      %166 = sbr.rel (%p163) target = $region36
    $region35: #{attention_forward.1} parent=5 // pred_region
      %s167 = ssub.s32 %s10, 1
      %p168 = scmp.lt.s32.totalorder %s15, 1
      %s169 = scalar_select %p168, %s15, 1
      %s170 = smul.addr %s169, 2
      %s171 = smul.addr %s170, 4
      %s172 = scalar_lea.vmem %s0, %s171
      %p173 = pneg %p36
      %p174 = pneg %p33
      %p175 = pneg %p57
      %p176 = pneg %p54
      %p177 = pneg %p78
      %p178 = pneg %p75
      %p179 = pneg %p99
      %p180 = pneg %p96
      %p181 = pneg %p125
      %p182 = pneg %p122
      %p183 = scmp.lt.s32.totalorder %s15, 1
      %s184 = scalar_select %p183, %s15, 1
      %s185 = smul.addr %s184, 2
      %s186 = smul.addr %s185, 4
      %s187 = scalar_lea.vmem %s4, %s186
      %p188 = scmp.lt.s32.totalorder %s15, 1
      %s189 = scalar_select %p188, %s15, 1
      %s190 = smul.addr %s189, 2
      %s191 = smul.addr %s190, 4
      %s192 = scalar_lea.vmem %s0, %s191
      %p193 = scmp.lt.s32.totalorder %s15, 1
      %s194 = scalar_select %p193, %s15, 1
      %s195 = smul.addr %s194, 2
      %s196 = smul.addr %s195, 4
      %s197 = scalar_lea.vmem %s4, %s196
      %v198 = vld [vmem:[%s192] sm:$0xff]
      %v199 = vld [vmem:[%s1] sm:$0xff]
      %v200 = vld [vmem:[%s1 + $0x8] sm:$0xff]
      %v201 = vld [vmem:[%s1 + $0x10] sm:$0xff]
      %v202 = vld [vmem:[%s1 + $0x18] sm:$0xff]
      %v203 = vld [vmem:[%s1 + $0x20] sm:$0xff]
      %v204 = vld [vmem:[%s1 + $0x28] sm:$0xff]
      %v205 = vld [vmem:[%s1 + $0x30] sm:$0xff]
      %v206 = vld [vmem:[%s1 + $0x38] sm:$0xff]
      %v207 = vld [vmem:[%s1 + $0x40] sm:$0xff]
      %v208 = vld [vmem:[%s1 + $0x48] sm:$0xff]
      %v209 = vld [vmem:[%s1 + $0x50] sm:$0xff]
      %v210 = vld [vmem:[%s1 + $0x58] sm:$0xff]
      %v211 = vld [vmem:[%s1 + $0x60] sm:$0xff]
      %v212 = vld [vmem:[%s1 + $0x68] sm:$0xff]
      %v213 = vld [vmem:[%s1 + $0x70] sm:$0xff]
      %v214 = vld [vmem:[%s1 + $0x78] sm:$0xff]
      %v215 = vld [vmem:[%s1 + $0x80] sm:$0xff]
      %v216 = vld [vmem:[%s1 + $0x88] sm:$0xff]
      %v217 = vld [vmem:[%s1 + $0x90] sm:$0xff]
      %v218 = vld [vmem:[%s1 + $0x98] sm:$0xff]
      %v219 = vld [vmem:[%s1 + $0xa0] sm:$0xff]
      %v220 = vld [vmem:[%s1 + $0xa8] sm:$0xff]
      %v221 = vld [vmem:[%s1 + $0xb0] sm:$0xff]
      %v222 = vld [vmem:[%s1 + $0xb8] sm:$0xff]
      %v223 = vld [vmem:[%s1 + $0xc0] sm:$0xff]
      %v224 = vld [vmem:[%s1 + $0xc8] sm:$0xff]
      %v225 = vld [vmem:[%s1 + $0xd0] sm:$0xff]
      %v226 = vld [vmem:[%s1 + $0xd8] sm:$0xff]
      %v227 = vld [vmem:[%s1 + $0xe0] sm:$0xff]
      %v228 = vld [vmem:[%s1 + $0xe8] sm:$0xff]
      %v229 = vld [vmem:[%s1 + $0xf0] sm:$0xff]
      %v230 = vld [vmem:[%s1 + $0xf8] sm:$0xff]
      %v231 = vld [vmem:[%s1 + $0x100] sm:$0xff]
      %v232 = vld [vmem:[%s1 + $0x108] sm:$0xff]
      %v233 = vld [vmem:[%s1 + $0x110] sm:$0xff]
      %v234 = vld [vmem:[%s1 + $0x118] sm:$0xff]
      %v235 = vld [vmem:[%s1 + $0x120] sm:$0xff]
      %v236 = vld [vmem:[%s1 + $0x128] sm:$0xff]
      %v237 = vld [vmem:[%s1 + $0x130] sm:$0xff]
      %v238 = vld [vmem:[%s1 + $0x138] sm:$0xff]
      %v239 = vld [vmem:[%s1 + $0x140] sm:$0xff]
      %v240 = vld [vmem:[%s1 + $0x148] sm:$0xff]
      %v241 = vld [vmem:[%s1 + $0x150] sm:$0xff]
      %v242 = vld [vmem:[%s1 + $0x158] sm:$0xff]
      %v243 = vld [vmem:[%s1 + $0x160] sm:$0xff]
      %v244 = vld [vmem:[%s1 + $0x168] sm:$0xff]
      %v245 = vld [vmem:[%s1 + $0x170] sm:$0xff]
      %v246 = vld [vmem:[%s1 + $0x178] sm:$0xff]
      %v248 = vcombine.high %v198, %v198
      %vm249 = vcmask 31744
      %v251 = vsel %vm249, %v199, 0
      %v254 = vsel %vm249, %v200, 0
      %v257 = vsel %vm249, %v201, 0
      %v260 = vsel %vm249, %v202, 0
      %v263 = vsel %vm249, %v203, 0
      %v266 = vsel %vm249, %v204, 0
      %v269 = vsel %vm249, %v205, 0
      %v272 = vsel %vm249, %v206, 0
      %v275 = vsel %vm249, %v207, 0
      %v278 = vsel %vm249, %v208, 0
      %v281 = vsel %vm249, %v209, 0
      %v284 = vsel %vm249, %v210, 0
      %v287 = vsel %vm249, %v211, 0
      %v290 = vsel %vm249, %v212, 0
      %v293 = vsel %vm249, %v213, 0
      %v296 = vsel %vm249, %v214, 0
      %v299 = vsel %vm249, %v215, 0
      %v302 = vsel %vm249, %v216, 0
      %v305 = vsel %vm249, %v217, 0
      %v308 = vsel %vm249, %v218, 0
      %v311 = vsel %vm249, %v219, 0
      %v314 = vsel %vm249, %v220, 0
      %v317 = vsel %vm249, %v221, 0
      %v320 = vsel %vm249, %v222, 0
      %v323 = vsel %vm249, %v223, 0
      %v326 = vsel %vm249, %v224, 0
      %v329 = vsel %vm249, %v225, 0
      %v332 = vsel %vm249, %v226, 0
      %v335 = vsel %vm249, %v227, 0
      %v338 = vsel %vm249, %v228, 0
      %v341 = vsel %vm249, %v229, 0
      %v344 = vsel %vm249, %v230, 0
      %v347 = vsel %vm249, %v231, 0
      %v350 = vsel %vm249, %v232, 0
      %v353 = vsel %vm249, %v233, 0
      %v356 = vsel %vm249, %v234, 0
      %v359 = vsel %vm249, %v235, 0
      %v362 = vsel %vm249, %v236, 0
      %v365 = vsel %vm249, %v237, 0
      %v368 = vsel %vm249, %v238, 0
      %v371 = vsel %vm249, %v239, 0
      %v374 = vsel %vm249, %v240, 0
      %v377 = vsel %vm249, %v241, 0
      %v380 = vsel %vm249, %v242, 0
      %v383 = vsel %vm249, %v243, 0
      %v386 = vsel %vm249, %v244, 0
      %v389 = vsel %vm249, %v245, 0
      %v392 = vsel %vm249, %v246, 0
      %vm394 = vcmask 1043456
      %v395 = vsel %vm394, %v198, 0
      %v397 = vsel %vm394, %v248, 0
      %399 = vmatprep.subr.mxu0 %v397
      %400 = vmatpush1.msra.mxu0 %v395
      %401 = vmatprep.subr.mxu0 0.0
      %402 = vmatpush1.msra.mxu0 0.0
      %403 = vmatprep.subr.mxu0 0.0
      %404 = vmatpush1.msra.mxu0 0.0
      %405 = vmatprep.subr.mxu0 0.0
      %406 = vmatpush1.msra.mxu0 0.0
      %407 = vmatprep.subr.mxu0 0.0
      %408 = vmatpush1.msra.mxu0 0.0
      %409 = vmatprep.subr.mxu0 0.0
      %410 = vmatpush1.msra.mxu0 0.0
      %411 = vmatprep.subr.mxu0 0.0
      %412 = vmatpush1.msra.mxu0 0.0
      %413 = vmatprep.subr.mxu0 0.0
      %414 = vmatpush1.msra.mxu0 0.0
      %415 = vmatprep.subr.mxu0 0.0
      %416 = vmatpush1.msra.mxu0 0.0
      %417 = vmatprep.subr.mxu0 0.0
      %418 = vmatpush1.msra.mxu0 0.0
      %419 = vmatprep.subr.mxu0 0.0
      %420 = vmatpush1.msra.mxu0 0.0
      %421 = vmatprep.subr.mxu0 0.0
      %422 = vmatpush1.msra.mxu0 0.0
      %423 = vmatprep.subr.mxu0 0.0
      %424 = vmatpush1.msra.mxu0 0.0
      %425 = vmatprep.subr.mxu0 0.0
      %426 = vmatpush1.msra.mxu0 0.0
      %427 = vmatprep.subr.mxu0 0.0
      %428 = vmatpush1.msra.mxu0 0.0
      %429 = vmatprep.subr.mxu0 0.0
      %430 = vmatpush1.msra.mxu0 0.0
      %431 = vmatprep.subr.mxu0 0.0
      %432 = vmatpush1.msra.mxu0 0.0
      %433 = vmatprep.subr.mxu0 0.0
      %434 = vmatpush1.msra.mxu0 0.0
      %435 = vmatprep.subr.mxu0 0.0
      %436 = vmatpush1.msra.mxu0 0.0
      %437 = vmatprep.subr.mxu0 0.0
      %438 = vmatpush1.msra.mxu0 0.0
      %439 = vmatprep.subr.mxu0 0.0
      %440 = vmatpush1.msra.mxu0 0.0
      %441 = vmatprep.subr.mxu0 0.0
      %442 = vmatpush1.msra.mxu0 0.0
      %443 = vmatprep.subr.mxu0 0.0
      %444 = vmatpush1.msra.mxu0 0.0
      %445 = vmatprep.subr.mxu0 0.0
      %446 = vmatpush1.msra.mxu0 0.0
      %447 = vmatprep.subr.mxu0 0.0
      %448 = vmatpush1.msra.mxu0 0.0
      %449 = vmatprep.subr.mxu0 0.0
      %450 = vmatpush1.msra.mxu0 0.0
      %451 = vmatprep.subr.mxu0 0.0
      %452 = vmatpush1.msra.mxu0 0.0
      %453 = vmatprep.subr.mxu0 0.0
      %454 = vmatpush1.msra.mxu0 0.0
      %455 = vmatprep.subr.mxu0 0.0
      %456 = vmatpush1.msra.mxu0 0.0
      %457 = vmatprep.subr.mxu0 0.0
      %458 = vmatpush1.msra.mxu0 0.0
      %459 = vmatprep.subr.mxu0 0.0
      %460 = vmatpush1.msra.mxu0 0.0
      %461 = vmatprep.subr.mxu0 0.0
      %462 = vmatpush1.msra.mxu0 0.0
      %463 = vmatprep.mubr.f32.mxu0 0.0
      %464 = vmatmul.mubr.f32.gmra.mrb[0].mxu0 %v251
      %v465 = vpop.f32.mrb[0].mxu0
      %v466 = vadd.f32 0.0, %v465
      %v467 = vpop.f32.mrb[0].mxu0
      %v468 = vadd.f32 0.0, %v467
      %469 = vmatprep.mubr.f32.mxu0 0.0
      %470 = vmatmul.mubr.f32.gmra.mrb[0].mxu0 %v254
      %v471 = vpop.f32.mrb[0].mxu0
      %v472 = vadd.f32 0.0, %v471
      %v473 = vpop.f32.mrb[0].mxu0
      %v474 = vadd.f32 0.0, %v473
      %475 = vmatprep.mubr.f32.mxu0 0.0
      %476 = vmatmul.mubr.f32.gmra.mrb[0].mxu0 %v257
      %v477 = vpop.f32.mrb[0].mxu0
      %v478 = vadd.f32 0.0, %v477
      %v479 = vpop.f32.mrb[0].mxu0
      %v480 = vadd.f32 0.0, %v479
      %481 = vmatprep.mubr.f32.mxu0 0.0
      %482 = vmatmul.mubr.f32.gmra.mrb[0].mxu0 %v260
      %v483 = vpop.f32.mrb[0].mxu0
      %v484 = vadd.f32 0.0, %v483
      %v485 = vpop.f32.mrb[0].mxu0
      %v486 = vadd.f32 0.0, %v485
      %487 = vmatprep.mubr.f32.mxu0 0.0
      %488 = vmatmul.mubr.f32.gmra.mrb[0].mxu0 %v263
      %v489 = vpop.f32.mrb[0].mxu0
      %v490 = vadd.f32 0.0, %v489
      %v491 = vpop.f32.mrb[0].mxu0
      %v492 = vadd.f32 0.0, %v491
      %493 = vmatprep.mubr.f32.mxu0 0.0
      %494 = vmatmul.mubr.f32.gmra.mrb[0].mxu0 %v266
      %v495 = vpop.f32.mrb[0].mxu0
      %v496 = vadd.f32 0.0, %v495
      %v497 = vpop.f32.mrb[0].mxu0
      %v498 = vadd.f32 0.0, %v497
      %499 = vmatprep.mubr.f32.mxu0 0.0
      %500 = vmatmul.mubr.f32.gmra.mrb[0].mxu0 %v269
      %v501 = vpop.f32.mrb[0].mxu0
      %v502 = vadd.f32 0.0, %v501
      %v503 = vpop.f32.mrb[0].mxu0
      %v504 = vadd.f32 0.0, %v503
      %505 = vmatprep.mubr.f32.mxu0 0.0
      %506 = vmatmul.mubr.f32.gmra.mrb[0].mxu0 %v272
      %v507 = vpop.f32.mrb[0].mxu0
      %v508 = vadd.f32 0.0, %v507
      %v509 = vpop.f32.mrb[0].mxu0
      %v510 = vadd.f32 0.0, %v509
      %511 = vmatprep.mubr.f32.mxu0 0.0
      %512 = vmatmul.mubr.f32.gmra.mrb[0].mxu0 %v275
      %v513 = vpop.f32.mrb[0].mxu0
      %v514 = vadd.f32 0.0, %v513
      %v515 = vpop.f32.mrb[0].mxu0
      %v516 = vadd.f32 0.0, %v515
      %517 = vmatprep.mubr.f32.mxu0 0.0
      %518 = vmatmul.mubr.f32.gmra.mrb[0].mxu0 %v278
      %v519 = vpop.f32.mrb[0].mxu0
      %v520 = vadd.f32 0.0, %v519
      %v521 = vpop.f32.mrb[0].mxu0
      %v522 = vadd.f32 0.0, %v521
      %523 = vmatprep.mubr.f32.mxu0 0.0
      %524 = vmatmul.mubr.f32.gmra.mrb[0].mxu0 %v281
      %v525 = vpop.f32.mrb[0].mxu0
      %v526 = vadd.f32 0.0, %v525
      %v527 = vpop.f32.mrb[0].mxu0
      %v528 = vadd.f32 0.0, %v527
      %529 = vmatprep.mubr.f32.mxu0 0.0
      %530 = vmatmul.mubr.f32.gmra.mrb[0].mxu0 %v284
      %v531 = vpop.f32.mrb[0].mxu0
      %v532 = vadd.f32 0.0, %v531
      %v533 = vpop.f32.mrb[0].mxu0
      %v534 = vadd.f32 0.0, %v533
      %535 = vmatprep.mubr.f32.mxu0 0.0
      %536 = vmatmul.mubr.f32.gmra.mrb[0].mxu0 %v287
      %v537 = vpop.f32.mrb[0].mxu0
      %v538 = vadd.f32 0.0, %v537
      %v539 = vpop.f32.mrb[0].mxu0
      %v540 = vadd.f32 0.0, %v539
      %541 = vmatprep.mubr.f32.mxu0 0.0
      %542 = vmatmul.mubr.f32.gmra.mrb[0].mxu0 %v290
      %v543 = vpop.f32.mrb[0].mxu0
      %v544 = vadd.f32 0.0, %v543
      %v545 = vpop.f32.mrb[0].mxu0
      %v546 = vadd.f32 0.0, %v545
      %547 = vmatprep.mubr.f32.mxu0 0.0
      %548 = vmatmul.mubr.f32.gmra.mrb[0].mxu0 %v293
      %v549 = vpop.f32.mrb[0].mxu0
      %v550 = vadd.f32 0.0, %v549
      %v551 = vpop.f32.mrb[0].mxu0
      %v552 = vadd.f32 0.0, %v551
      %553 = vmatprep.mubr.f32.mxu0 0.0
      %554 = vmatmul.mubr.f32.gmra.mrb[0].mxu0 %v296
      %v555 = vpop.f32.mrb[0].mxu0
      %v556 = vadd.f32 0.0, %v555
      %v557 = vpop.f32.mrb[0].mxu0
      %v558 = vadd.f32 0.0, %v557
      %559 = vmatprep.mubr.f32.mxu0 0.0
      %560 = vmatmul.mubr.f32.gmra.mrb[0].mxu0 %v299
      %v561 = vpop.f32.mrb[0].mxu0
      %v562 = vadd.f32 0.0, %v561
      %v563 = vpop.f32.mrb[0].mxu0
      %v564 = vadd.f32 0.0, %v563
      %565 = vmatprep.mubr.f32.mxu0 0.0
      %566 = vmatmul.mubr.f32.gmra.mrb[0].mxu0 %v302
      %v567 = vpop.f32.mrb[0].mxu0
      %v568 = vadd.f32 0.0, %v567
      %v569 = vpop.f32.mrb[0].mxu0
      %v570 = vadd.f32 0.0, %v569
      %571 = vmatprep.mubr.f32.mxu0 0.0
      %572 = vmatmul.mubr.f32.gmra.mrb[0].mxu0 %v305
      %v573 = vpop.f32.mrb[0].mxu0
      %v574 = vadd.f32 0.0, %v573
      %v575 = vpop.f32.mrb[0].mxu0
      %v576 = vadd.f32 0.0, %v575
      %577 = vmatprep.mubr.f32.mxu0 0.0
      %578 = vmatmul.mubr.f32.gmra.mrb[0].mxu0 %v308
      %v579 = vpop.f32.mrb[0].mxu0
      %v580 = vadd.f32 0.0, %v579
      %v581 = vpop.f32.mrb[0].mxu0
      %v582 = vadd.f32 0.0, %v581
      %583 = vmatprep.mubr.f32.mxu0 0.0
      %584 = vmatmul.mubr.f32.gmra.mrb[0].mxu0 %v311
      %v585 = vpop.f32.mrb[0].mxu0
      %v586 = vadd.f32 0.0, %v585
      %v587 = vpop.f32.mrb[0].mxu0
      %v588 = vadd.f32 0.0, %v587
      %589 = vmatprep.mubr.f32.mxu0 0.0
      %590 = vmatmul.mubr.f32.gmra.mrb[0].mxu0 %v314
      %v591 = vpop.f32.mrb[0].mxu0
      %v592 = vadd.f32 0.0, %v591
      %v593 = vpop.f32.mrb[0].mxu0
      %v594 = vadd.f32 0.0, %v593
      %595 = vmatprep.mubr.f32.mxu0 0.0
      %596 = vmatmul.mubr.f32.gmra.mrb[0].mxu0 %v317
      %v597 = vpop.f32.mrb[0].mxu0
      %v598 = vadd.f32 0.0, %v597
      %v599 = vpop.f32.mrb[0].mxu0
      %v600 = vadd.f32 0.0, %v599
      %601 = vmatprep.mubr.f32.mxu0 0.0
      %602 = vmatmul.mubr.f32.gmra.mrb[0].mxu0 %v320
      %v603 = vpop.f32.mrb[0].mxu0
      %v604 = vadd.f32 0.0, %v603
      %v605 = vpop.f32.mrb[0].mxu0
      %v606 = vadd.f32 0.0, %v605
      %607 = vmatprep.mubr.f32.mxu0 0.0
      %608 = vmatmul.mubr.f32.gmra.mrb[0].mxu0 %v323
      %v609 = vpop.f32.mrb[0].mxu0
      %v610 = vadd.f32 0.0, %v609
      %v611 = vpop.f32.mrb[0].mxu0
      %v612 = vadd.f32 0.0, %v611
      %613 = vmatprep.mubr.f32.mxu0 0.0
      %614 = vmatmul.mubr.f32.gmra.mrb[0].mxu0 %v326
      %v615 = vpop.f32.mrb[0].mxu0
      %v616 = vadd.f32 0.0, %v615
      %v617 = vpop.f32.mrb[0].mxu0
      %v618 = vadd.f32 0.0, %v617
      %619 = vmatprep.mubr.f32.mxu0 0.0
      %620 = vmatmul.mubr.f32.gmra.mrb[0].mxu0 %v329
      %v621 = vpop.f32.mrb[0].mxu0
      %v622 = vadd.f32 0.0, %v621
      %v623 = vpop.f32.mrb[0].mxu0
      %v624 = vadd.f32 0.0, %v623
      %625 = vmatprep.mubr.f32.mxu0 0.0
      %626 = vmatmul.mubr.f32.gmra.mrb[0].mxu0 %v332
      %v627 = vpop.f32.mrb[0].mxu0
      %v628 = vadd.f32 0.0, %v627
      %v629 = vpop.f32.mrb[0].mxu0
      %v630 = vadd.f32 0.0, %v629
      %631 = vmatprep.mubr.f32.mxu0 0.0
      %632 = vmatmul.mubr.f32.gmra.mrb[0].mxu0 %v335
      %v633 = vpop.f32.mrb[0].mxu0
      %v634 = vadd.f32 0.0, %v633
      %v635 = vpop.f32.mrb[0].mxu0
      %v636 = vadd.f32 0.0, %v635
      %637 = vmatprep.mubr.f32.mxu0 0.0
      %638 = vmatmul.mubr.f32.gmra.mrb[0].mxu0 %v338
      %v639 = vpop.f32.mrb[0].mxu0
      %v640 = vadd.f32 0.0, %v639
      %v641 = vpop.f32.mrb[0].mxu0
      %v642 = vadd.f32 0.0, %v641
      %643 = vmatprep.mubr.f32.mxu0 0.0
      %644 = vmatmul.mubr.f32.gmra.mrb[0].mxu0 %v341
      %v645 = vpop.f32.mrb[0].mxu0
      %v646 = vadd.f32 0.0, %v645
      %v647 = vpop.f32.mrb[0].mxu0
      %v648 = vadd.f32 0.0, %v647
      %649 = vmatprep.mubr.f32.mxu0 0.0
      %650 = vmatmul.mubr.f32.gmra.mrb[0].mxu0 %v344
      %v651 = vpop.f32.mrb[0].mxu0
      %v652 = vadd.f32 0.0, %v651
      %v653 = vpop.f32.mrb[0].mxu0
      %v654 = vadd.f32 0.0, %v653
      %655 = vmatprep.mubr.f32.mxu0 0.0
      %656 = vmatmul.mubr.f32.gmra.mrb[0].mxu0 %v347
      %v657 = vpop.f32.mrb[0].mxu0
      %v658 = vadd.f32 0.0, %v657
      %v659 = vpop.f32.mrb[0].mxu0
      %v660 = vadd.f32 0.0, %v659
      %661 = vmatprep.mubr.f32.mxu0 0.0
      %662 = vmatmul.mubr.f32.gmra.mrb[0].mxu0 %v350
      %v663 = vpop.f32.mrb[0].mxu0
      %v664 = vadd.f32 0.0, %v663
      %v665 = vpop.f32.mrb[0].mxu0
      %v666 = vadd.f32 0.0, %v665
      %667 = vmatprep.mubr.f32.mxu0 0.0
      %668 = vmatmul.mubr.f32.gmra.mrb[0].mxu0 %v353
      %v669 = vpop.f32.mrb[0].mxu0
      %v670 = vadd.f32 0.0, %v669
      %v671 = vpop.f32.mrb[0].mxu0
      %v672 = vadd.f32 0.0, %v671
      %673 = vmatprep.mubr.f32.mxu0 0.0
      %674 = vmatmul.mubr.f32.gmra.mrb[0].mxu0 %v356
      %v675 = vpop.f32.mrb[0].mxu0
      %v676 = vadd.f32 0.0, %v675
      %v677 = vpop.f32.mrb[0].mxu0
      %v678 = vadd.f32 0.0, %v677
      %679 = vmatprep.mubr.f32.mxu0 0.0
      %680 = vmatmul.mubr.f32.gmra.mrb[0].mxu0 %v359
      %v681 = vpop.f32.mrb[0].mxu0
      %v682 = vadd.f32 0.0, %v681
      %v683 = vpop.f32.mrb[0].mxu0
      %v684 = vadd.f32 0.0, %v683
      %685 = vmatprep.mubr.f32.mxu0 0.0
      %686 = vmatmul.mubr.f32.gmra.mrb[0].mxu0 %v362
      %v687 = vpop.f32.mrb[0].mxu0
      %v688 = vadd.f32 0.0, %v687
      %v689 = vpop.f32.mrb[0].mxu0
      %v690 = vadd.f32 0.0, %v689
      %691 = vmatprep.mubr.f32.mxu0 0.0
      %692 = vmatmul.mubr.f32.gmra.mrb[0].mxu0 %v365
      %v693 = vpop.f32.mrb[0].mxu0
      %v694 = vadd.f32 0.0, %v693
      %v695 = vpop.f32.mrb[0].mxu0
      %v696 = vadd.f32 0.0, %v695
      %697 = vmatprep.mubr.f32.mxu0 0.0
      %698 = vmatmul.mubr.f32.gmra.mrb[0].mxu0 %v368
      %v699 = vpop.f32.mrb[0].mxu0
      %v700 = vadd.f32 0.0, %v699
      %v701 = vpop.f32.mrb[0].mxu0
      %v702 = vadd.f32 0.0, %v701
      %703 = vmatprep.mubr.f32.mxu0 0.0
      %704 = vmatmul.mubr.f32.gmra.mrb[0].mxu0 %v371
      %v705 = vpop.f32.mrb[0].mxu0
      %v706 = vadd.f32 0.0, %v705
      %v707 = vpop.f32.mrb[0].mxu0
      %v708 = vadd.f32 0.0, %v707
      %709 = vmatprep.mubr.f32.mxu0 0.0
      %710 = vmatmul.mubr.f32.gmra.mrb[0].mxu0 %v374
      %v711 = vpop.f32.mrb[0].mxu0
      %v712 = vadd.f32 0.0, %v711
      %v713 = vpop.f32.mrb[0].mxu0
      %v714 = vadd.f32 0.0, %v713
      %715 = vmatprep.mubr.f32.mxu0 0.0
      %716 = vmatmul.mubr.f32.gmra.mrb[0].mxu0 %v377
      %v717 = vpop.f32.mrb[0].mxu0
      %v718 = vadd.f32 0.0, %v717
      %v719 = vpop.f32.mrb[0].mxu0
      %v720 = vadd.f32 0.0, %v719
      %721 = vmatprep.mubr.f32.mxu0 0.0
      %722 = vmatmul.mubr.f32.gmra.mrb[0].mxu0 %v380
      %v723 = vpop.f32.mrb[0].mxu0
      %v724 = vadd.f32 0.0, %v723
      %v725 = vpop.f32.mrb[0].mxu0
      %v726 = vadd.f32 0.0, %v725
      %727 = vmatprep.mubr.f32.mxu0 0.0
      %728 = vmatmul.mubr.f32.gmra.mrb[0].mxu0 %v383
      %v729 = vpop.f32.mrb[0].mxu0
      %v730 = vadd.f32 0.0, %v729
      %v731 = vpop.f32.mrb[0].mxu0
      %v732 = vadd.f32 0.0, %v731
      %733 = vmatprep.mubr.f32.mxu0 0.0
      %734 = vmatmul.mubr.f32.gmra.mrb[0].mxu0 %v386
      %v735 = vpop.f32.mrb[0].mxu0
      %v736 = vadd.f32 0.0, %v735
      %v737 = vpop.f32.mrb[0].mxu0
      %v738 = vadd.f32 0.0, %v737
      %739 = vmatprep.mubr.f32.mxu0 0.0
      %740 = vmatmul.mubr.f32.gmra.mrb[0].mxu0 %v389
      %v741 = vpop.f32.mrb[0].mxu0
      %v742 = vadd.f32 0.0, %v741
      %v743 = vpop.f32.mrb[0].mxu0
      %v744 = vadd.f32 0.0, %v743
      %745 = vmatprep.mubr.f32.mxu0 0.0
      %746 = vmatmul.mubr.f32.gmra.mrb[0].mxu0 %v392
      %v747 = vpop.f32.mrb[0].mxu0
      %v748 = vadd.f32 0.0, %v747
      %v749 = vpop.f32.mrb[0].mxu0
      %v750 = vadd.f32 0.0, %v749
      %751 = vdwg.mxu0
      %752 = vxpose.xlu0.b32.start [1/16] %v466, 128
      %753 = vxpose.xlu0.b32.cont [2/16] %v472, 128
      %754 = vxpose.xlu0.b32.cont [3/16] %v478, 128
      %755 = vxpose.xlu0.b32.cont [4/16] %v484, 128
      %756 = vxpose.xlu0.b32.cont [5/16] 0.0, 128
      %757 = vxpose.xlu0.b32.cont [6/16] 0.0, 128
      %758 = vxpose.xlu0.b32.cont [7/16] 0.0, 128
      %759 = vxpose.xlu0.b32.cont [8/16] 0.0, 128
      %760 = vxpose.xlu0.b32.cont [9/16] 0.0, 128
      %761 = vxpose.xlu0.b32.cont [10/16] 0.0, 128
      %762 = vxpose.xlu0.b32.cont [11/16] 0.0, 128
      %763 = vxpose.xlu0.b32.cont [12/16] 0.0, 128
      %764 = vxpose.xlu0.b32.cont [13/16] 0.0, 128
      %765 = vxpose.xlu0.b32.cont [14/16] 0.0, 128
      %766 = vxpose.xlu0.b32.cont [15/16] 0.0, 128
      %767 = vxpose.xlu0.b32.end [16/16] 0.0, 128
      %v768 = vpop.trf.xlu0
      %v769 = vpop.trf.xlu0
      %v770 = vpop.trf.xlu0
      %v771 = vpop.trf.xlu0
      %v772 = vpop.trf.xlu0
      %v773 = vpop.trf.xlu0
      %v774 = vpop.trf.xlu0
      %v775 = vpop.trf.xlu0
      %v776 = vpop.trf.xlu0
      %v777 = vpop.trf.xlu0
      %v778 = vpop.trf.xlu0
      %v779 = vpop.trf.xlu0
      %v780 = vpop.trf.xlu0
      %v781 = vpop.trf.xlu0
      %v782 = vpop.trf.xlu0
      %v783 = vpop.trf.xlu0
      %784 = vxpose.xlu0.b32.start [1/16] %v468, 128
      %785 = vxpose.xlu0.b32.cont [2/16] %v474, 128
      %786 = vxpose.xlu0.b32.cont [3/16] %v480, 128
      %787 = vxpose.xlu0.b32.cont [4/16] %v486, 128
      %788 = vxpose.xlu0.b32.cont [5/16] 0.0, 128
      %789 = vxpose.xlu0.b32.cont [6/16] 0.0, 128
      %790 = vxpose.xlu0.b32.cont [7/16] 0.0, 128
      %791 = vxpose.xlu0.b32.cont [8/16] 0.0, 128
      %792 = vxpose.xlu0.b32.cont [9/16] 0.0, 128
      %793 = vxpose.xlu0.b32.cont [10/16] 0.0, 128
      %794 = vxpose.xlu0.b32.cont [11/16] 0.0, 128
      %795 = vxpose.xlu0.b32.cont [12/16] 0.0, 128
      %796 = vxpose.xlu0.b32.cont [13/16] 0.0, 128
      %797 = vxpose.xlu0.b32.cont [14/16] 0.0, 128
      %798 = vxpose.xlu0.b32.cont [15/16] 0.0, 128
      %799 = vxpose.xlu0.b32.end [16/16] 0.0, 128
      %v800 = vpop.trf.xlu0
      %v801 = vpop.trf.xlu0
      %v802 = vpop.trf.xlu0
      %v803 = vpop.trf.xlu0
      %v804 = vpop.trf.xlu0
      %v805 = vpop.trf.xlu0
      %v806 = vpop.trf.xlu0
      %v807 = vpop.trf.xlu0
      %v808 = vpop.trf.xlu0
      %v809 = vpop.trf.xlu0
      %v810 = vpop.trf.xlu0
      %v811 = vpop.trf.xlu0
      %v812 = vpop.trf.xlu0
      %v813 = vpop.trf.xlu0
      %v814 = vpop.trf.xlu0
      %v815 = vpop.trf.xlu0
      %v816 = vmul.f32 %v768, 0.17677669
      %v817 = vmul.f32 %v769, 0.17677669
      %v818 = vmul.f32 %v770, 0.17677669
      %v819 = vmul.f32 %v771, 0.17677669
      %v820 = vmul.f32 %v772, 0.17677669
      %v821 = vmul.f32 %v773, 0.17677669
      %v822 = vmul.f32 %v774, 0.17677669
      %v823 = vmul.f32 %v775, 0.17677669
      %v824 = vmul.f32 %v776, 0.17677669
      %v825 = vmul.f32 %v777, 0.17677669
      %v826 = vmul.f32 %v778, 0.17677669
      %v827 = vmul.f32 %v779, 0.17677669
      %v828 = vmul.f32 %v780, 0.17677669
      %v829 = vmul.f32 %v781, 0.17677669
      %v830 = vmul.f32 %v782, 0.17677669
      %v831 = vmul.f32 %v783, 0.17677669
      %v832 = vmul.f32 %v800, 0.17677669
      %v833 = vmul.f32 %v801, 0.17677669
      %v834 = vmul.f32 %v802, 0.17677669
      %v835 = vmul.f32 %v803, 0.17677669
      %v836 = vmul.f32 %v804, 0.17677669
      %v837 = vmul.f32 %v805, 0.17677669
      %v838 = vmul.f32 %v806, 0.17677669
      %v839 = vmul.f32 %v807, 0.17677669
      %v840 = vmul.f32 %v808, 0.17677669
      %v841 = vmul.f32 %v809, 0.17677669
      %v842 = vmul.f32 %v810, 0.17677669
      %v843 = vmul.f32 %v811, 0.17677669
      %v844 = vmul.f32 %v812, 0.17677669
      %v845 = vmul.f32 %v813, 0.17677669
      %v846 = vmul.f32 %v814, 0.17677669
      %v847 = vmul.f32 %v815, 0.17677669
      %vm848 = vcmask 261120
      %v850 = vsel %vm848, %v816, 0
      %v853 = vsel %vm848, %v817, 0
      %v856 = vsel %vm848, %v818, 0
      %v859 = vsel %vm848, %v819, 0
      %v862 = vsel %vm848, %v820, 0
      %v865 = vsel %vm848, %v821, 0
      %v868 = vsel %vm848, %v822, 0
      %v871 = vsel %vm848, %v823, 0
      %v874 = vsel %vm848, %v824, 0
      %v877 = vsel %vm848, %v825, 0
      %v880 = vsel %vm848, %v826, 0
      %v883 = vsel %vm848, %v827, 0
      %v886 = vsel %vm848, %v828, 0
      %v889 = vsel %vm848, %v829, 0
      %v892 = vsel %vm848, %v830, 0
      %v895 = vsel %vm848, %v831, 0
      %v898 = vsel %vm848, %v832, 0
      %v901 = vsel %vm848, %v833, 0
      %v904 = vsel %vm848, %v834, 0
      %v907 = vsel %vm848, %v835, 0
      %v910 = vsel %vm848, %v836, 0
      %v913 = vsel %vm848, %v837, 0
      %v916 = vsel %vm848, %v838, 0
      %v919 = vsel %vm848, %v839, 0
      %v922 = vsel %vm848, %v840, 0
      %v925 = vsel %vm848, %v841, 0
      %v928 = vsel %vm848, %v842, 0
      %v931 = vsel %vm848, %v843, 0
      %v934 = vsel %vm848, %v844, 0
      %v937 = vsel %vm848, %v845, 0
      %v940 = vsel %vm848, %v846, 0
      %v943 = vsel %vm848, %v847, 0
      %945 = vmatprep.subr.mxu0 %v564
      %946 = vmatpush1.msra.mxu0 %v562
      %947 = vmatprep.subr.mxu0 %v570
      %948 = vmatpush1.msra.mxu0 %v568
      %949 = vmatprep.subr.mxu0 %v576
      %950 = vmatpush1.msra.mxu0 %v574
      %951 = vmatprep.subr.mxu0 %v582
      %952 = vmatpush1.msra.mxu0 %v580
      %953 = vmatprep.subr.mxu0 0.0
      %954 = vmatpush1.msra.mxu0 0.0
      %955 = vmatprep.subr.mxu0 0.0
      %956 = vmatpush1.msra.mxu0 0.0
      %957 = vmatprep.subr.mxu0 0.0
      %958 = vmatpush1.msra.mxu0 0.0
      %959 = vmatprep.subr.mxu0 0.0
      %960 = vmatpush1.msra.mxu0 0.0
      %961 = vmatprep.subr.mxu0 0.0
      %962 = vmatpush1.msra.mxu0 0.0
      %963 = vmatprep.subr.mxu0 0.0
      %964 = vmatpush1.msra.mxu0 0.0
      %965 = vmatprep.subr.mxu0 0.0
      %966 = vmatpush1.msra.mxu0 0.0
      %967 = vmatprep.subr.mxu0 0.0
      %968 = vmatpush1.msra.mxu0 0.0
      %969 = vmatprep.subr.mxu0 0.0
      %970 = vmatpush1.msra.mxu0 0.0
      %971 = vmatprep.subr.mxu0 0.0
      %972 = vmatpush1.msra.mxu0 0.0
      %973 = vmatprep.subr.mxu0 0.0
      %974 = vmatpush1.msra.mxu0 0.0
      %975 = vmatprep.subr.mxu0 0.0
      %976 = vmatpush1.msra.mxu0 0.0
      %977 = vmatprep.subr.mxu0 0.0
      %978 = vmatpush1.msra.mxu0 0.0
      %979 = vmatprep.subr.mxu0 0.0
      %980 = vmatpush1.msra.mxu0 0.0
      %981 = vmatprep.subr.mxu0 0.0
      %982 = vmatpush1.msra.mxu0 0.0
      %983 = vmatprep.subr.mxu0 0.0
      %984 = vmatpush1.msra.mxu0 0.0
      %985 = vmatprep.subr.mxu0 0.0
      %986 = vmatpush1.msra.mxu0 0.0
      %987 = vmatprep.subr.mxu0 0.0
      %988 = vmatpush1.msra.mxu0 0.0
      %989 = vmatprep.subr.mxu0 0.0
      %990 = vmatpush1.msra.mxu0 0.0
      %991 = vmatprep.subr.mxu0 0.0
      %992 = vmatpush1.msra.mxu0 0.0
      %993 = vmatprep.subr.mxu0 0.0
      %994 = vmatpush1.msra.mxu0 0.0
      %995 = vmatprep.subr.mxu0 0.0
      %996 = vmatpush1.msra.mxu0 0.0
      %997 = vmatprep.subr.mxu0 0.0
      %998 = vmatpush1.msra.mxu0 0.0
      %999 = vmatprep.subr.mxu0 0.0
      %1000 = vmatpush1.msra.mxu0 0.0
      %1001 = vmatprep.subr.mxu0 0.0
      %1002 = vmatpush1.msra.mxu0 0.0
      %1003 = vmatprep.subr.mxu0 0.0
      %1004 = vmatpush1.msra.mxu0 0.0
      %1005 = vmatprep.subr.mxu0 0.0
      %1006 = vmatpush1.msra.mxu0 0.0
      %1007 = vmatprep.subr.mxu0 0.0
      %1008 = vmatpush1.msra.mxu0 0.0
      %1009 = vmatprep.mubr.f32.mxu0 0.0
      %1010 = vmatmul.mubr.f32.gmra.mrb[0].mxu0 %v850
      %v1011 = vpop.f32.mrb[0].mxu0
      %v1012 = vadd.f32 0.0, %v1011
      %v1013 = vpop.f32.mrb[0].mxu0
      %v1014 = vadd.f32 0.0, %v1013
      %1015 = vmatprep.mubr.f32.mxu0 0.0
      %1016 = vmatmul.mubr.f32.gmra.mrb[0].mxu0 %v853
      %v1017 = vpop.f32.mrb[0].mxu0
      %v1018 = vadd.f32 0.0, %v1017
      %v1019 = vpop.f32.mrb[0].mxu0
      %v1020 = vadd.f32 0.0, %v1019
      %1021 = vmatprep.mubr.f32.mxu0 0.0
      %1022 = vmatmul.mubr.f32.gmra.mrb[0].mxu0 %v856
      %v1023 = vpop.f32.mrb[0].mxu0
      %v1024 = vadd.f32 0.0, %v1023
      %v1025 = vpop.f32.mrb[0].mxu0
      %v1026 = vadd.f32 0.0, %v1025
      %1027 = vmatprep.mubr.f32.mxu0 0.0
      %1028 = vmatmul.mubr.f32.gmra.mrb[0].mxu0 %v859
      %v1029 = vpop.f32.mrb[0].mxu0
      %v1030 = vadd.f32 0.0, %v1029
      %v1031 = vpop.f32.mrb[0].mxu0
      %v1032 = vadd.f32 0.0, %v1031
      %1033 = vmatprep.mubr.f32.mxu0 0.0
      %1034 = vmatmul.mubr.f32.gmra.mrb[0].mxu0 %v862
      %v1035 = vpop.f32.mrb[0].mxu0
      %v1036 = vadd.f32 0.0, %v1035
      %v1037 = vpop.f32.mrb[0].mxu0
      %v1038 = vadd.f32 0.0, %v1037
      %1039 = vmatprep.mubr.f32.mxu0 0.0
      %1040 = vmatmul.mubr.f32.gmra.mrb[0].mxu0 %v865
      %v1041 = vpop.f32.mrb[0].mxu0
      %v1042 = vadd.f32 0.0, %v1041
      %v1043 = vpop.f32.mrb[0].mxu0
      %v1044 = vadd.f32 0.0, %v1043
      %1045 = vmatprep.mubr.f32.mxu0 0.0
      %1046 = vmatmul.mubr.f32.gmra.mrb[0].mxu0 %v868
      %v1047 = vpop.f32.mrb[0].mxu0
      %v1048 = vadd.f32 0.0, %v1047
      %v1049 = vpop.f32.mrb[0].mxu0
      %v1050 = vadd.f32 0.0, %v1049
      %1051 = vmatprep.mubr.f32.mxu0 0.0
      %1052 = vmatmul.mubr.f32.gmra.mrb[0].mxu0 %v871
      %v1053 = vpop.f32.mrb[0].mxu0
      %v1054 = vadd.f32 0.0, %v1053
      %v1055 = vpop.f32.mrb[0].mxu0
      %v1056 = vadd.f32 0.0, %v1055
      %1057 = vmatprep.mubr.f32.mxu0 0.0
      %1058 = vmatmul.mubr.f32.gmra.mrb[0].mxu0 %v874
      %v1059 = vpop.f32.mrb[0].mxu0
      %v1060 = vadd.f32 0.0, %v1059
      %v1061 = vpop.f32.mrb[0].mxu0
      %v1062 = vadd.f32 0.0, %v1061
      %1063 = vmatprep.mubr.f32.mxu0 0.0
      %1064 = vmatmul.mubr.f32.gmra.mrb[0].mxu0 %v877
      %v1065 = vpop.f32.mrb[0].mxu0
      %v1066 = vadd.f32 0.0, %v1065
      %v1067 = vpop.f32.mrb[0].mxu0
      %v1068 = vadd.f32 0.0, %v1067
      %1069 = vmatprep.mubr.f32.mxu0 0.0
      %1070 = vmatmul.mubr.f32.gmra.mrb[0].mxu0 %v880
      %v1071 = vpop.f32.mrb[0].mxu0
      %v1072 = vadd.f32 0.0, %v1071
      %v1073 = vpop.f32.mrb[0].mxu0
      %v1074 = vadd.f32 0.0, %v1073
      %1075 = vmatprep.mubr.f32.mxu0 0.0
      %1076 = vmatmul.mubr.f32.gmra.mrb[0].mxu0 %v883
      %v1077 = vpop.f32.mrb[0].mxu0
      %v1078 = vadd.f32 0.0, %v1077
      %v1079 = vpop.f32.mrb[0].mxu0
      %v1080 = vadd.f32 0.0, %v1079
      %1081 = vmatprep.mubr.f32.mxu0 0.0
      %1082 = vmatmul.mubr.f32.gmra.mrb[0].mxu0 %v886
      %v1083 = vpop.f32.mrb[0].mxu0
      %v1084 = vadd.f32 0.0, %v1083
      %v1085 = vpop.f32.mrb[0].mxu0
      %v1086 = vadd.f32 0.0, %v1085
      %1087 = vmatprep.mubr.f32.mxu0 0.0
      %1088 = vmatmul.mubr.f32.gmra.mrb[0].mxu0 %v889
      %v1089 = vpop.f32.mrb[0].mxu0
      %v1090 = vadd.f32 0.0, %v1089
      %v1091 = vpop.f32.mrb[0].mxu0
      %v1092 = vadd.f32 0.0, %v1091
      %1093 = vmatprep.mubr.f32.mxu0 0.0
      %1094 = vmatmul.mubr.f32.gmra.mrb[0].mxu0 %v892
      %v1095 = vpop.f32.mrb[0].mxu0
      %v1096 = vadd.f32 0.0, %v1095
      %v1097 = vpop.f32.mrb[0].mxu0
      %v1098 = vadd.f32 0.0, %v1097
      %1099 = vmatprep.mubr.f32.mxu0 0.0
      %1100 = vmatmul.mubr.f32.gmra.mrb[0].mxu0 %v895
      %v1101 = vpop.f32.mrb[0].mxu0
      %v1102 = vadd.f32 0.0, %v1101
      %v1103 = vpop.f32.mrb[0].mxu0
      %v1104 = vadd.f32 0.0, %v1103
      %1105 = vmatprep.mubr.f32.mxu0 0.0
      %1106 = vmatmul.mubr.f32.gmra.mrb[0].mxu0 %v898
      %v1107 = vpop.f32.mrb[0].mxu0
      %v1108 = vadd.f32 0.0, %v1107
      %v1109 = vpop.f32.mrb[0].mxu0
      %v1110 = vadd.f32 0.0, %v1109
      %1111 = vmatprep.mubr.f32.mxu0 0.0
      %1112 = vmatmul.mubr.f32.gmra.mrb[0].mxu0 %v901
      %v1113 = vpop.f32.mrb[0].mxu0
      %v1114 = vadd.f32 0.0, %v1113
      %v1115 = vpop.f32.mrb[0].mxu0
      %v1116 = vadd.f32 0.0, %v1115
      %1117 = vmatprep.mubr.f32.mxu0 0.0
      %1118 = vmatmul.mubr.f32.gmra.mrb[0].mxu0 %v904
      %v1119 = vpop.f32.mrb[0].mxu0
      %v1120 = vadd.f32 0.0, %v1119
      %v1121 = vpop.f32.mrb[0].mxu0
      %v1122 = vadd.f32 0.0, %v1121
      %1123 = vmatprep.mubr.f32.mxu0 0.0
      %1124 = vmatmul.mubr.f32.gmra.mrb[0].mxu0 %v907
      %v1125 = vpop.f32.mrb[0].mxu0
      %v1126 = vadd.f32 0.0, %v1125
      %v1127 = vpop.f32.mrb[0].mxu0
      %v1128 = vadd.f32 0.0, %v1127
      %1129 = vmatprep.mubr.f32.mxu0 0.0
      %1130 = vmatmul.mubr.f32.gmra.mrb[0].mxu0 %v910
      %v1131 = vpop.f32.mrb[0].mxu0
      %v1132 = vadd.f32 0.0, %v1131
      %v1133 = vpop.f32.mrb[0].mxu0
      %v1134 = vadd.f32 0.0, %v1133
      %1135 = vmatprep.mubr.f32.mxu0 0.0
      %1136 = vmatmul.mubr.f32.gmra.mrb[0].mxu0 %v913
      %v1137 = vpop.f32.mrb[0].mxu0
      %v1138 = vadd.f32 0.0, %v1137
      %v1139 = vpop.f32.mrb[0].mxu0
      %v1140 = vadd.f32 0.0, %v1139
      %1141 = vmatprep.mubr.f32.mxu0 0.0
      %1142 = vmatmul.mubr.f32.gmra.mrb[0].mxu0 %v916
      %v1143 = vpop.f32.mrb[0].mxu0
      %v1144 = vadd.f32 0.0, %v1143
      %v1145 = vpop.f32.mrb[0].mxu0
      %v1146 = vadd.f32 0.0, %v1145
      %1147 = vmatprep.mubr.f32.mxu0 0.0
      %1148 = vmatmul.mubr.f32.gmra.mrb[0].mxu0 %v919
      %v1149 = vpop.f32.mrb[0].mxu0
      %v1150 = vadd.f32 0.0, %v1149
      %v1151 = vpop.f32.mrb[0].mxu0
      %v1152 = vadd.f32 0.0, %v1151
      %1153 = vmatprep.mubr.f32.mxu0 0.0
      %1154 = vmatmul.mubr.f32.gmra.mrb[0].mxu0 %v922
      %v1155 = vpop.f32.mrb[0].mxu0
      %v1156 = vadd.f32 0.0, %v1155
      %v1157 = vpop.f32.mrb[0].mxu0
      %v1158 = vadd.f32 0.0, %v1157
      %1159 = vmatprep.mubr.f32.mxu0 0.0
      %1160 = vmatmul.mubr.f32.gmra.mrb[0].mxu0 %v925
      %v1161 = vpop.f32.mrb[0].mxu0
      %v1162 = vadd.f32 0.0, %v1161
      %v1163 = vpop.f32.mrb[0].mxu0
      %v1164 = vadd.f32 0.0, %v1163
      %1165 = vmatprep.mubr.f32.mxu0 0.0
      %1166 = vmatmul.mubr.f32.gmra.mrb[0].mxu0 %v928
      %v1167 = vpop.f32.mrb[0].mxu0
      %v1168 = vadd.f32 0.0, %v1167
      %v1169 = vpop.f32.mrb[0].mxu0
      %v1170 = vadd.f32 0.0, %v1169
      %1171 = vmatprep.mubr.f32.mxu0 0.0
      %1172 = vmatmul.mubr.f32.gmra.mrb[0].mxu0 %v931
      %v1173 = vpop.f32.mrb[0].mxu0
      %v1174 = vadd.f32 0.0, %v1173
      %v1175 = vpop.f32.mrb[0].mxu0
      %v1176 = vadd.f32 0.0, %v1175
      %1177 = vmatprep.mubr.f32.mxu0 0.0
      %1178 = vmatmul.mubr.f32.gmra.mrb[0].mxu0 %v934
      %v1179 = vpop.f32.mrb[0].mxu0
      %v1180 = vadd.f32 0.0, %v1179
      %v1181 = vpop.f32.mrb[0].mxu0
      %v1182 = vadd.f32 0.0, %v1181
      %1183 = vmatprep.mubr.f32.mxu0 0.0
      %1184 = vmatmul.mubr.f32.gmra.mrb[0].mxu0 %v937
      %v1185 = vpop.f32.mrb[0].mxu0
      %v1186 = vadd.f32 0.0, %v1185
      %v1187 = vpop.f32.mrb[0].mxu0
      %v1188 = vadd.f32 0.0, %v1187
      %1189 = vmatprep.mubr.f32.mxu0 0.0
      %1190 = vmatmul.mubr.f32.gmra.mrb[0].mxu0 %v940
      %v1191 = vpop.f32.mrb[0].mxu0
      %v1192 = vadd.f32 0.0, %v1191
      %v1193 = vpop.f32.mrb[0].mxu0
      %v1194 = vadd.f32 0.0, %v1193
      %1195 = vmatprep.mubr.f32.mxu0 0.0
      %1196 = vmatmul.mubr.f32.gmra.mrb[0].mxu0 %v943
      %v1197 = vpop.f32.mrb[0].mxu0
      %v1198 = vadd.f32 0.0, %v1197
      %v1199 = vpop.f32.mrb[0].mxu0
      %v1200 = vadd.f32 0.0, %v1199
      %1201 = vdwg.mxu0
      %v1202 = vmax.f32 %v1012, %v1014
      %1203 = vmax.xlane.f32.xlu0 %v1202
      %v1204 = vpop.xlane.xlu0 %1203
      %v1205 = vmax.f32 %v1018, %v1020
      %1206 = vmax.xlane.f32.xlu0 %v1205
      %v1207 = vpop.xlane.xlu0 %1206
      %v1208 = vmax.f32 %v1024, %v1026
      %1209 = vmax.xlane.f32.xlu0 %v1208
      %v1210 = vpop.xlane.xlu0 %1209
      %v1211 = vmax.f32 %v1030, %v1032
      %1212 = vmax.xlane.f32.xlu0 %v1211
      %v1213 = vpop.xlane.xlu0 %1212
      %v1214 = vmax.f32 %v1036, %v1038
      %1215 = vmax.xlane.f32.xlu0 %v1214
      %v1216 = vpop.xlane.xlu0 %1215
      %v1217 = vmax.f32 %v1042, %v1044
      %1218 = vmax.xlane.f32.xlu0 %v1217
      %v1219 = vpop.xlane.xlu0 %1218
      %v1220 = vmax.f32 %v1048, %v1050
      %1221 = vmax.xlane.f32.xlu0 %v1220
      %v1222 = vpop.xlane.xlu0 %1221
      %v1223 = vmax.f32 %v1054, %v1056
      %1224 = vmax.xlane.f32.xlu0 %v1223
      %v1225 = vpop.xlane.xlu0 %1224
      %v1226 = vmax.f32 %v1060, %v1062
      %1227 = vmax.xlane.f32.xlu0 %v1226
      %v1228 = vpop.xlane.xlu0 %1227
      %v1229 = vmax.f32 %v1066, %v1068
      %1230 = vmax.xlane.f32.xlu0 %v1229
      %v1231 = vpop.xlane.xlu0 %1230
      %v1232 = vmax.f32 %v1072, %v1074
      %1233 = vmax.xlane.f32.xlu0 %v1232
      %v1234 = vpop.xlane.xlu0 %1233
      %v1235 = vmax.f32 %v1078, %v1080
      %1236 = vmax.xlane.f32.xlu0 %v1235
      %v1237 = vpop.xlane.xlu0 %1236
      %v1238 = vmax.f32 %v1084, %v1086
      %1239 = vmax.xlane.f32.xlu0 %v1238
      %v1240 = vpop.xlane.xlu0 %1239
      %v1241 = vmax.f32 %v1090, %v1092
      %1242 = vmax.xlane.f32.xlu0 %v1241
      %v1243 = vpop.xlane.xlu0 %1242
      %v1244 = vmax.f32 %v1096, %v1098
      %1245 = vmax.xlane.f32.xlu0 %v1244
      %v1246 = vpop.xlane.xlu0 %1245
      %v1247 = vmax.f32 %v1102, %v1104
      %1248 = vmax.xlane.f32.xlu0 %v1247
      %v1249 = vpop.xlane.xlu0 %1248
      %v1250 = vmax.f32 %v1108, %v1110
      %1251 = vmax.xlane.f32.xlu0 %v1250
      %v1252 = vpop.xlane.xlu0 %1251
      %v1253 = vmax.f32 %v1114, %v1116
      %1254 = vmax.xlane.f32.xlu0 %v1253
      %v1255 = vpop.xlane.xlu0 %1254
      %v1256 = vmax.f32 %v1120, %v1122
      %1257 = vmax.xlane.f32.xlu0 %v1256
      %v1258 = vpop.xlane.xlu0 %1257
      %v1259 = vmax.f32 %v1126, %v1128
      %1260 = vmax.xlane.f32.xlu0 %v1259
      %v1261 = vpop.xlane.xlu0 %1260
      %v1262 = vmax.f32 %v1132, %v1134
      %1263 = vmax.xlane.f32.xlu0 %v1262
      %v1264 = vpop.xlane.xlu0 %1263
      %v1265 = vmax.f32 %v1138, %v1140
      %1266 = vmax.xlane.f32.xlu0 %v1265
      %v1267 = vpop.xlane.xlu0 %1266
      %v1268 = vmax.f32 %v1144, %v1146
      %1269 = vmax.xlane.f32.xlu0 %v1268
      %v1270 = vpop.xlane.xlu0 %1269
      %v1271 = vmax.f32 %v1150, %v1152
      %1272 = vmax.xlane.f32.xlu0 %v1271
      %v1273 = vpop.xlane.xlu0 %1272
      %v1274 = vmax.f32 %v1156, %v1158
      %1275 = vmax.xlane.f32.xlu0 %v1274
      %v1276 = vpop.xlane.xlu0 %1275
      %v1277 = vmax.f32 %v1162, %v1164
      %1278 = vmax.xlane.f32.xlu0 %v1277
      %v1279 = vpop.xlane.xlu0 %1278
      %v1280 = vmax.f32 %v1168, %v1170
      %1281 = vmax.xlane.f32.xlu0 %v1280
      %v1282 = vpop.xlane.xlu0 %1281
      %v1283 = vmax.f32 %v1174, %v1176
      %1284 = vmax.xlane.f32.xlu0 %v1283
      %v1285 = vpop.xlane.xlu0 %1284
      %v1286 = vmax.f32 %v1180, %v1182
      %1287 = vmax.xlane.f32.xlu0 %v1286
      %v1288 = vpop.xlane.xlu0 %1287
      %v1289 = vmax.f32 %v1186, %v1188
      %1290 = vmax.xlane.f32.xlu0 %v1289
      %v1291 = vpop.xlane.xlu0 %1290
      %v1292 = vmax.f32 %v1192, %v1194
      %1293 = vmax.xlane.f32.xlu0 %v1292
      %v1294 = vpop.xlane.xlu0 %1293
      %v1295 = vmax.f32 %v1198, %v1200
      %1296 = vmax.xlane.f32.xlu0 %v1295
      %v1297 = vpop.xlane.xlu0 %1296
      %v1298 = vsub.f32 %v1012, %v1204
      %v1299 = vsub.f32 %v1014, %v1204
      %v1300 = vsub.f32 %v1018, %v1207
      %v1301 = vsub.f32 %v1020, %v1207
      %v1302 = vsub.f32 %v1024, %v1210
      %v1303 = vsub.f32 %v1026, %v1210
      %v1304 = vsub.f32 %v1030, %v1213
      %v1305 = vsub.f32 %v1032, %v1213
      %v1306 = vsub.f32 %v1036, %v1216
      %v1307 = vsub.f32 %v1038, %v1216
      %v1308 = vsub.f32 %v1042, %v1219
      %v1309 = vsub.f32 %v1044, %v1219
      %v1310 = vsub.f32 %v1048, %v1222
      %v1311 = vsub.f32 %v1050, %v1222
      %v1312 = vsub.f32 %v1054, %v1225
      %v1313 = vsub.f32 %v1056, %v1225
      %v1314 = vsub.f32 %v1060, %v1228
      %v1315 = vsub.f32 %v1062, %v1228
      %v1316 = vsub.f32 %v1066, %v1231
      %v1317 = vsub.f32 %v1068, %v1231
      %v1318 = vsub.f32 %v1072, %v1234
      %v1319 = vsub.f32 %v1074, %v1234
      %v1320 = vsub.f32 %v1078, %v1237
      %v1321 = vsub.f32 %v1080, %v1237
      %v1322 = vsub.f32 %v1084, %v1240
      %v1323 = vsub.f32 %v1086, %v1240
      %v1324 = vsub.f32 %v1090, %v1243
      %v1325 = vsub.f32 %v1092, %v1243
      %v1326 = vsub.f32 %v1096, %v1246
      %v1327 = vsub.f32 %v1098, %v1246
      %v1328 = vsub.f32 %v1102, %v1249
      %v1329 = vsub.f32 %v1104, %v1249
      %v1330 = vsub.f32 %v1108, %v1252
      %v1331 = vsub.f32 %v1110, %v1252
      %v1332 = vsub.f32 %v1114, %v1255
      %v1333 = vsub.f32 %v1116, %v1255
      %v1334 = vsub.f32 %v1120, %v1258
      %v1335 = vsub.f32 %v1122, %v1258
      %v1336 = vsub.f32 %v1126, %v1261
      %v1337 = vsub.f32 %v1128, %v1261
      %v1338 = vsub.f32 %v1132, %v1264
      %v1339 = vsub.f32 %v1134, %v1264
      %v1340 = vsub.f32 %v1138, %v1267
      %v1341 = vsub.f32 %v1140, %v1267
      %v1342 = vsub.f32 %v1144, %v1270
      %v1343 = vsub.f32 %v1146, %v1270
      %v1344 = vsub.f32 %v1150, %v1273
      %v1345 = vsub.f32 %v1152, %v1273
      %v1346 = vsub.f32 %v1156, %v1276
      %v1347 = vsub.f32 %v1158, %v1276
      %v1348 = vsub.f32 %v1162, %v1279
      %v1349 = vsub.f32 %v1164, %v1279
      %v1350 = vsub.f32 %v1168, %v1282
      %v1351 = vsub.f32 %v1170, %v1282
      %v1352 = vsub.f32 %v1174, %v1285
      %v1353 = vsub.f32 %v1176, %v1285
      %v1354 = vsub.f32 %v1180, %v1288
      %v1355 = vsub.f32 %v1182, %v1288
      %v1356 = vsub.f32 %v1186, %v1291
      %v1357 = vsub.f32 %v1188, %v1291
      %v1358 = vsub.f32 %v1192, %v1294
      %v1359 = vsub.f32 %v1194, %v1294
      %v1360 = vsub.f32 %v1198, %v1297
      %v1361 = vsub.f32 %v1200, %v1297
      %v1362 = vmul.f32 %v1298, 1.442695
      %v1363 = vpow.pop %v1362
      %v1364 = vmul.f32 %v1299, 1.442695
      %v1365 = vpow.pop %v1364
      %v1366 = vmul.f32 %v1300, 1.442695
      %v1367 = vpow.pop %v1366
      %v1368 = vmul.f32 %v1301, 1.442695
      %v1369 = vpow.pop %v1368
      %v1370 = vmul.f32 %v1302, 1.442695
      %v1371 = vpow.pop %v1370
      %v1372 = vmul.f32 %v1303, 1.442695
      %v1373 = vpow.pop %v1372
      %v1374 = vmul.f32 %v1304, 1.442695
      %v1375 = vpow.pop %v1374
      %v1376 = vmul.f32 %v1305, 1.442695
      %v1377 = vpow.pop %v1376
      %v1378 = vmul.f32 %v1306, 1.442695
      %v1379 = vpow.pop %v1378
      %v1380 = vmul.f32 %v1307, 1.442695
      %v1381 = vpow.pop %v1380
      %v1382 = vmul.f32 %v1308, 1.442695
      %v1383 = vpow.pop %v1382
      %v1384 = vmul.f32 %v1309, 1.442695
      %v1385 = vpow.pop %v1384
      %v1386 = vmul.f32 %v1310, 1.442695
      %v1387 = vpow.pop %v1386
      %v1388 = vmul.f32 %v1311, 1.442695
      %v1389 = vpow.pop %v1388
      %v1390 = vmul.f32 %v1312, 1.442695
      %v1391 = vpow.pop %v1390
      %v1392 = vmul.f32 %v1313, 1.442695
      %v1393 = vpow.pop %v1392
      %v1394 = vmul.f32 %v1314, 1.442695
      %v1395 = vpow.pop %v1394
      %v1396 = vmul.f32 %v1315, 1.442695
      %v1397 = vpow.pop %v1396
      %v1398 = vmul.f32 %v1316, 1.442695
      %v1399 = vpow.pop %v1398
      %v1400 = vmul.f32 %v1317, 1.442695
      %v1401 = vpow.pop %v1400
      %v1402 = vmul.f32 %v1318, 1.442695
      %v1403 = vpow.pop %v1402
      %v1404 = vmul.f32 %v1319, 1.442695
      %v1405 = vpow.pop %v1404
      %v1406 = vmul.f32 %v1320, 1.442695
      %v1407 = vpow.pop %v1406
      %v1408 = vmul.f32 %v1321, 1.442695
      %v1409 = vpow.pop %v1408
      %v1410 = vmul.f32 %v1322, 1.442695
      %v1411 = vpow.pop %v1410
      %v1412 = vmul.f32 %v1323, 1.442695
      %v1413 = vpow.pop %v1412
      %v1414 = vmul.f32 %v1324, 1.442695
      %v1415 = vpow.pop %v1414
      %v1416 = vmul.f32 %v1325, 1.442695
      %v1417 = vpow.pop %v1416
      %v1418 = vmul.f32 %v1326, 1.442695
      %v1419 = vpow.pop %v1418
      %v1420 = vmul.f32 %v1327, 1.442695
      %v1421 = vpow.pop %v1420
      %v1422 = vmul.f32 %v1328, 1.442695
      %v1423 = vpow.pop %v1422
      %v1424 = vmul.f32 %v1329, 1.442695
      %v1425 = vpow.pop %v1424
      %v1426 = vmul.f32 %v1330, 1.442695
      %v1427 = vpow.pop %v1426
      %v1428 = vmul.f32 %v1331, 1.442695
      %v1429 = vpow.pop %v1428
      %v1430 = vmul.f32 %v1332, 1.442695
      %v1431 = vpow.pop %v1430
      %v1432 = vmul.f32 %v1333, 1.442695
      %v1433 = vpow.pop %v1432
      %v1434 = vmul.f32 %v1334, 1.442695
      %v1435 = vpow.pop %v1434
      %v1436 = vmul.f32 %v1335, 1.442695
      %v1437 = vpow.pop %v1436
      %v1438 = vmul.f32 %v1336, 1.442695
      %v1439 = vpow.pop %v1438
      %v1440 = vmul.f32 %v1337, 1.442695
      %v1441 = vpow.pop %v1440
      %v1442 = vmul.f32 %v1338, 1.442695
      %v1443 = vpow.pop %v1442
      %v1444 = vmul.f32 %v1339, 1.442695
      %v1445 = vpow.pop %v1444
      %v1446 = vmul.f32 %v1340, 1.442695
      %v1447 = vpow.pop %v1446
      %v1448 = vmul.f32 %v1341, 1.442695
      %v1449 = vpow.pop %v1448
      %v1450 = vmul.f32 %v1342, 1.442695
      %v1451 = vpow.pop %v1450
      %v1452 = vmul.f32 %v1343, 1.442695
      %v1453 = vpow.pop %v1452
      %v1454 = vmul.f32 %v1344, 1.442695
      %v1455 = vpow.pop %v1454
      %v1456 = vmul.f32 %v1345, 1.442695
      %v1457 = vpow.pop %v1456
      %v1458 = vmul.f32 %v1346, 1.442695
      %v1459 = vpow.pop %v1458
      %v1460 = vmul.f32 %v1347, 1.442695
      %v1461 = vpow.pop %v1460
      %v1462 = vmul.f32 %v1348, 1.442695
      %v1463 = vpow.pop %v1462
      %v1464 = vmul.f32 %v1349, 1.442695
      %v1465 = vpow.pop %v1464
      %v1466 = vmul.f32 %v1350, 1.442695
      %v1467 = vpow.pop %v1466
      %v1468 = vmul.f32 %v1351, 1.442695
      %v1469 = vpow.pop %v1468
      %v1470 = vmul.f32 %v1352, 1.442695
      %v1471 = vpow.pop %v1470
      %v1472 = vmul.f32 %v1353, 1.442695
      %v1473 = vpow.pop %v1472
      %v1474 = vmul.f32 %v1354, 1.442695
      %v1475 = vpow.pop %v1474
      %v1476 = vmul.f32 %v1355, 1.442695
      %v1477 = vpow.pop %v1476
      %v1478 = vmul.f32 %v1356, 1.442695
      %v1479 = vpow.pop %v1478
      %v1480 = vmul.f32 %v1357, 1.442695
      %v1481 = vpow.pop %v1480
      %v1482 = vmul.f32 %v1358, 1.442695
      %v1483 = vpow.pop %v1482
      %v1484 = vmul.f32 %v1359, 1.442695
      %v1485 = vpow.pop %v1484
      %v1486 = vmul.f32 %v1360, 1.442695
      %v1487 = vpow.pop %v1486
      %v1488 = vmul.f32 %v1361, 1.442695
      %v1489 = vpow.pop %v1488
      %v1490 = vadd.f32 %v1363, %v1365
      %1491 = vadd.xlane.f32.xlu0 %v1490
      %v1492 = vpop.xlane.xlu0 %1491
      %v1493 = vadd.f32 %v1367, %v1369
      %1494 = vadd.xlane.f32.xlu0 %v1493
      %v1495 = vpop.xlane.xlu0 %1494
      %v1496 = vadd.f32 %v1371, %v1373
      %1497 = vadd.xlane.f32.xlu0 %v1496
      %v1498 = vpop.xlane.xlu0 %1497
      %v1499 = vadd.f32 %v1375, %v1377
      %1500 = vadd.xlane.f32.xlu0 %v1499
      %v1501 = vpop.xlane.xlu0 %1500
      %v1502 = vadd.f32 %v1379, %v1381
      %1503 = vadd.xlane.f32.xlu0 %v1502
      %v1504 = vpop.xlane.xlu0 %1503
      %v1505 = vadd.f32 %v1383, %v1385
      %1506 = vadd.xlane.f32.xlu0 %v1505
      %v1507 = vpop.xlane.xlu0 %1506
      %v1508 = vadd.f32 %v1387, %v1389
      %1509 = vadd.xlane.f32.xlu0 %v1508
      %v1510 = vpop.xlane.xlu0 %1509
      %v1511 = vadd.f32 %v1391, %v1393
      %1512 = vadd.xlane.f32.xlu0 %v1511
      %v1513 = vpop.xlane.xlu0 %1512
      %v1514 = vadd.f32 %v1395, %v1397
      %1515 = vadd.xlane.f32.xlu0 %v1514
      %v1516 = vpop.xlane.xlu0 %1515
      %v1517 = vadd.f32 %v1399, %v1401
      %1518 = vadd.xlane.f32.xlu0 %v1517
      %v1519 = vpop.xlane.xlu0 %1518
      %v1520 = vadd.f32 %v1403, %v1405
      %1521 = vadd.xlane.f32.xlu0 %v1520
      %v1522 = vpop.xlane.xlu0 %1521
      %v1523 = vadd.f32 %v1407, %v1409
      %1524 = vadd.xlane.f32.xlu0 %v1523
      %v1525 = vpop.xlane.xlu0 %1524
      %v1526 = vadd.f32 %v1411, %v1413
      %1527 = vadd.xlane.f32.xlu0 %v1526
      %v1528 = vpop.xlane.xlu0 %1527
      %v1529 = vadd.f32 %v1415, %v1417
      %1530 = vadd.xlane.f32.xlu0 %v1529
      %v1531 = vpop.xlane.xlu0 %1530
      %v1532 = vadd.f32 %v1419, %v1421
      %1533 = vadd.xlane.f32.xlu0 %v1532
      %v1534 = vpop.xlane.xlu0 %1533
      %v1535 = vadd.f32 %v1423, %v1425
      %1536 = vadd.xlane.f32.xlu0 %v1535
      %v1537 = vpop.xlane.xlu0 %1536
      %v1538 = vadd.f32 %v1427, %v1429
      %1539 = vadd.xlane.f32.xlu0 %v1538
      %v1540 = vpop.xlane.xlu0 %1539
      %v1541 = vadd.f32 %v1431, %v1433
      %1542 = vadd.xlane.f32.xlu0 %v1541
      %v1543 = vpop.xlane.xlu0 %1542
      %v1544 = vadd.f32 %v1435, %v1437
      %1545 = vadd.xlane.f32.xlu0 %v1544
      %v1546 = vpop.xlane.xlu0 %1545
      %v1547 = vadd.f32 %v1439, %v1441
      %1548 = vadd.xlane.f32.xlu0 %v1547
      %v1549 = vpop.xlane.xlu0 %1548
      %v1550 = vadd.f32 %v1443, %v1445
      %1551 = vadd.xlane.f32.xlu0 %v1550
      %v1552 = vpop.xlane.xlu0 %1551
      %v1553 = vadd.f32 %v1447, %v1449
      %1554 = vadd.xlane.f32.xlu0 %v1553
      %v1555 = vpop.xlane.xlu0 %1554
      %v1556 = vadd.f32 %v1451, %v1453
      %1557 = vadd.xlane.f32.xlu0 %v1556
      %v1558 = vpop.xlane.xlu0 %1557
      %v1559 = vadd.f32 %v1455, %v1457
      %1560 = vadd.xlane.f32.xlu0 %v1559
      %v1561 = vpop.xlane.xlu0 %1560
      %v1562 = vadd.f32 %v1459, %v1461
      %1563 = vadd.xlane.f32.xlu0 %v1562
      %v1564 = vpop.xlane.xlu0 %1563
      %v1565 = vadd.f32 %v1463, %v1465
      %1566 = vadd.xlane.f32.xlu0 %v1565
      %v1567 = vpop.xlane.xlu0 %1566
      %v1568 = vadd.f32 %v1467, %v1469
      %1569 = vadd.xlane.f32.xlu0 %v1568
      %v1570 = vpop.xlane.xlu0 %1569
      %v1571 = vadd.f32 %v1471, %v1473
      %1572 = vadd.xlane.f32.xlu0 %v1571
      %v1573 = vpop.xlane.xlu0 %1572
      %v1574 = vadd.f32 %v1475, %v1477
      %1575 = vadd.xlane.f32.xlu0 %v1574
      %v1576 = vpop.xlane.xlu0 %1575
      %v1577 = vadd.f32 %v1479, %v1481
      %1578 = vadd.xlane.f32.xlu0 %v1577
      %v1579 = vpop.xlane.xlu0 %1578
      %v1580 = vadd.f32 %v1483, %v1485
      %1581 = vadd.xlane.f32.xlu0 %v1580
      %v1582 = vpop.xlane.xlu0 %1581
      %v1583 = vadd.f32 %v1487, %v1489
      %1584 = vadd.xlane.f32.xlu0 %v1583
      %v1585 = vpop.xlane.xlu0 %1584
      %v1586 = vrcp.pop %v1492
      %v1587 = vmul.f32 %v1363, %v1586
      %v1588 = vmul.f32 %v1365, %v1586
      %v1589 = vrcp.pop %v1495
      %v1590 = vmul.f32 %v1367, %v1589
      %v1591 = vmul.f32 %v1369, %v1589
      %v1592 = vrcp.pop %v1498
      %v1593 = vmul.f32 %v1371, %v1592
      %v1594 = vmul.f32 %v1373, %v1592
      %v1595 = vrcp.pop %v1501
      %v1596 = vmul.f32 %v1375, %v1595
      %v1597 = vmul.f32 %v1377, %v1595
      %v1598 = vrcp.pop %v1504
      %v1599 = vmul.f32 %v1379, %v1598
      %v1600 = vmul.f32 %v1381, %v1598
      %v1601 = vrcp.pop %v1507
      %v1602 = vmul.f32 %v1383, %v1601
      %v1603 = vmul.f32 %v1385, %v1601
      %v1604 = vrcp.pop %v1510
      %v1605 = vmul.f32 %v1387, %v1604
      %v1606 = vmul.f32 %v1389, %v1604
      %v1607 = vrcp.pop %v1513
      %v1608 = vmul.f32 %v1391, %v1607
      %v1609 = vmul.f32 %v1393, %v1607
      %v1610 = vrcp.pop %v1516
      %v1611 = vmul.f32 %v1395, %v1610
      %v1612 = vmul.f32 %v1397, %v1610
      %v1613 = vrcp.pop %v1519
      %v1614 = vmul.f32 %v1399, %v1613
      %v1615 = vmul.f32 %v1401, %v1613
      %v1616 = vrcp.pop %v1522
      %v1617 = vmul.f32 %v1403, %v1616
      %v1618 = vmul.f32 %v1405, %v1616
      %v1619 = vrcp.pop %v1525
      %v1620 = vmul.f32 %v1407, %v1619
      %v1621 = vmul.f32 %v1409, %v1619
      %v1622 = vrcp.pop %v1528
      %v1623 = vmul.f32 %v1411, %v1622
      %v1624 = vmul.f32 %v1413, %v1622
      %v1625 = vrcp.pop %v1531
      %v1626 = vmul.f32 %v1415, %v1625
      %v1627 = vmul.f32 %v1417, %v1625
      %v1628 = vrcp.pop %v1534
      %v1629 = vmul.f32 %v1419, %v1628
      %v1630 = vmul.f32 %v1421, %v1628
      %v1631 = vrcp.pop %v1537
      %v1632 = vmul.f32 %v1423, %v1631
      %v1633 = vmul.f32 %v1425, %v1631
      %v1634 = vrcp.pop %v1540
      %v1635 = vmul.f32 %v1427, %v1634
      %v1636 = vmul.f32 %v1429, %v1634
      %v1637 = vrcp.pop %v1543
      %v1638 = vmul.f32 %v1431, %v1637
      %v1639 = vmul.f32 %v1433, %v1637
      %v1640 = vrcp.pop %v1546
      %v1641 = vmul.f32 %v1435, %v1640
      %v1642 = vmul.f32 %v1437, %v1640
      %v1643 = vrcp.pop %v1549
      %v1644 = vmul.f32 %v1439, %v1643
      %v1645 = vmul.f32 %v1441, %v1643
      %v1646 = vrcp.pop %v1552
      %v1647 = vmul.f32 %v1443, %v1646
      %v1648 = vmul.f32 %v1445, %v1646
      %v1649 = vrcp.pop %v1555
      %v1650 = vmul.f32 %v1447, %v1649
      %v1651 = vmul.f32 %v1449, %v1649
      %v1652 = vrcp.pop %v1558
      %v1653 = vmul.f32 %v1451, %v1652
      %v1654 = vmul.f32 %v1453, %v1652
      %v1655 = vrcp.pop %v1561
      %v1656 = vmul.f32 %v1455, %v1655
      %v1657 = vmul.f32 %v1457, %v1655
      %v1658 = vrcp.pop %v1564
      %v1659 = vmul.f32 %v1459, %v1658
      %v1660 = vmul.f32 %v1461, %v1658
      %v1661 = vrcp.pop %v1567
      %v1662 = vmul.f32 %v1463, %v1661
      %v1663 = vmul.f32 %v1465, %v1661
      %v1664 = vrcp.pop %v1570
      %v1665 = vmul.f32 %v1467, %v1664
      %v1666 = vmul.f32 %v1469, %v1664
      %v1667 = vrcp.pop %v1573
      %v1668 = vmul.f32 %v1471, %v1667
      %v1669 = vmul.f32 %v1473, %v1667
      %v1670 = vrcp.pop %v1576
      %v1671 = vmul.f32 %v1475, %v1670
      %v1672 = vmul.f32 %v1477, %v1670
      %v1673 = vrcp.pop %v1579
      %v1674 = vmul.f32 %v1479, %v1673
      %v1675 = vmul.f32 %v1481, %v1673
      %v1676 = vrcp.pop %v1582
      %v1677 = vmul.f32 %v1483, %v1676
      %v1678 = vmul.f32 %v1485, %v1676
      %v1679 = vrcp.pop %v1585
      %v1680 = vmul.f32 %v1487, %v1679
      %v1681 = vmul.f32 %v1489, %v1679
      %1682 = vmatprep.subr.mxu0 %v1588
      %1683 = vmatpush1.xpose.msra.mxu0 %v1587
      %1684 = vmatprep.subr.mxu0 %v1591
      %1685 = vmatpush1.xpose.msra.mxu0 %v1590
      %1686 = vmatprep.subr.mxu0 %v1594
      %1687 = vmatpush1.xpose.msra.mxu0 %v1593
      %1688 = vmatprep.subr.mxu0 %v1597
      %1689 = vmatpush1.xpose.msra.mxu0 %v1596
      %1690 = vmatprep.subr.mxu0 %v1600
      %1691 = vmatpush1.xpose.msra.mxu0 %v1599
      %1692 = vmatprep.subr.mxu0 %v1603
      %1693 = vmatpush1.xpose.msra.mxu0 %v1602
      %1694 = vmatprep.subr.mxu0 %v1606
      %1695 = vmatpush1.xpose.msra.mxu0 %v1605
      %1696 = vmatprep.subr.mxu0 %v1609
      %1697 = vmatpush1.xpose.msra.mxu0 %v1608
      %1698 = vmatprep.subr.mxu0 %v1612
      %1699 = vmatpush1.xpose.msra.mxu0 %v1611
      %1700 = vmatprep.subr.mxu0 %v1615
      %1701 = vmatpush1.xpose.msra.mxu0 %v1614
      %1702 = vmatprep.subr.mxu0 %v1618
      %1703 = vmatpush1.xpose.msra.mxu0 %v1617
      %1704 = vmatprep.subr.mxu0 %v1621
      %1705 = vmatpush1.xpose.msra.mxu0 %v1620
      %1706 = vmatprep.subr.mxu0 %v1624
      %1707 = vmatpush1.xpose.msra.mxu0 %v1623
      %1708 = vmatprep.subr.mxu0 %v1627
      %1709 = vmatpush1.xpose.msra.mxu0 %v1626
      %1710 = vmatprep.subr.mxu0 %v1630
      %1711 = vmatpush1.xpose.msra.mxu0 %v1629
      %1712 = vmatprep.subr.mxu0 %v1633
      %1713 = vmatpush1.xpose.msra.mxu0 %v1632
      %1714 = vmatprep.subr.mxu0 %v1636
      %1715 = vmatpush1.xpose.msra.mxu0 %v1635
      %1716 = vmatprep.subr.mxu0 %v1639
      %1717 = vmatpush1.xpose.msra.mxu0 %v1638
      %1718 = vmatprep.subr.mxu0 %v1642
      %1719 = vmatpush1.xpose.msra.mxu0 %v1641
      %1720 = vmatprep.subr.mxu0 %v1645
      %1721 = vmatpush1.xpose.msra.mxu0 %v1644
      %1722 = vmatprep.subr.mxu0 %v1648
      %1723 = vmatpush1.xpose.msra.mxu0 %v1647
      %1724 = vmatprep.subr.mxu0 %v1651
      %1725 = vmatpush1.xpose.msra.mxu0 %v1650
      %1726 = vmatprep.subr.mxu0 %v1654
      %1727 = vmatpush1.xpose.msra.mxu0 %v1653
      %1728 = vmatprep.subr.mxu0 %v1657
      %1729 = vmatpush1.xpose.msra.mxu0 %v1656
      %1730 = vmatprep.subr.mxu0 %v1660
      %1731 = vmatpush1.xpose.msra.mxu0 %v1659
      %1732 = vmatprep.subr.mxu0 %v1663
      %1733 = vmatpush1.xpose.msra.mxu0 %v1662
      %1734 = vmatprep.subr.mxu0 %v1666
      %1735 = vmatpush1.xpose.msra.mxu0 %v1665
      %1736 = vmatprep.subr.mxu0 %v1669
      %1737 = vmatpush1.xpose.msra.mxu0 %v1668
      %1738 = vmatprep.subr.mxu0 %v1672
      %1739 = vmatpush1.xpose.msra.mxu0 %v1671
      %1740 = vmatprep.subr.mxu0 %v1675
      %1741 = vmatpush1.xpose.msra.mxu0 %v1674
      %1742 = vmatprep.subr.mxu0 %v1678
      %1743 = vmatpush1.xpose.msra.mxu0 %v1677
      %1744 = vmatprep.subr.mxu0 %v1681
      %1745 = vmatpush1.xpose.msra.mxu0 %v1680
      %1746 = vmatprep.mubr.f32.mxu0 %v660
      %1747 = vmatmul.mubr.f32.gmra.mrb[0].mxu0 %v658
      %v1748 = vpop.f32.mrb[0].mxu0
      %v1749 = vadd.f32 0.0, %v1748
      %v1750 = vpop.f32.mrb[0].mxu0
      %v1751 = vadd.f32 0.0, %v1750
      %1752 = vmatprep.mubr.f32.mxu0 %v666
      %1753 = vmatmul.mubr.f32.gmra.mrb[0].mxu0 %v664
      %v1754 = vpop.f32.mrb[0].mxu0
      %v1755 = vadd.f32 0.0, %v1754
      %v1756 = vpop.f32.mrb[0].mxu0
      %v1757 = vadd.f32 0.0, %v1756
      %1758 = vmatprep.mubr.f32.mxu0 %v672
      %1759 = vmatmul.mubr.f32.gmra.mrb[0].mxu0 %v670
      %v1760 = vpop.f32.mrb[0].mxu0
      %v1761 = vadd.f32 0.0, %v1760
      %v1762 = vpop.f32.mrb[0].mxu0
      %v1763 = vadd.f32 0.0, %v1762
      %1764 = vmatprep.mubr.f32.mxu0 %v678
      %1765 = vmatmul.mubr.f32.gmra.mrb[0].mxu0 %v676
      %v1766 = vpop.f32.mrb[0].mxu0
      %v1767 = vadd.f32 0.0, %v1766
      %v1768 = vpop.f32.mrb[0].mxu0
      %v1769 = vadd.f32 0.0, %v1768
      %1770 = vdwg.mxu0
      %1771 = vxpose.xlu0.b32.start [1/16] %v490, 128
      %1772 = vxpose.xlu0.b32.cont [2/16] %v496, 128
      %1773 = vxpose.xlu0.b32.cont [3/16] %v502, 128
      %1774 = vxpose.xlu0.b32.cont [4/16] %v508, 128
      %1775 = vxpose.xlu0.b32.cont [5/16] 0.0, 128
      %1776 = vxpose.xlu0.b32.cont [6/16] 0.0, 128
      %1777 = vxpose.xlu0.b32.cont [7/16] 0.0, 128
      %1778 = vxpose.xlu0.b32.cont [8/16] 0.0, 128
      %1779 = vxpose.xlu0.b32.cont [9/16] 0.0, 128
      %1780 = vxpose.xlu0.b32.cont [10/16] 0.0, 128
      %1781 = vxpose.xlu0.b32.cont [11/16] 0.0, 128
      %1782 = vxpose.xlu0.b32.cont [12/16] 0.0, 128
      %1783 = vxpose.xlu0.b32.cont [13/16] 0.0, 128
      %1784 = vxpose.xlu0.b32.cont [14/16] 0.0, 128
      %1785 = vxpose.xlu0.b32.cont [15/16] 0.0, 128
      %1786 = vxpose.xlu0.b32.end [16/16] 0.0, 128
      %v1787 = vpop.trf.xlu0
      %v1788 = vpop.trf.xlu0
      %v1789 = vpop.trf.xlu0
      %v1790 = vpop.trf.xlu0
      %v1791 = vpop.trf.xlu0
      %v1792 = vpop.trf.xlu0
      %v1793 = vpop.trf.xlu0
      %v1794 = vpop.trf.xlu0
      %v1795 = vpop.trf.xlu0
      %v1796 = vpop.trf.xlu0
      %v1797 = vpop.trf.xlu0
      %v1798 = vpop.trf.xlu0
      %v1799 = vpop.trf.xlu0
      %v1800 = vpop.trf.xlu0
      %v1801 = vpop.trf.xlu0
      %v1802 = vpop.trf.xlu0
      %1803 = vxpose.xlu0.b32.start [1/16] %v492, 128
      %1804 = vxpose.xlu0.b32.cont [2/16] %v498, 128
      %1805 = vxpose.xlu0.b32.cont [3/16] %v504, 128
      %1806 = vxpose.xlu0.b32.cont [4/16] %v510, 128
      %1807 = vxpose.xlu0.b32.cont [5/16] 0.0, 128
      %1808 = vxpose.xlu0.b32.cont [6/16] 0.0, 128
      %1809 = vxpose.xlu0.b32.cont [7/16] 0.0, 128
      %1810 = vxpose.xlu0.b32.cont [8/16] 0.0, 128
      %1811 = vxpose.xlu0.b32.cont [9/16] 0.0, 128
      %1812 = vxpose.xlu0.b32.cont [10/16] 0.0, 128
      %1813 = vxpose.xlu0.b32.cont [11/16] 0.0, 128
      %1814 = vxpose.xlu0.b32.cont [12/16] 0.0, 128
      %1815 = vxpose.xlu0.b32.cont [13/16] 0.0, 128
      %1816 = vxpose.xlu0.b32.cont [14/16] 0.0, 128
      %1817 = vxpose.xlu0.b32.cont [15/16] 0.0, 128
      %1818 = vxpose.xlu0.b32.end [16/16] 0.0, 128
      %v1819 = vpop.trf.xlu0
      %v1820 = vpop.trf.xlu0
      %v1821 = vpop.trf.xlu0
      %v1822 = vpop.trf.xlu0
      %v1823 = vpop.trf.xlu0
      %v1824 = vpop.trf.xlu0
      %v1825 = vpop.trf.xlu0
      %v1826 = vpop.trf.xlu0
      %v1827 = vpop.trf.xlu0
      %v1828 = vpop.trf.xlu0
      %v1829 = vpop.trf.xlu0
      %v1830 = vpop.trf.xlu0
      %v1831 = vpop.trf.xlu0
      %v1832 = vpop.trf.xlu0
      %v1833 = vpop.trf.xlu0
      %v1834 = vpop.trf.xlu0
      %v1835 = vmul.f32 %v1787, 0.17677669
      %v1836 = vmul.f32 %v1788, 0.17677669
      %v1837 = vmul.f32 %v1789, 0.17677669
      %v1838 = vmul.f32 %v1790, 0.17677669
      %v1839 = vmul.f32 %v1791, 0.17677669
      %v1840 = vmul.f32 %v1792, 0.17677669
      %v1841 = vmul.f32 %v1793, 0.17677669
      %v1842 = vmul.f32 %v1794, 0.17677669
      %v1843 = vmul.f32 %v1795, 0.17677669
      %v1844 = vmul.f32 %v1796, 0.17677669
      %v1845 = vmul.f32 %v1797, 0.17677669
      %v1846 = vmul.f32 %v1798, 0.17677669
      %v1847 = vmul.f32 %v1799, 0.17677669
      %v1848 = vmul.f32 %v1800, 0.17677669
      %v1849 = vmul.f32 %v1801, 0.17677669
      %v1850 = vmul.f32 %v1802, 0.17677669
      %v1851 = vmul.f32 %v1819, 0.17677669
      %v1852 = vmul.f32 %v1820, 0.17677669
      %v1853 = vmul.f32 %v1821, 0.17677669
      %v1854 = vmul.f32 %v1822, 0.17677669
      %v1855 = vmul.f32 %v1823, 0.17677669
      %v1856 = vmul.f32 %v1824, 0.17677669
      %v1857 = vmul.f32 %v1825, 0.17677669
      %v1858 = vmul.f32 %v1826, 0.17677669
      %v1859 = vmul.f32 %v1827, 0.17677669
      %v1860 = vmul.f32 %v1828, 0.17677669
      %v1861 = vmul.f32 %v1829, 0.17677669
      %v1862 = vmul.f32 %v1830, 0.17677669
      %v1863 = vmul.f32 %v1831, 0.17677669
      %v1864 = vmul.f32 %v1832, 0.17677669
      %v1865 = vmul.f32 %v1833, 0.17677669
      %v1866 = vmul.f32 %v1834, 0.17677669
      %v1868 = vsel %vm848, %v1835, 0
      %v1871 = vsel %vm848, %v1836, 0
      %v1874 = vsel %vm848, %v1837, 0
      %v1877 = vsel %vm848, %v1838, 0
      %v1880 = vsel %vm848, %v1839, 0
      %v1883 = vsel %vm848, %v1840, 0
      %v1886 = vsel %vm848, %v1841, 0
      %v1889 = vsel %vm848, %v1842, 0
      %v1892 = vsel %vm848, %v1843, 0
      %v1895 = vsel %vm848, %v1844, 0
      %v1898 = vsel %vm848, %v1845, 0
      %v1901 = vsel %vm848, %v1846, 0
      %v1904 = vsel %vm848, %v1847, 0
      %v1907 = vsel %vm848, %v1848, 0
      %v1910 = vsel %vm848, %v1849, 0
      %v1913 = vsel %vm848, %v1850, 0
      %v1916 = vsel %vm848, %v1851, 0
      %v1919 = vsel %vm848, %v1852, 0
      %v1922 = vsel %vm848, %v1853, 0
      %v1925 = vsel %vm848, %v1854, 0
      %v1928 = vsel %vm848, %v1855, 0
      %v1931 = vsel %vm848, %v1856, 0
      %v1934 = vsel %vm848, %v1857, 0
      %v1937 = vsel %vm848, %v1858, 0
      %v1940 = vsel %vm848, %v1859, 0
      %v1943 = vsel %vm848, %v1860, 0
      %v1946 = vsel %vm848, %v1861, 0
      %v1949 = vsel %vm848, %v1862, 0
      %v1952 = vsel %vm848, %v1863, 0
      %v1955 = vsel %vm848, %v1864, 0
      %v1958 = vsel %vm848, %v1865, 0
      %v1961 = vsel %vm848, %v1866, 0
      %1963 = vmatprep.subr.mxu0 %v588
      %1964 = vmatpush1.msra.mxu0 %v586
      %1965 = vmatprep.subr.mxu0 %v594
      %1966 = vmatpush1.msra.mxu0 %v592
      %1967 = vmatprep.subr.mxu0 %v600
      %1968 = vmatpush1.msra.mxu0 %v598
      %1969 = vmatprep.subr.mxu0 %v606
      %1970 = vmatpush1.msra.mxu0 %v604
      %1971 = vmatprep.subr.mxu0 0.0
      %1972 = vmatpush1.msra.mxu0 0.0
      %1973 = vmatprep.subr.mxu0 0.0
      %1974 = vmatpush1.msra.mxu0 0.0
      %1975 = vmatprep.subr.mxu0 0.0
      %1976 = vmatpush1.msra.mxu0 0.0
      %1977 = vmatprep.subr.mxu0 0.0
      %1978 = vmatpush1.msra.mxu0 0.0
      %1979 = vmatprep.subr.mxu0 0.0
      %1980 = vmatpush1.msra.mxu0 0.0
      %1981 = vmatprep.subr.mxu0 0.0
      %1982 = vmatpush1.msra.mxu0 0.0
      %1983 = vmatprep.subr.mxu0 0.0
      %1984 = vmatpush1.msra.mxu0 0.0
      %1985 = vmatprep.subr.mxu0 0.0
      %1986 = vmatpush1.msra.mxu0 0.0
      %1987 = vmatprep.subr.mxu0 0.0
      %1988 = vmatpush1.msra.mxu0 0.0
      %1989 = vmatprep.subr.mxu0 0.0
      %1990 = vmatpush1.msra.mxu0 0.0
      %1991 = vmatprep.subr.mxu0 0.0
      %1992 = vmatpush1.msra.mxu0 0.0
      %1993 = vmatprep.subr.mxu0 0.0
      %1994 = vmatpush1.msra.mxu0 0.0
      %1995 = vmatprep.subr.mxu0 0.0
      %1996 = vmatpush1.msra.mxu0 0.0
      %1997 = vmatprep.subr.mxu0 0.0
      %1998 = vmatpush1.msra.mxu0 0.0
      %1999 = vmatprep.subr.mxu0 0.0
      %2000 = vmatpush1.msra.mxu0 0.0
      %2001 = vmatprep.subr.mxu0 0.0
      %2002 = vmatpush1.msra.mxu0 0.0
      %2003 = vmatprep.subr.mxu0 0.0
      %2004 = vmatpush1.msra.mxu0 0.0
      %2005 = vmatprep.subr.mxu0 0.0
      %2006 = vmatpush1.msra.mxu0 0.0
      %2007 = vmatprep.subr.mxu0 0.0
      %2008 = vmatpush1.msra.mxu0 0.0
      %2009 = vmatprep.subr.mxu0 0.0
      %2010 = vmatpush1.msra.mxu0 0.0
      %2011 = vmatprep.subr.mxu0 0.0
      %2012 = vmatpush1.msra.mxu0 0.0
      %2013 = vmatprep.subr.mxu0 0.0
      %2014 = vmatpush1.msra.mxu0 0.0
      %2015 = vmatprep.subr.mxu0 0.0
      %2016 = vmatpush1.msra.mxu0 0.0
      %2017 = vmatprep.subr.mxu0 0.0
      %2018 = vmatpush1.msra.mxu0 0.0
      %2019 = vmatprep.subr.mxu0 0.0
      %2020 = vmatpush1.msra.mxu0 0.0
      %2021 = vmatprep.subr.mxu0 0.0
      %2022 = vmatpush1.msra.mxu0 0.0
      %2023 = vmatprep.subr.mxu0 0.0
      %2024 = vmatpush1.msra.mxu0 0.0
      %2025 = vmatprep.subr.mxu0 0.0
      %2026 = vmatpush1.msra.mxu0 0.0
      %2027 = vmatprep.mubr.f32.mxu0 0.0
      %2028 = vmatmul.mubr.f32.gmra.mrb[0].mxu0 %v1868
      %v2029 = vpop.f32.mrb[0].mxu0
      %v2030 = vadd.f32 0.0, %v2029
      %v2031 = vpop.f32.mrb[0].mxu0
      %v2032 = vadd.f32 0.0, %v2031
      %2033 = vmatprep.mubr.f32.mxu0 0.0
      %2034 = vmatmul.mubr.f32.gmra.mrb[0].mxu0 %v1871
      %v2035 = vpop.f32.mrb[0].mxu0
      %v2036 = vadd.f32 0.0, %v2035
      %v2037 = vpop.f32.mrb[0].mxu0
      %v2038 = vadd.f32 0.0, %v2037
      %2039 = vmatprep.mubr.f32.mxu0 0.0
      %2040 = vmatmul.mubr.f32.gmra.mrb[0].mxu0 %v1874
      %v2041 = vpop.f32.mrb[0].mxu0
      %v2042 = vadd.f32 0.0, %v2041
      %v2043 = vpop.f32.mrb[0].mxu0
      %v2044 = vadd.f32 0.0, %v2043
      %2045 = vmatprep.mubr.f32.mxu0 0.0
      %2046 = vmatmul.mubr.f32.gmra.mrb[0].mxu0 %v1877
      %v2047 = vpop.f32.mrb[0].mxu0
      %v2048 = vadd.f32 0.0, %v2047
      %v2049 = vpop.f32.mrb[0].mxu0
      %v2050 = vadd.f32 0.0, %v2049
      %2051 = vmatprep.mubr.f32.mxu0 0.0
      %2052 = vmatmul.mubr.f32.gmra.mrb[0].mxu0 %v1880
      %v2053 = vpop.f32.mrb[0].mxu0
      %v2054 = vadd.f32 0.0, %v2053
      %v2055 = vpop.f32.mrb[0].mxu0
      %v2056 = vadd.f32 0.0, %v2055
      %2057 = vmatprep.mubr.f32.mxu0 0.0
      %2058 = vmatmul.mubr.f32.gmra.mrb[0].mxu0 %v1883
      %v2059 = vpop.f32.mrb[0].mxu0
      %v2060 = vadd.f32 0.0, %v2059
      %v2061 = vpop.f32.mrb[0].mxu0
      %v2062 = vadd.f32 0.0, %v2061
      %2063 = vmatprep.mubr.f32.mxu0 0.0
      %2064 = vmatmul.mubr.f32.gmra.mrb[0].mxu0 %v1886
      %v2065 = vpop.f32.mrb[0].mxu0
      %v2066 = vadd.f32 0.0, %v2065
      %v2067 = vpop.f32.mrb[0].mxu0
      %v2068 = vadd.f32 0.0, %v2067
      %2069 = vmatprep.mubr.f32.mxu0 0.0
      %2070 = vmatmul.mubr.f32.gmra.mrb[0].mxu0 %v1889
      %v2071 = vpop.f32.mrb[0].mxu0
      %v2072 = vadd.f32 0.0, %v2071
      %v2073 = vpop.f32.mrb[0].mxu0
      %v2074 = vadd.f32 0.0, %v2073
      %2075 = vmatprep.mubr.f32.mxu0 0.0
      %2076 = vmatmul.mubr.f32.gmra.mrb[0].mxu0 %v1892
      %v2077 = vpop.f32.mrb[0].mxu0
      %v2078 = vadd.f32 0.0, %v2077
      %v2079 = vpop.f32.mrb[0].mxu0
      %v2080 = vadd.f32 0.0, %v2079
      %2081 = vmatprep.mubr.f32.mxu0 0.0
      %2082 = vmatmul.mubr.f32.gmra.mrb[0].mxu0 %v1895
      %v2083 = vpop.f32.mrb[0].mxu0
      %v2084 = vadd.f32 0.0, %v2083
      %v2085 = vpop.f32.mrb[0].mxu0
      %v2086 = vadd.f32 0.0, %v2085
      %2087 = vmatprep.mubr.f32.mxu0 0.0
      %2088 = vmatmul.mubr.f32.gmra.mrb[0].mxu0 %v1898
      %v2089 = vpop.f32.mrb[0].mxu0
      %v2090 = vadd.f32 0.0, %v2089
      %v2091 = vpop.f32.mrb[0].mxu0
      %v2092 = vadd.f32 0.0, %v2091
      %2093 = vmatprep.mubr.f32.mxu0 0.0
      %2094 = vmatmul.mubr.f32.gmra.mrb[0].mxu0 %v1901
      %v2095 = vpop.f32.mrb[0].mxu0
      %v2096 = vadd.f32 0.0, %v2095
      %v2097 = vpop.f32.mrb[0].mxu0
      %v2098 = vadd.f32 0.0, %v2097
      %2099 = vmatprep.mubr.f32.mxu0 0.0
      %2100 = vmatmul.mubr.f32.gmra.mrb[0].mxu0 %v1904
      %v2101 = vpop.f32.mrb[0].mxu0
      %v2102 = vadd.f32 0.0, %v2101
      %v2103 = vpop.f32.mrb[0].mxu0
      %v2104 = vadd.f32 0.0, %v2103
      %2105 = vmatprep.mubr.f32.mxu0 0.0
      %2106 = vmatmul.mubr.f32.gmra.mrb[0].mxu0 %v1907
      %v2107 = vpop.f32.mrb[0].mxu0
      %v2108 = vadd.f32 0.0, %v2107
      %v2109 = vpop.f32.mrb[0].mxu0
      %v2110 = vadd.f32 0.0, %v2109
      %2111 = vmatprep.mubr.f32.mxu0 0.0
      %2112 = vmatmul.mubr.f32.gmra.mrb[0].mxu0 %v1910
      %v2113 = vpop.f32.mrb[0].mxu0
      %v2114 = vadd.f32 0.0, %v2113
      %v2115 = vpop.f32.mrb[0].mxu0
      %v2116 = vadd.f32 0.0, %v2115
      %2117 = vmatprep.mubr.f32.mxu0 0.0
      %2118 = vmatmul.mubr.f32.gmra.mrb[0].mxu0 %v1913
      %v2119 = vpop.f32.mrb[0].mxu0
      %v2120 = vadd.f32 0.0, %v2119
      %v2121 = vpop.f32.mrb[0].mxu0
      %v2122 = vadd.f32 0.0, %v2121
      %2123 = vmatprep.mubr.f32.mxu0 0.0
      %2124 = vmatmul.mubr.f32.gmra.mrb[0].mxu0 %v1916
      %v2125 = vpop.f32.mrb[0].mxu0
      %v2126 = vadd.f32 0.0, %v2125
      %v2127 = vpop.f32.mrb[0].mxu0
      %v2128 = vadd.f32 0.0, %v2127
      %2129 = vmatprep.mubr.f32.mxu0 0.0
      %2130 = vmatmul.mubr.f32.gmra.mrb[0].mxu0 %v1919
      %v2131 = vpop.f32.mrb[0].mxu0
      %v2132 = vadd.f32 0.0, %v2131
      %v2133 = vpop.f32.mrb[0].mxu0
      %v2134 = vadd.f32 0.0, %v2133
      %2135 = vmatprep.mubr.f32.mxu0 0.0
      %2136 = vmatmul.mubr.f32.gmra.mrb[0].mxu0 %v1922
      %v2137 = vpop.f32.mrb[0].mxu0
      %v2138 = vadd.f32 0.0, %v2137
      %v2139 = vpop.f32.mrb[0].mxu0
      %v2140 = vadd.f32 0.0, %v2139
      %2141 = vmatprep.mubr.f32.mxu0 0.0
      %2142 = vmatmul.mubr.f32.gmra.mrb[0].mxu0 %v1925
      %v2143 = vpop.f32.mrb[0].mxu0
      %v2144 = vadd.f32 0.0, %v2143
      %v2145 = vpop.f32.mrb[0].mxu0
      %v2146 = vadd.f32 0.0, %v2145
      %2147 = vmatprep.mubr.f32.mxu0 0.0
      %2148 = vmatmul.mubr.f32.gmra.mrb[0].mxu0 %v1928
      %v2149 = vpop.f32.mrb[0].mxu0
      %v2150 = vadd.f32 0.0, %v2149
      %v2151 = vpop.f32.mrb[0].mxu0
      %v2152 = vadd.f32 0.0, %v2151
      %2153 = vmatprep.mubr.f32.mxu0 0.0
      %2154 = vmatmul.mubr.f32.gmra.mrb[0].mxu0 %v1931
      %v2155 = vpop.f32.mrb[0].mxu0
      %v2156 = vadd.f32 0.0, %v2155
      %v2157 = vpop.f32.mrb[0].mxu0
      %v2158 = vadd.f32 0.0, %v2157
      %2159 = vmatprep.mubr.f32.mxu0 0.0
      %2160 = vmatmul.mubr.f32.gmra.mrb[0].mxu0 %v1934
      %v2161 = vpop.f32.mrb[0].mxu0
      %v2162 = vadd.f32 0.0, %v2161
      %v2163 = vpop.f32.mrb[0].mxu0
      %v2164 = vadd.f32 0.0, %v2163
      %2165 = vmatprep.mubr.f32.mxu0 0.0
      %2166 = vmatmul.mubr.f32.gmra.mrb[0].mxu0 %v1937
      %v2167 = vpop.f32.mrb[0].mxu0
      %v2168 = vadd.f32 0.0, %v2167
      %v2169 = vpop.f32.mrb[0].mxu0
      %v2170 = vadd.f32 0.0, %v2169
      %2171 = vmatprep.mubr.f32.mxu0 0.0
      %2172 = vmatmul.mubr.f32.gmra.mrb[0].mxu0 %v1940
      %v2173 = vpop.f32.mrb[0].mxu0
      %v2174 = vadd.f32 0.0, %v2173
      %v2175 = vpop.f32.mrb[0].mxu0
      %v2176 = vadd.f32 0.0, %v2175
      %2177 = vmatprep.mubr.f32.mxu0 0.0
      %2178 = vmatmul.mubr.f32.gmra.mrb[0].mxu0 %v1943
      %v2179 = vpop.f32.mrb[0].mxu0
      %v2180 = vadd.f32 0.0, %v2179
      %v2181 = vpop.f32.mrb[0].mxu0
      %v2182 = vadd.f32 0.0, %v2181
      %2183 = vmatprep.mubr.f32.mxu0 0.0
      %2184 = vmatmul.mubr.f32.gmra.mrb[0].mxu0 %v1946
      %v2185 = vpop.f32.mrb[0].mxu0
      %v2186 = vadd.f32 0.0, %v2185
      %v2187 = vpop.f32.mrb[0].mxu0
      %v2188 = vadd.f32 0.0, %v2187
      %2189 = vmatprep.mubr.f32.mxu0 0.0
      %2190 = vmatmul.mubr.f32.gmra.mrb[0].mxu0 %v1949
      %v2191 = vpop.f32.mrb[0].mxu0
      %v2192 = vadd.f32 0.0, %v2191
      %v2193 = vpop.f32.mrb[0].mxu0
      %v2194 = vadd.f32 0.0, %v2193
      %2195 = vmatprep.mubr.f32.mxu0 0.0
      %2196 = vmatmul.mubr.f32.gmra.mrb[0].mxu0 %v1952
      %v2197 = vpop.f32.mrb[0].mxu0
      %v2198 = vadd.f32 0.0, %v2197
      %v2199 = vpop.f32.mrb[0].mxu0
      %v2200 = vadd.f32 0.0, %v2199
      %2201 = vmatprep.mubr.f32.mxu0 0.0
      %2202 = vmatmul.mubr.f32.gmra.mrb[0].mxu0 %v1955
      %v2203 = vpop.f32.mrb[0].mxu0
      %v2204 = vadd.f32 0.0, %v2203
      %v2205 = vpop.f32.mrb[0].mxu0
      %v2206 = vadd.f32 0.0, %v2205
      %2207 = vmatprep.mubr.f32.mxu0 0.0
      %2208 = vmatmul.mubr.f32.gmra.mrb[0].mxu0 %v1958
      %v2209 = vpop.f32.mrb[0].mxu0
      %v2210 = vadd.f32 0.0, %v2209
      %v2211 = vpop.f32.mrb[0].mxu0
      %v2212 = vadd.f32 0.0, %v2211
      %2213 = vmatprep.mubr.f32.mxu0 0.0
      %2214 = vmatmul.mubr.f32.gmra.mrb[0].mxu0 %v1961
      %v2215 = vpop.f32.mrb[0].mxu0
      %v2216 = vadd.f32 0.0, %v2215
      %v2217 = vpop.f32.mrb[0].mxu0
      %v2218 = vadd.f32 0.0, %v2217
      %2219 = vdwg.mxu0
      %v2220 = vmax.f32 %v2030, %v2032
      %2221 = vmax.xlane.f32.xlu0 %v2220
      %v2222 = vpop.xlane.xlu0 %2221
      %v2223 = vmax.f32 %v2036, %v2038
      %2224 = vmax.xlane.f32.xlu0 %v2223
      %v2225 = vpop.xlane.xlu0 %2224
      %v2226 = vmax.f32 %v2042, %v2044
      %2227 = vmax.xlane.f32.xlu0 %v2226
      %v2228 = vpop.xlane.xlu0 %2227
      %v2229 = vmax.f32 %v2048, %v2050
      %2230 = vmax.xlane.f32.xlu0 %v2229
      %v2231 = vpop.xlane.xlu0 %2230
      %v2232 = vmax.f32 %v2054, %v2056
      %2233 = vmax.xlane.f32.xlu0 %v2232
      %v2234 = vpop.xlane.xlu0 %2233
      %v2235 = vmax.f32 %v2060, %v2062
      %2236 = vmax.xlane.f32.xlu0 %v2235
      %v2237 = vpop.xlane.xlu0 %2236
      %v2238 = vmax.f32 %v2066, %v2068
      %2239 = vmax.xlane.f32.xlu0 %v2238
      %v2240 = vpop.xlane.xlu0 %2239
      %v2241 = vmax.f32 %v2072, %v2074
      %2242 = vmax.xlane.f32.xlu0 %v2241
      %v2243 = vpop.xlane.xlu0 %2242
      %v2244 = vmax.f32 %v2078, %v2080
      %2245 = vmax.xlane.f32.xlu0 %v2244
      %v2246 = vpop.xlane.xlu0 %2245
      %v2247 = vmax.f32 %v2084, %v2086
      %2248 = vmax.xlane.f32.xlu0 %v2247
      %v2249 = vpop.xlane.xlu0 %2248
      %v2250 = vmax.f32 %v2090, %v2092
      %2251 = vmax.xlane.f32.xlu0 %v2250
      %v2252 = vpop.xlane.xlu0 %2251
      %v2253 = vmax.f32 %v2096, %v2098
      %2254 = vmax.xlane.f32.xlu0 %v2253
      %v2255 = vpop.xlane.xlu0 %2254
      %v2256 = vmax.f32 %v2102, %v2104
      %2257 = vmax.xlane.f32.xlu0 %v2256
      %v2258 = vpop.xlane.xlu0 %2257
      %v2259 = vmax.f32 %v2108, %v2110
      %2260 = vmax.xlane.f32.xlu0 %v2259
      %v2261 = vpop.xlane.xlu0 %2260
      %v2262 = vmax.f32 %v2114, %v2116
      %2263 = vmax.xlane.f32.xlu0 %v2262
      %v2264 = vpop.xlane.xlu0 %2263
      %v2265 = vmax.f32 %v2120, %v2122
      %2266 = vmax.xlane.f32.xlu0 %v2265
      %v2267 = vpop.xlane.xlu0 %2266
      %v2268 = vmax.f32 %v2126, %v2128
      %2269 = vmax.xlane.f32.xlu0 %v2268
      %v2270 = vpop.xlane.xlu0 %2269
      %v2271 = vmax.f32 %v2132, %v2134
      %2272 = vmax.xlane.f32.xlu0 %v2271
      %v2273 = vpop.xlane.xlu0 %2272
      %v2274 = vmax.f32 %v2138, %v2140
      %2275 = vmax.xlane.f32.xlu0 %v2274
      %v2276 = vpop.xlane.xlu0 %2275
      %v2277 = vmax.f32 %v2144, %v2146
      %2278 = vmax.xlane.f32.xlu0 %v2277
      %v2279 = vpop.xlane.xlu0 %2278
      %v2280 = vmax.f32 %v2150, %v2152
      %2281 = vmax.xlane.f32.xlu0 %v2280
      %v2282 = vpop.xlane.xlu0 %2281
      %v2283 = vmax.f32 %v2156, %v2158
      %2284 = vmax.xlane.f32.xlu0 %v2283
      %v2285 = vpop.xlane.xlu0 %2284
      %v2286 = vmax.f32 %v2162, %v2164
      %2287 = vmax.xlane.f32.xlu0 %v2286
      %v2288 = vpop.xlane.xlu0 %2287
      %v2289 = vmax.f32 %v2168, %v2170
      %2290 = vmax.xlane.f32.xlu0 %v2289
      %v2291 = vpop.xlane.xlu0 %2290
      %v2292 = vmax.f32 %v2174, %v2176
      %2293 = vmax.xlane.f32.xlu0 %v2292
      %v2294 = vpop.xlane.xlu0 %2293
      %v2295 = vmax.f32 %v2180, %v2182
      %2296 = vmax.xlane.f32.xlu0 %v2295
      %v2297 = vpop.xlane.xlu0 %2296
      %v2298 = vmax.f32 %v2186, %v2188
      %2299 = vmax.xlane.f32.xlu0 %v2298
      %v2300 = vpop.xlane.xlu0 %2299
      %v2301 = vmax.f32 %v2192, %v2194
      %2302 = vmax.xlane.f32.xlu0 %v2301
      %v2303 = vpop.xlane.xlu0 %2302
      %v2304 = vmax.f32 %v2198, %v2200
      %2305 = vmax.xlane.f32.xlu0 %v2304
      %v2306 = vpop.xlane.xlu0 %2305
      %v2307 = vmax.f32 %v2204, %v2206
      %2308 = vmax.xlane.f32.xlu0 %v2307
      %v2309 = vpop.xlane.xlu0 %2308
      %v2310 = vmax.f32 %v2210, %v2212
      %2311 = vmax.xlane.f32.xlu0 %v2310
      %v2312 = vpop.xlane.xlu0 %2311
      %v2313 = vmax.f32 %v2216, %v2218
      %2314 = vmax.xlane.f32.xlu0 %v2313
      %v2315 = vpop.xlane.xlu0 %2314
      %v2316 = vsub.f32 %v2030, %v2222
      %v2317 = vsub.f32 %v2032, %v2222
      %v2318 = vsub.f32 %v2036, %v2225
      %v2319 = vsub.f32 %v2038, %v2225
      %v2320 = vsub.f32 %v2042, %v2228
      %v2321 = vsub.f32 %v2044, %v2228
      %v2322 = vsub.f32 %v2048, %v2231
      %v2323 = vsub.f32 %v2050, %v2231
      %v2324 = vsub.f32 %v2054, %v2234
      %v2325 = vsub.f32 %v2056, %v2234
      %v2326 = vsub.f32 %v2060, %v2237
      %v2327 = vsub.f32 %v2062, %v2237
      %v2328 = vsub.f32 %v2066, %v2240
      %v2329 = vsub.f32 %v2068, %v2240
      %v2330 = vsub.f32 %v2072, %v2243
      %v2331 = vsub.f32 %v2074, %v2243
      %v2332 = vsub.f32 %v2078, %v2246
      %v2333 = vsub.f32 %v2080, %v2246
      %v2334 = vsub.f32 %v2084, %v2249
      %v2335 = vsub.f32 %v2086, %v2249
      %v2336 = vsub.f32 %v2090, %v2252
      %v2337 = vsub.f32 %v2092, %v2252
      %v2338 = vsub.f32 %v2096, %v2255
      %v2339 = vsub.f32 %v2098, %v2255
      %v2340 = vsub.f32 %v2102, %v2258
      %v2341 = vsub.f32 %v2104, %v2258
      %v2342 = vsub.f32 %v2108, %v2261
      %v2343 = vsub.f32 %v2110, %v2261
      %v2344 = vsub.f32 %v2114, %v2264
      %v2345 = vsub.f32 %v2116, %v2264
      %v2346 = vsub.f32 %v2120, %v2267
      %v2347 = vsub.f32 %v2122, %v2267
      %v2348 = vsub.f32 %v2126, %v2270
      %v2349 = vsub.f32 %v2128, %v2270
      %v2350 = vsub.f32 %v2132, %v2273
      %v2351 = vsub.f32 %v2134, %v2273
      %v2352 = vsub.f32 %v2138, %v2276
      %v2353 = vsub.f32 %v2140, %v2276
      %v2354 = vsub.f32 %v2144, %v2279
      %v2355 = vsub.f32 %v2146, %v2279
      %v2356 = vsub.f32 %v2150, %v2282
      %v2357 = vsub.f32 %v2152, %v2282
      %v2358 = vsub.f32 %v2156, %v2285
      %v2359 = vsub.f32 %v2158, %v2285
      %v2360 = vsub.f32 %v2162, %v2288
      %v2361 = vsub.f32 %v2164, %v2288
      %v2362 = vsub.f32 %v2168, %v2291
      %v2363 = vsub.f32 %v2170, %v2291
      %v2364 = vsub.f32 %v2174, %v2294
      %v2365 = vsub.f32 %v2176, %v2294
      %v2366 = vsub.f32 %v2180, %v2297
      %v2367 = vsub.f32 %v2182, %v2297
      %v2368 = vsub.f32 %v2186, %v2300
      %v2369 = vsub.f32 %v2188, %v2300
      %v2370 = vsub.f32 %v2192, %v2303
      %v2371 = vsub.f32 %v2194, %v2303
      %v2372 = vsub.f32 %v2198, %v2306
      %v2373 = vsub.f32 %v2200, %v2306
      %v2374 = vsub.f32 %v2204, %v2309
      %v2375 = vsub.f32 %v2206, %v2309
      %v2376 = vsub.f32 %v2210, %v2312
      %v2377 = vsub.f32 %v2212, %v2312
      %v2378 = vsub.f32 %v2216, %v2315
      %v2379 = vsub.f32 %v2218, %v2315
      %v2380 = vmul.f32 %v2316, 1.442695
      %v2381 = vpow.pop %v2380
      %v2382 = vmul.f32 %v2317, 1.442695
      %v2383 = vpow.pop %v2382
      %v2384 = vmul.f32 %v2318, 1.442695
      %v2385 = vpow.pop %v2384
      %v2386 = vmul.f32 %v2319, 1.442695
      %v2387 = vpow.pop %v2386
      %v2388 = vmul.f32 %v2320, 1.442695
      %v2389 = vpow.pop %v2388
      %v2390 = vmul.f32 %v2321, 1.442695
      %v2391 = vpow.pop %v2390
      %v2392 = vmul.f32 %v2322, 1.442695
      %v2393 = vpow.pop %v2392
      %v2394 = vmul.f32 %v2323, 1.442695
      %v2395 = vpow.pop %v2394
      %v2396 = vmul.f32 %v2324, 1.442695
      %v2397 = vpow.pop %v2396
      %v2398 = vmul.f32 %v2325, 1.442695
      %v2399 = vpow.pop %v2398
      %v2400 = vmul.f32 %v2326, 1.442695
      %v2401 = vpow.pop %v2400
      %v2402 = vmul.f32 %v2327, 1.442695
      %v2403 = vpow.pop %v2402
      %v2404 = vmul.f32 %v2328, 1.442695
      %v2405 = vpow.pop %v2404
      %v2406 = vmul.f32 %v2329, 1.442695
      %v2407 = vpow.pop %v2406
      %v2408 = vmul.f32 %v2330, 1.442695
      %v2409 = vpow.pop %v2408
      %v2410 = vmul.f32 %v2331, 1.442695
      %v2411 = vpow.pop %v2410
      %v2412 = vmul.f32 %v2332, 1.442695
      %v2413 = vpow.pop %v2412
      %v2414 = vmul.f32 %v2333, 1.442695
      %v2415 = vpow.pop %v2414
      %v2416 = vmul.f32 %v2334, 1.442695
      %v2417 = vpow.pop %v2416
      %v2418 = vmul.f32 %v2335, 1.442695
      %v2419 = vpow.pop %v2418
      %v2420 = vmul.f32 %v2336, 1.442695
      %v2421 = vpow.pop %v2420
      %v2422 = vmul.f32 %v2337, 1.442695
      %v2423 = vpow.pop %v2422
      %v2424 = vmul.f32 %v2338, 1.442695
      %v2425 = vpow.pop %v2424
      %v2426 = vmul.f32 %v2339, 1.442695
      %v2427 = vpow.pop %v2426
      %v2428 = vmul.f32 %v2340, 1.442695
      %v2429 = vpow.pop %v2428
      %v2430 = vmul.f32 %v2341, 1.442695
      %v2431 = vpow.pop %v2430
      %v2432 = vmul.f32 %v2342, 1.442695
      %v2433 = vpow.pop %v2432
      %v2434 = vmul.f32 %v2343, 1.442695
      %v2435 = vpow.pop %v2434
      %v2436 = vmul.f32 %v2344, 1.442695
      %v2437 = vpow.pop %v2436
      %v2438 = vmul.f32 %v2345, 1.442695
      %v2439 = vpow.pop %v2438
      %v2440 = vmul.f32 %v2346, 1.442695
      %v2441 = vpow.pop %v2440
      %v2442 = vmul.f32 %v2347, 1.442695
      %v2443 = vpow.pop %v2442
      %v2444 = vmul.f32 %v2348, 1.442695
      %v2445 = vpow.pop %v2444
      %v2446 = vmul.f32 %v2349, 1.442695
      %v2447 = vpow.pop %v2446
      %v2448 = vmul.f32 %v2350, 1.442695
      %v2449 = vpow.pop %v2448
      %v2450 = vmul.f32 %v2351, 1.442695
      %v2451 = vpow.pop %v2450
      %v2452 = vmul.f32 %v2352, 1.442695
      %v2453 = vpow.pop %v2452
      %v2454 = vmul.f32 %v2353, 1.442695
      %v2455 = vpow.pop %v2454
      %v2456 = vmul.f32 %v2354, 1.442695
      %v2457 = vpow.pop %v2456
      %v2458 = vmul.f32 %v2355, 1.442695
      %v2459 = vpow.pop %v2458
      %v2460 = vmul.f32 %v2356, 1.442695
      %v2461 = vpow.pop %v2460
      %v2462 = vmul.f32 %v2357, 1.442695
      %v2463 = vpow.pop %v2462
      %v2464 = vmul.f32 %v2358, 1.442695
      %v2465 = vpow.pop %v2464
      %v2466 = vmul.f32 %v2359, 1.442695
      %v2467 = vpow.pop %v2466
      %v2468 = vmul.f32 %v2360, 1.442695
      %v2469 = vpow.pop %v2468
      %v2470 = vmul.f32 %v2361, 1.442695
      %v2471 = vpow.pop %v2470
      %v2472 = vmul.f32 %v2362, 1.442695
      %v2473 = vpow.pop %v2472
      %v2474 = vmul.f32 %v2363, 1.442695
      %v2475 = vpow.pop %v2474
      %v2476 = vmul.f32 %v2364, 1.442695
      %v2477 = vpow.pop %v2476
      %v2478 = vmul.f32 %v2365, 1.442695
      %v2479 = vpow.pop %v2478
      %v2480 = vmul.f32 %v2366, 1.442695
      %v2481 = vpow.pop %v2480
      %v2482 = vmul.f32 %v2367, 1.442695
      %v2483 = vpow.pop %v2482
      %v2484 = vmul.f32 %v2368, 1.442695
      %v2485 = vpow.pop %v2484
      %v2486 = vmul.f32 %v2369, 1.442695
      %v2487 = vpow.pop %v2486
      %v2488 = vmul.f32 %v2370, 1.442695
      %v2489 = vpow.pop %v2488
      %v2490 = vmul.f32 %v2371, 1.442695
      %v2491 = vpow.pop %v2490
      %v2492 = vmul.f32 %v2372, 1.442695
      %v2493 = vpow.pop %v2492
      %v2494 = vmul.f32 %v2373, 1.442695
      %v2495 = vpow.pop %v2494
      %v2496 = vmul.f32 %v2374, 1.442695
      %v2497 = vpow.pop %v2496
      %v2498 = vmul.f32 %v2375, 1.442695
      %v2499 = vpow.pop %v2498
      %v2500 = vmul.f32 %v2376, 1.442695
      %v2501 = vpow.pop %v2500
      %v2502 = vmul.f32 %v2377, 1.442695
      %v2503 = vpow.pop %v2502
      %v2504 = vmul.f32 %v2378, 1.442695
      %v2505 = vpow.pop %v2504
      %v2506 = vmul.f32 %v2379, 1.442695
      %v2507 = vpow.pop %v2506
      %v2508 = vadd.f32 %v2381, %v2383
      %2509 = vadd.xlane.f32.xlu0 %v2508
      %v2510 = vpop.xlane.xlu0 %2509
      %v2511 = vadd.f32 %v2385, %v2387
      %2512 = vadd.xlane.f32.xlu0 %v2511
      %v2513 = vpop.xlane.xlu0 %2512
      %v2514 = vadd.f32 %v2389, %v2391
      %2515 = vadd.xlane.f32.xlu0 %v2514
      %v2516 = vpop.xlane.xlu0 %2515
      %v2517 = vadd.f32 %v2393, %v2395
      %2518 = vadd.xlane.f32.xlu0 %v2517
      %v2519 = vpop.xlane.xlu0 %2518
      %v2520 = vadd.f32 %v2397, %v2399
      %2521 = vadd.xlane.f32.xlu0 %v2520
      %v2522 = vpop.xlane.xlu0 %2521
      %v2523 = vadd.f32 %v2401, %v2403
      %2524 = vadd.xlane.f32.xlu0 %v2523
      %v2525 = vpop.xlane.xlu0 %2524
      %v2526 = vadd.f32 %v2405, %v2407
      %2527 = vadd.xlane.f32.xlu0 %v2526
      %v2528 = vpop.xlane.xlu0 %2527
      %v2529 = vadd.f32 %v2409, %v2411
      %2530 = vadd.xlane.f32.xlu0 %v2529
      %v2531 = vpop.xlane.xlu0 %2530
      %v2532 = vadd.f32 %v2413, %v2415
      %2533 = vadd.xlane.f32.xlu0 %v2532
      %v2534 = vpop.xlane.xlu0 %2533
      %v2535 = vadd.f32 %v2417, %v2419
      %2536 = vadd.xlane.f32.xlu0 %v2535
      %v2537 = vpop.xlane.xlu0 %2536
      %v2538 = vadd.f32 %v2421, %v2423
      %2539 = vadd.xlane.f32.xlu0 %v2538
      %v2540 = vpop.xlane.xlu0 %2539
      %v2541 = vadd.f32 %v2425, %v2427
      %2542 = vadd.xlane.f32.xlu0 %v2541
      %v2543 = vpop.xlane.xlu0 %2542
      %v2544 = vadd.f32 %v2429, %v2431
      %2545 = vadd.xlane.f32.xlu0 %v2544
      %v2546 = vpop.xlane.xlu0 %2545
      %v2547 = vadd.f32 %v2433, %v2435
      %2548 = vadd.xlane.f32.xlu0 %v2547
      %v2549 = vpop.xlane.xlu0 %2548
      %v2550 = vadd.f32 %v2437, %v2439
      %2551 = vadd.xlane.f32.xlu0 %v2550
      %v2552 = vpop.xlane.xlu0 %2551
      %v2553 = vadd.f32 %v2441, %v2443
      %2554 = vadd.xlane.f32.xlu0 %v2553
      %v2555 = vpop.xlane.xlu0 %2554
      %v2556 = vadd.f32 %v2445, %v2447
      %2557 = vadd.xlane.f32.xlu0 %v2556
      %v2558 = vpop.xlane.xlu0 %2557
      %v2559 = vadd.f32 %v2449, %v2451
      %2560 = vadd.xlane.f32.xlu0 %v2559
      %v2561 = vpop.xlane.xlu0 %2560
      %v2562 = vadd.f32 %v2453, %v2455
      %2563 = vadd.xlane.f32.xlu0 %v2562
      %v2564 = vpop.xlane.xlu0 %2563
      %v2565 = vadd.f32 %v2457, %v2459
      %2566 = vadd.xlane.f32.xlu0 %v2565
      %v2567 = vpop.xlane.xlu0 %2566
      %v2568 = vadd.f32 %v2461, %v2463
      %2569 = vadd.xlane.f32.xlu0 %v2568
      %v2570 = vpop.xlane.xlu0 %2569
      %v2571 = vadd.f32 %v2465, %v2467
      %2572 = vadd.xlane.f32.xlu0 %v2571
      %v2573 = vpop.xlane.xlu0 %2572
      %v2574 = vadd.f32 %v2469, %v2471
      %2575 = vadd.xlane.f32.xlu0 %v2574
      %v2576 = vpop.xlane.xlu0 %2575
      %v2577 = vadd.f32 %v2473, %v2475
      %2578 = vadd.xlane.f32.xlu0 %v2577
      %v2579 = vpop.xlane.xlu0 %2578
      %v2580 = vadd.f32 %v2477, %v2479
      %2581 = vadd.xlane.f32.xlu0 %v2580
      %v2582 = vpop.xlane.xlu0 %2581
      %v2583 = vadd.f32 %v2481, %v2483
      %2584 = vadd.xlane.f32.xlu0 %v2583
      %v2585 = vpop.xlane.xlu0 %2584
      %v2586 = vadd.f32 %v2485, %v2487
      %2587 = vadd.xlane.f32.xlu0 %v2586
      %v2588 = vpop.xlane.xlu0 %2587
      %v2589 = vadd.f32 %v2489, %v2491
      %2590 = vadd.xlane.f32.xlu0 %v2589
      %v2591 = vpop.xlane.xlu0 %2590
      %v2592 = vadd.f32 %v2493, %v2495
      %2593 = vadd.xlane.f32.xlu0 %v2592
      %v2594 = vpop.xlane.xlu0 %2593
      %v2595 = vadd.f32 %v2497, %v2499
      %2596 = vadd.xlane.f32.xlu0 %v2595
      %v2597 = vpop.xlane.xlu0 %2596
      %v2598 = vadd.f32 %v2501, %v2503
      %2599 = vadd.xlane.f32.xlu0 %v2598
      %v2600 = vpop.xlane.xlu0 %2599
      %v2601 = vadd.f32 %v2505, %v2507
      %2602 = vadd.xlane.f32.xlu0 %v2601
      %v2603 = vpop.xlane.xlu0 %2602
      %v2604 = vrcp.pop %v2510
      %v2605 = vmul.f32 %v2381, %v2604
      %v2606 = vmul.f32 %v2383, %v2604
      %v2607 = vrcp.pop %v2513
      %v2608 = vmul.f32 %v2385, %v2607
      %v2609 = vmul.f32 %v2387, %v2607
      %v2610 = vrcp.pop %v2516
      %v2611 = vmul.f32 %v2389, %v2610
      %v2612 = vmul.f32 %v2391, %v2610
      %v2613 = vrcp.pop %v2519
      %v2614 = vmul.f32 %v2393, %v2613
      %v2615 = vmul.f32 %v2395, %v2613
      %v2616 = vrcp.pop %v2522
      %v2617 = vmul.f32 %v2397, %v2616
      %v2618 = vmul.f32 %v2399, %v2616
      %v2619 = vrcp.pop %v2525
      %v2620 = vmul.f32 %v2401, %v2619
      %v2621 = vmul.f32 %v2403, %v2619
      %v2622 = vrcp.pop %v2528
      %v2623 = vmul.f32 %v2405, %v2622
      %v2624 = vmul.f32 %v2407, %v2622
      %v2625 = vrcp.pop %v2531
      %v2626 = vmul.f32 %v2409, %v2625
      %v2627 = vmul.f32 %v2411, %v2625
      %v2628 = vrcp.pop %v2534
      %v2629 = vmul.f32 %v2413, %v2628
      %v2630 = vmul.f32 %v2415, %v2628
      %v2631 = vrcp.pop %v2537
      %v2632 = vmul.f32 %v2417, %v2631
      %v2633 = vmul.f32 %v2419, %v2631
      %v2634 = vrcp.pop %v2540
      %v2635 = vmul.f32 %v2421, %v2634
      %v2636 = vmul.f32 %v2423, %v2634
      %v2637 = vrcp.pop %v2543
      %v2638 = vmul.f32 %v2425, %v2637
      %v2639 = vmul.f32 %v2427, %v2637
      %v2640 = vrcp.pop %v2546
      %v2641 = vmul.f32 %v2429, %v2640
      %v2642 = vmul.f32 %v2431, %v2640
      %v2643 = vrcp.pop %v2549
      %v2644 = vmul.f32 %v2433, %v2643
      %v2645 = vmul.f32 %v2435, %v2643
      %v2646 = vrcp.pop %v2552
      %v2647 = vmul.f32 %v2437, %v2646
      %v2648 = vmul.f32 %v2439, %v2646
      %v2649 = vrcp.pop %v2555
      %v2650 = vmul.f32 %v2441, %v2649
      %v2651 = vmul.f32 %v2443, %v2649
      %v2652 = vrcp.pop %v2558
      %v2653 = vmul.f32 %v2445, %v2652
      %v2654 = vmul.f32 %v2447, %v2652
      %v2655 = vrcp.pop %v2561
      %v2656 = vmul.f32 %v2449, %v2655
      %v2657 = vmul.f32 %v2451, %v2655
      %v2658 = vrcp.pop %v2564
      %v2659 = vmul.f32 %v2453, %v2658
      %v2660 = vmul.f32 %v2455, %v2658
      %v2661 = vrcp.pop %v2567
      %v2662 = vmul.f32 %v2457, %v2661
      %v2663 = vmul.f32 %v2459, %v2661
      %v2664 = vrcp.pop %v2570
      %v2665 = vmul.f32 %v2461, %v2664
      %v2666 = vmul.f32 %v2463, %v2664
      %v2667 = vrcp.pop %v2573
      %v2668 = vmul.f32 %v2465, %v2667
      %v2669 = vmul.f32 %v2467, %v2667
      %v2670 = vrcp.pop %v2576
      %v2671 = vmul.f32 %v2469, %v2670
      %v2672 = vmul.f32 %v2471, %v2670
      %v2673 = vrcp.pop %v2579
      %v2674 = vmul.f32 %v2473, %v2673
      %v2675 = vmul.f32 %v2475, %v2673
      %v2676 = vrcp.pop %v2582
      %v2677 = vmul.f32 %v2477, %v2676
      %v2678 = vmul.f32 %v2479, %v2676
      %v2679 = vrcp.pop %v2585
      %v2680 = vmul.f32 %v2481, %v2679
      %v2681 = vmul.f32 %v2483, %v2679
      %v2682 = vrcp.pop %v2588
      %v2683 = vmul.f32 %v2485, %v2682
      %v2684 = vmul.f32 %v2487, %v2682
      %v2685 = vrcp.pop %v2591
      %v2686 = vmul.f32 %v2489, %v2685
      %v2687 = vmul.f32 %v2491, %v2685
      %v2688 = vrcp.pop %v2594
      %v2689 = vmul.f32 %v2493, %v2688
      %v2690 = vmul.f32 %v2495, %v2688
      %v2691 = vrcp.pop %v2597
      %v2692 = vmul.f32 %v2497, %v2691
      %v2693 = vmul.f32 %v2499, %v2691
      %v2694 = vrcp.pop %v2600
      %v2695 = vmul.f32 %v2501, %v2694
      %v2696 = vmul.f32 %v2503, %v2694
      %v2697 = vrcp.pop %v2603
      %v2698 = vmul.f32 %v2505, %v2697
      %v2699 = vmul.f32 %v2507, %v2697
      %2700 = vmatprep.subr.mxu0 %v2606
      %2701 = vmatpush1.xpose.msra.mxu0 %v2605
      %2702 = vmatprep.subr.mxu0 %v2609
      %2703 = vmatpush1.xpose.msra.mxu0 %v2608
      %2704 = vmatprep.subr.mxu0 %v2612
      %2705 = vmatpush1.xpose.msra.mxu0 %v2611
      %2706 = vmatprep.subr.mxu0 %v2615
      %2707 = vmatpush1.xpose.msra.mxu0 %v2614
      %2708 = vmatprep.subr.mxu0 %v2618
      %2709 = vmatpush1.xpose.msra.mxu0 %v2617
      %2710 = vmatprep.subr.mxu0 %v2621
      %2711 = vmatpush1.xpose.msra.mxu0 %v2620
      %2712 = vmatprep.subr.mxu0 %v2624
      %2713 = vmatpush1.xpose.msra.mxu0 %v2623
      %2714 = vmatprep.subr.mxu0 %v2627
      %2715 = vmatpush1.xpose.msra.mxu0 %v2626
      %2716 = vmatprep.subr.mxu0 %v2630
      %2717 = vmatpush1.xpose.msra.mxu0 %v2629
      %2718 = vmatprep.subr.mxu0 %v2633
      %2719 = vmatpush1.xpose.msra.mxu0 %v2632
      %2720 = vmatprep.subr.mxu0 %v2636
      %2721 = vmatpush1.xpose.msra.mxu0 %v2635
      %2722 = vmatprep.subr.mxu0 %v2639
      %2723 = vmatpush1.xpose.msra.mxu0 %v2638
      %2724 = vmatprep.subr.mxu0 %v2642
      %2725 = vmatpush1.xpose.msra.mxu0 %v2641
      %2726 = vmatprep.subr.mxu0 %v2645
      %2727 = vmatpush1.xpose.msra.mxu0 %v2644
      %2728 = vmatprep.subr.mxu0 %v2648
      %2729 = vmatpush1.xpose.msra.mxu0 %v2647
      %2730 = vmatprep.subr.mxu0 %v2651
      %2731 = vmatpush1.xpose.msra.mxu0 %v2650
      %2732 = vmatprep.subr.mxu0 %v2654
      %2733 = vmatpush1.xpose.msra.mxu0 %v2653
      %2734 = vmatprep.subr.mxu0 %v2657
      %2735 = vmatpush1.xpose.msra.mxu0 %v2656
      %2736 = vmatprep.subr.mxu0 %v2660
      %2737 = vmatpush1.xpose.msra.mxu0 %v2659
      %2738 = vmatprep.subr.mxu0 %v2663
      %2739 = vmatpush1.xpose.msra.mxu0 %v2662
      %2740 = vmatprep.subr.mxu0 %v2666
      %2741 = vmatpush1.xpose.msra.mxu0 %v2665
      %2742 = vmatprep.subr.mxu0 %v2669
      %2743 = vmatpush1.xpose.msra.mxu0 %v2668
      %2744 = vmatprep.subr.mxu0 %v2672
      %2745 = vmatpush1.xpose.msra.mxu0 %v2671
      %2746 = vmatprep.subr.mxu0 %v2675
      %2747 = vmatpush1.xpose.msra.mxu0 %v2674
      %2748 = vmatprep.subr.mxu0 %v2678
      %2749 = vmatpush1.xpose.msra.mxu0 %v2677
      %2750 = vmatprep.subr.mxu0 %v2681
      %2751 = vmatpush1.xpose.msra.mxu0 %v2680
      %2752 = vmatprep.subr.mxu0 %v2684
      %2753 = vmatpush1.xpose.msra.mxu0 %v2683
      %2754 = vmatprep.subr.mxu0 %v2687
      %2755 = vmatpush1.xpose.msra.mxu0 %v2686
      %2756 = vmatprep.subr.mxu0 %v2690
      %2757 = vmatpush1.xpose.msra.mxu0 %v2689
      %2758 = vmatprep.subr.mxu0 %v2693
      %2759 = vmatpush1.xpose.msra.mxu0 %v2692
      %2760 = vmatprep.subr.mxu0 %v2696
      %2761 = vmatpush1.xpose.msra.mxu0 %v2695
      %2762 = vmatprep.subr.mxu0 %v2699
      %2763 = vmatpush1.xpose.msra.mxu0 %v2698
      %2764 = vmatprep.mubr.f32.mxu0 %v684
      %2765 = vmatmul.mubr.f32.gmra.mrb[0].mxu0 %v682
      %v2766 = vpop.f32.mrb[0].mxu0
      %v2767 = vadd.f32 0.0, %v2766
      %v2768 = vpop.f32.mrb[0].mxu0
      %v2769 = vadd.f32 0.0, %v2768
      %2770 = vmatprep.mubr.f32.mxu0 %v690
      %2771 = vmatmul.mubr.f32.gmra.mrb[0].mxu0 %v688
      %v2772 = vpop.f32.mrb[0].mxu0
      %v2773 = vadd.f32 0.0, %v2772
      %v2774 = vpop.f32.mrb[0].mxu0
      %v2775 = vadd.f32 0.0, %v2774
      %2776 = vmatprep.mubr.f32.mxu0 %v696
      %2777 = vmatmul.mubr.f32.gmra.mrb[0].mxu0 %v694
      %v2778 = vpop.f32.mrb[0].mxu0
      %v2779 = vadd.f32 0.0, %v2778
      %v2780 = vpop.f32.mrb[0].mxu0
      %v2781 = vadd.f32 0.0, %v2780
      %2782 = vmatprep.mubr.f32.mxu0 %v702
      %2783 = vmatmul.mubr.f32.gmra.mrb[0].mxu0 %v700
      %v2784 = vpop.f32.mrb[0].mxu0
      %v2785 = vadd.f32 0.0, %v2784
      %v2786 = vpop.f32.mrb[0].mxu0
      %v2787 = vadd.f32 0.0, %v2786
      %2788 = vdwg.mxu0
      %2789 = vxpose.xlu0.b32.start [1/16] %v514, 128
      %2790 = vxpose.xlu0.b32.cont [2/16] %v520, 128
      %2791 = vxpose.xlu0.b32.cont [3/16] %v526, 128
      %2792 = vxpose.xlu0.b32.cont [4/16] %v532, 128
      %2793 = vxpose.xlu0.b32.cont [5/16] 0.0, 128
      %2794 = vxpose.xlu0.b32.cont [6/16] 0.0, 128
      %2795 = vxpose.xlu0.b32.cont [7/16] 0.0, 128
      %2796 = vxpose.xlu0.b32.cont [8/16] 0.0, 128
      %2797 = vxpose.xlu0.b32.cont [9/16] 0.0, 128
      %2798 = vxpose.xlu0.b32.cont [10/16] 0.0, 128
      %2799 = vxpose.xlu0.b32.cont [11/16] 0.0, 128
      %2800 = vxpose.xlu0.b32.cont [12/16] 0.0, 128
      %2801 = vxpose.xlu0.b32.cont [13/16] 0.0, 128
      %2802 = vxpose.xlu0.b32.cont [14/16] 0.0, 128
      %2803 = vxpose.xlu0.b32.cont [15/16] 0.0, 128
      %2804 = vxpose.xlu0.b32.end [16/16] 0.0, 128
      %v2805 = vpop.trf.xlu0
      %v2806 = vpop.trf.xlu0
      %v2807 = vpop.trf.xlu0
      %v2808 = vpop.trf.xlu0
      %v2809 = vpop.trf.xlu0
      %v2810 = vpop.trf.xlu0
      %v2811 = vpop.trf.xlu0
      %v2812 = vpop.trf.xlu0
      %v2813 = vpop.trf.xlu0
      %v2814 = vpop.trf.xlu0
      %v2815 = vpop.trf.xlu0
      %v2816 = vpop.trf.xlu0
      %v2817 = vpop.trf.xlu0
      %v2818 = vpop.trf.xlu0
      %v2819 = vpop.trf.xlu0
      %v2820 = vpop.trf.xlu0
      %2821 = vxpose.xlu0.b32.start [1/16] %v516, 128
      %2822 = vxpose.xlu0.b32.cont [2/16] %v522, 128
      %2823 = vxpose.xlu0.b32.cont [3/16] %v528, 128
      %2824 = vxpose.xlu0.b32.cont [4/16] %v534, 128
      %2825 = vxpose.xlu0.b32.cont [5/16] 0.0, 128
      %2826 = vxpose.xlu0.b32.cont [6/16] 0.0, 128
      %2827 = vxpose.xlu0.b32.cont [7/16] 0.0, 128
      %2828 = vxpose.xlu0.b32.cont [8/16] 0.0, 128
      %2829 = vxpose.xlu0.b32.cont [9/16] 0.0, 128
      %2830 = vxpose.xlu0.b32.cont [10/16] 0.0, 128
      %2831 = vxpose.xlu0.b32.cont [11/16] 0.0, 128
      %2832 = vxpose.xlu0.b32.cont [12/16] 0.0, 128
      %2833 = vxpose.xlu0.b32.cont [13/16] 0.0, 128
      %2834 = vxpose.xlu0.b32.cont [14/16] 0.0, 128
      %2835 = vxpose.xlu0.b32.cont [15/16] 0.0, 128
      %2836 = vxpose.xlu0.b32.end [16/16] 0.0, 128
      %v2837 = vpop.trf.xlu0
      %v2838 = vpop.trf.xlu0
      %v2839 = vpop.trf.xlu0
      %v2840 = vpop.trf.xlu0
      %v2841 = vpop.trf.xlu0
      %v2842 = vpop.trf.xlu0
      %v2843 = vpop.trf.xlu0
      %v2844 = vpop.trf.xlu0
      %v2845 = vpop.trf.xlu0
      %v2846 = vpop.trf.xlu0
      %v2847 = vpop.trf.xlu0
      %v2848 = vpop.trf.xlu0
      %v2849 = vpop.trf.xlu0
      %v2850 = vpop.trf.xlu0
      %v2851 = vpop.trf.xlu0
      %v2852 = vpop.trf.xlu0
      %v2853 = vmul.f32 %v2805, 0.17677669
      %v2854 = vmul.f32 %v2806, 0.17677669
      %v2855 = vmul.f32 %v2807, 0.17677669
      %v2856 = vmul.f32 %v2808, 0.17677669
      %v2857 = vmul.f32 %v2809, 0.17677669
      %v2858 = vmul.f32 %v2810, 0.17677669
      %v2859 = vmul.f32 %v2811, 0.17677669
      %v2860 = vmul.f32 %v2812, 0.17677669
      %v2861 = vmul.f32 %v2813, 0.17677669
      %v2862 = vmul.f32 %v2814, 0.17677669
      %v2863 = vmul.f32 %v2815, 0.17677669
      %v2864 = vmul.f32 %v2816, 0.17677669
      %v2865 = vmul.f32 %v2817, 0.17677669
      %v2866 = vmul.f32 %v2818, 0.17677669
      %v2867 = vmul.f32 %v2819, 0.17677669
      %v2868 = vmul.f32 %v2820, 0.17677669
      %v2869 = vmul.f32 %v2837, 0.17677669
      %v2870 = vmul.f32 %v2838, 0.17677669
      %v2871 = vmul.f32 %v2839, 0.17677669
      %v2872 = vmul.f32 %v2840, 0.17677669
      %v2873 = vmul.f32 %v2841, 0.17677669
      %v2874 = vmul.f32 %v2842, 0.17677669
      %v2875 = vmul.f32 %v2843, 0.17677669
      %v2876 = vmul.f32 %v2844, 0.17677669
      %v2877 = vmul.f32 %v2845, 0.17677669
      %v2878 = vmul.f32 %v2846, 0.17677669
      %v2879 = vmul.f32 %v2847, 0.17677669
      %v2880 = vmul.f32 %v2848, 0.17677669
      %v2881 = vmul.f32 %v2849, 0.17677669
      %v2882 = vmul.f32 %v2850, 0.17677669
      %v2883 = vmul.f32 %v2851, 0.17677669
      %v2884 = vmul.f32 %v2852, 0.17677669
      %v2886 = vsel %vm848, %v2853, 0
      %v2889 = vsel %vm848, %v2854, 0
      %v2892 = vsel %vm848, %v2855, 0
      %v2895 = vsel %vm848, %v2856, 0
      %v2898 = vsel %vm848, %v2857, 0
      %v2901 = vsel %vm848, %v2858, 0
      %v2904 = vsel %vm848, %v2859, 0
      %v2907 = vsel %vm848, %v2860, 0
      %v2910 = vsel %vm848, %v2861, 0
      %v2913 = vsel %vm848, %v2862, 0
      %v2916 = vsel %vm848, %v2863, 0
      %v2919 = vsel %vm848, %v2864, 0
      %v2922 = vsel %vm848, %v2865, 0
      %v2925 = vsel %vm848, %v2866, 0
      %v2928 = vsel %vm848, %v2867, 0
      %v2931 = vsel %vm848, %v2868, 0
      %v2934 = vsel %vm848, %v2869, 0
      %v2937 = vsel %vm848, %v2870, 0
      %v2940 = vsel %vm848, %v2871, 0
      %v2943 = vsel %vm848, %v2872, 0
      %v2946 = vsel %vm848, %v2873, 0
      %v2949 = vsel %vm848, %v2874, 0
      %v2952 = vsel %vm848, %v2875, 0
      %v2955 = vsel %vm848, %v2876, 0
      %v2958 = vsel %vm848, %v2877, 0
      %v2961 = vsel %vm848, %v2878, 0
      %v2964 = vsel %vm848, %v2879, 0
      %v2967 = vsel %vm848, %v2880, 0
      %v2970 = vsel %vm848, %v2881, 0
      %v2973 = vsel %vm848, %v2882, 0
      %v2976 = vsel %vm848, %v2883, 0
      %v2979 = vsel %vm848, %v2884, 0
      %2981 = vmatprep.subr.mxu0 %v612
      %2982 = vmatpush1.msra.mxu0 %v610
      %2983 = vmatprep.subr.mxu0 %v618
      %2984 = vmatpush1.msra.mxu0 %v616
      %2985 = vmatprep.subr.mxu0 %v624
      %2986 = vmatpush1.msra.mxu0 %v622
      %2987 = vmatprep.subr.mxu0 %v630
      %2988 = vmatpush1.msra.mxu0 %v628
      %2989 = vmatprep.subr.mxu0 0.0
      %2990 = vmatpush1.msra.mxu0 0.0
      %2991 = vmatprep.subr.mxu0 0.0
      %2992 = vmatpush1.msra.mxu0 0.0
      %2993 = vmatprep.subr.mxu0 0.0
      %2994 = vmatpush1.msra.mxu0 0.0
      %2995 = vmatprep.subr.mxu0 0.0
      %2996 = vmatpush1.msra.mxu0 0.0
      %2997 = vmatprep.subr.mxu0 0.0
      %2998 = vmatpush1.msra.mxu0 0.0
      %2999 = vmatprep.subr.mxu0 0.0
      %3000 = vmatpush1.msra.mxu0 0.0
      %3001 = vmatprep.subr.mxu0 0.0
      %3002 = vmatpush1.msra.mxu0 0.0
      %3003 = vmatprep.subr.mxu0 0.0
      %3004 = vmatpush1.msra.mxu0 0.0
      %3005 = vmatprep.subr.mxu0 0.0
      %3006 = vmatpush1.msra.mxu0 0.0
      %3007 = vmatprep.subr.mxu0 0.0
      %3008 = vmatpush1.msra.mxu0 0.0
      %3009 = vmatprep.subr.mxu0 0.0
      %3010 = vmatpush1.msra.mxu0 0.0
      %3011 = vmatprep.subr.mxu0 0.0
      %3012 = vmatpush1.msra.mxu0 0.0
      %3013 = vmatprep.subr.mxu0 0.0
      %3014 = vmatpush1.msra.mxu0 0.0
      %3015 = vmatprep.subr.mxu0 0.0
      %3016 = vmatpush1.msra.mxu0 0.0
      %3017 = vmatprep.subr.mxu0 0.0
      %3018 = vmatpush1.msra.mxu0 0.0
      %3019 = vmatprep.subr.mxu0 0.0
      %3020 = vmatpush1.msra.mxu0 0.0
      %3021 = vmatprep.subr.mxu0 0.0
      %3022 = vmatpush1.msra.mxu0 0.0
      %3023 = vmatprep.subr.mxu0 0.0
      %3024 = vmatpush1.msra.mxu0 0.0
      %3025 = vmatprep.subr.mxu0 0.0
      %3026 = vmatpush1.msra.mxu0 0.0
      %3027 = vmatprep.subr.mxu0 0.0
      %3028 = vmatpush1.msra.mxu0 0.0
      %3029 = vmatprep.subr.mxu0 0.0
      %3030 = vmatpush1.msra.mxu0 0.0
      %3031 = vmatprep.subr.mxu0 0.0
      %3032 = vmatpush1.msra.mxu0 0.0
      %3033 = vmatprep.subr.mxu0 0.0
      %3034 = vmatpush1.msra.mxu0 0.0
      %3035 = vmatprep.subr.mxu0 0.0
      %3036 = vmatpush1.msra.mxu0 0.0
      %3037 = vmatprep.subr.mxu0 0.0
      %3038 = vmatpush1.msra.mxu0 0.0
      %3039 = vmatprep.subr.mxu0 0.0
      %3040 = vmatpush1.msra.mxu0 0.0
      %3041 = vmatprep.subr.mxu0 0.0
      %3042 = vmatpush1.msra.mxu0 0.0
      %3043 = vmatprep.subr.mxu0 0.0
      %3044 = vmatpush1.msra.mxu0 0.0
      %3045 = vmatprep.mubr.f32.mxu0 0.0
      %3046 = vmatmul.mubr.f32.gmra.mrb[0].mxu0 %v2886
      %v3047 = vpop.f32.mrb[0].mxu0
      %v3048 = vadd.f32 0.0, %v3047
      %v3049 = vpop.f32.mrb[0].mxu0
      %v3050 = vadd.f32 0.0, %v3049
      %3051 = vmatprep.mubr.f32.mxu0 0.0
      %3052 = vmatmul.mubr.f32.gmra.mrb[0].mxu0 %v2889
      %v3053 = vpop.f32.mrb[0].mxu0
      %v3054 = vadd.f32 0.0, %v3053
      %v3055 = vpop.f32.mrb[0].mxu0
      %v3056 = vadd.f32 0.0, %v3055
      %3057 = vmatprep.mubr.f32.mxu0 0.0
      %3058 = vmatmul.mubr.f32.gmra.mrb[0].mxu0 %v2892
      %v3059 = vpop.f32.mrb[0].mxu0
      %v3060 = vadd.f32 0.0, %v3059
      %v3061 = vpop.f32.mrb[0].mxu0
      %v3062 = vadd.f32 0.0, %v3061
      %3063 = vmatprep.mubr.f32.mxu0 0.0
      %3064 = vmatmul.mubr.f32.gmra.mrb[0].mxu0 %v2895
      %v3065 = vpop.f32.mrb[0].mxu0
      %v3066 = vadd.f32 0.0, %v3065
      %v3067 = vpop.f32.mrb[0].mxu0
      %v3068 = vadd.f32 0.0, %v3067
      %3069 = vmatprep.mubr.f32.mxu0 0.0
      %3070 = vmatmul.mubr.f32.gmra.mrb[0].mxu0 %v2898
      %v3071 = vpop.f32.mrb[0].mxu0
      %v3072 = vadd.f32 0.0, %v3071
      %v3073 = vpop.f32.mrb[0].mxu0
      %v3074 = vadd.f32 0.0, %v3073
      %3075 = vmatprep.mubr.f32.mxu0 0.0
      %3076 = vmatmul.mubr.f32.gmra.mrb[0].mxu0 %v2901
      %v3077 = vpop.f32.mrb[0].mxu0
      %v3078 = vadd.f32 0.0, %v3077
      %v3079 = vpop.f32.mrb[0].mxu0
      %v3080 = vadd.f32 0.0, %v3079
      %3081 = vmatprep.mubr.f32.mxu0 0.0
      %3082 = vmatmul.mubr.f32.gmra.mrb[0].mxu0 %v2904
      %v3083 = vpop.f32.mrb[0].mxu0
      %v3084 = vadd.f32 0.0, %v3083
      %v3085 = vpop.f32.mrb[0].mxu0
      %v3086 = vadd.f32 0.0, %v3085
      %3087 = vmatprep.mubr.f32.mxu0 0.0
      %3088 = vmatmul.mubr.f32.gmra.mrb[0].mxu0 %v2907
      %v3089 = vpop.f32.mrb[0].mxu0
      %v3090 = vadd.f32 0.0, %v3089
      %v3091 = vpop.f32.mrb[0].mxu0
      %v3092 = vadd.f32 0.0, %v3091
      %3093 = vmatprep.mubr.f32.mxu0 0.0
      %3094 = vmatmul.mubr.f32.gmra.mrb[0].mxu0 %v2910
      %v3095 = vpop.f32.mrb[0].mxu0
      %v3096 = vadd.f32 0.0, %v3095
      %v3097 = vpop.f32.mrb[0].mxu0
      %v3098 = vadd.f32 0.0, %v3097
      %3099 = vmatprep.mubr.f32.mxu0 0.0
      %3100 = vmatmul.mubr.f32.gmra.mrb[0].mxu0 %v2913
      %v3101 = vpop.f32.mrb[0].mxu0
      %v3102 = vadd.f32 0.0, %v3101
      %v3103 = vpop.f32.mrb[0].mxu0
      %v3104 = vadd.f32 0.0, %v3103
      %3105 = vmatprep.mubr.f32.mxu0 0.0
      %3106 = vmatmul.mubr.f32.gmra.mrb[0].mxu0 %v2916
      %v3107 = vpop.f32.mrb[0].mxu0
      %v3108 = vadd.f32 0.0, %v3107
      %v3109 = vpop.f32.mrb[0].mxu0
      %v3110 = vadd.f32 0.0, %v3109
      %3111 = vmatprep.mubr.f32.mxu0 0.0
      %3112 = vmatmul.mubr.f32.gmra.mrb[0].mxu0 %v2919
      %v3113 = vpop.f32.mrb[0].mxu0
      %v3114 = vadd.f32 0.0, %v3113
      %v3115 = vpop.f32.mrb[0].mxu0
      %v3116 = vadd.f32 0.0, %v3115
      %3117 = vmatprep.mubr.f32.mxu0 0.0
      %3118 = vmatmul.mubr.f32.gmra.mrb[0].mxu0 %v2922
      %v3119 = vpop.f32.mrb[0].mxu0
      %v3120 = vadd.f32 0.0, %v3119
      %v3121 = vpop.f32.mrb[0].mxu0
      %v3122 = vadd.f32 0.0, %v3121
      %3123 = vmatprep.mubr.f32.mxu0 0.0
      %3124 = vmatmul.mubr.f32.gmra.mrb[0].mxu0 %v2925
      %v3125 = vpop.f32.mrb[0].mxu0
      %v3126 = vadd.f32 0.0, %v3125
      %v3127 = vpop.f32.mrb[0].mxu0
      %v3128 = vadd.f32 0.0, %v3127
      %3129 = vmatprep.mubr.f32.mxu0 0.0
      %3130 = vmatmul.mubr.f32.gmra.mrb[0].mxu0 %v2928
      %v3131 = vpop.f32.mrb[0].mxu0
      %v3132 = vadd.f32 0.0, %v3131
      %v3133 = vpop.f32.mrb[0].mxu0
      %v3134 = vadd.f32 0.0, %v3133
      %3135 = vmatprep.mubr.f32.mxu0 0.0
      %3136 = vmatmul.mubr.f32.gmra.mrb[0].mxu0 %v2931
      %v3137 = vpop.f32.mrb[0].mxu0
      %v3138 = vadd.f32 0.0, %v3137
      %v3139 = vpop.f32.mrb[0].mxu0
      %v3140 = vadd.f32 0.0, %v3139
      %3141 = vmatprep.mubr.f32.mxu0 0.0
      %3142 = vmatmul.mubr.f32.gmra.mrb[0].mxu0 %v2934
      %v3143 = vpop.f32.mrb[0].mxu0
      %v3144 = vadd.f32 0.0, %v3143
      %v3145 = vpop.f32.mrb[0].mxu0
      %v3146 = vadd.f32 0.0, %v3145
      %3147 = vmatprep.mubr.f32.mxu0 0.0
      %3148 = vmatmul.mubr.f32.gmra.mrb[0].mxu0 %v2937
      %v3149 = vpop.f32.mrb[0].mxu0
      %v3150 = vadd.f32 0.0, %v3149
      %v3151 = vpop.f32.mrb[0].mxu0
      %v3152 = vadd.f32 0.0, %v3151
      %3153 = vmatprep.mubr.f32.mxu0 0.0
      %3154 = vmatmul.mubr.f32.gmra.mrb[0].mxu0 %v2940
      %v3155 = vpop.f32.mrb[0].mxu0
      %v3156 = vadd.f32 0.0, %v3155
      %v3157 = vpop.f32.mrb[0].mxu0
      %v3158 = vadd.f32 0.0, %v3157
      %3159 = vmatprep.mubr.f32.mxu0 0.0
      %3160 = vmatmul.mubr.f32.gmra.mrb[0].mxu0 %v2943
      %v3161 = vpop.f32.mrb[0].mxu0
      %v3162 = vadd.f32 0.0, %v3161
      %v3163 = vpop.f32.mrb[0].mxu0
      %v3164 = vadd.f32 0.0, %v3163
      %3165 = vmatprep.mubr.f32.mxu0 0.0
      %3166 = vmatmul.mubr.f32.gmra.mrb[0].mxu0 %v2946
      %v3167 = vpop.f32.mrb[0].mxu0
      %v3168 = vadd.f32 0.0, %v3167
      %v3169 = vpop.f32.mrb[0].mxu0
      %v3170 = vadd.f32 0.0, %v3169
      %3171 = vmatprep.mubr.f32.mxu0 0.0
      %3172 = vmatmul.mubr.f32.gmra.mrb[0].mxu0 %v2949
      %v3173 = vpop.f32.mrb[0].mxu0
      %v3174 = vadd.f32 0.0, %v3173
      %v3175 = vpop.f32.mrb[0].mxu0
      %v3176 = vadd.f32 0.0, %v3175
      %3177 = vmatprep.mubr.f32.mxu0 0.0
      %3178 = vmatmul.mubr.f32.gmra.mrb[0].mxu0 %v2952
      %v3179 = vpop.f32.mrb[0].mxu0
      %v3180 = vadd.f32 0.0, %v3179
      %v3181 = vpop.f32.mrb[0].mxu0
      %v3182 = vadd.f32 0.0, %v3181
      %3183 = vmatprep.mubr.f32.mxu0 0.0
      %3184 = vmatmul.mubr.f32.gmra.mrb[0].mxu0 %v2955
      %v3185 = vpop.f32.mrb[0].mxu0
      %v3186 = vadd.f32 0.0, %v3185
      %v3187 = vpop.f32.mrb[0].mxu0
      %v3188 = vadd.f32 0.0, %v3187
      %3189 = vmatprep.mubr.f32.mxu0 0.0
      %3190 = vmatmul.mubr.f32.gmra.mrb[0].mxu0 %v2958
      %v3191 = vpop.f32.mrb[0].mxu0
      %v3192 = vadd.f32 0.0, %v3191
      %v3193 = vpop.f32.mrb[0].mxu0
      %v3194 = vadd.f32 0.0, %v3193
      %3195 = vmatprep.mubr.f32.mxu0 0.0
      %3196 = vmatmul.mubr.f32.gmra.mrb[0].mxu0 %v2961
      %v3197 = vpop.f32.mrb[0].mxu0
      %v3198 = vadd.f32 0.0, %v3197
      %v3199 = vpop.f32.mrb[0].mxu0
      %v3200 = vadd.f32 0.0, %v3199
      %3201 = vmatprep.mubr.f32.mxu0 0.0
      %3202 = vmatmul.mubr.f32.gmra.mrb[0].mxu0 %v2964
      %v3203 = vpop.f32.mrb[0].mxu0
      %v3204 = vadd.f32 0.0, %v3203
      %v3205 = vpop.f32.mrb[0].mxu0
      %v3206 = vadd.f32 0.0, %v3205
      %3207 = vmatprep.mubr.f32.mxu0 0.0
      %3208 = vmatmul.mubr.f32.gmra.mrb[0].mxu0 %v2967
      %v3209 = vpop.f32.mrb[0].mxu0
      %v3210 = vadd.f32 0.0, %v3209
      %v3211 = vpop.f32.mrb[0].mxu0
      %v3212 = vadd.f32 0.0, %v3211
      %3213 = vmatprep.mubr.f32.mxu0 0.0
      %3214 = vmatmul.mubr.f32.gmra.mrb[0].mxu0 %v2970
      %v3215 = vpop.f32.mrb[0].mxu0
      %v3216 = vadd.f32 0.0, %v3215
      %v3217 = vpop.f32.mrb[0].mxu0
      %v3218 = vadd.f32 0.0, %v3217
      %3219 = vmatprep.mubr.f32.mxu0 0.0
      %3220 = vmatmul.mubr.f32.gmra.mrb[0].mxu0 %v2973
      %v3221 = vpop.f32.mrb[0].mxu0
      %v3222 = vadd.f32 0.0, %v3221
      %v3223 = vpop.f32.mrb[0].mxu0
      %v3224 = vadd.f32 0.0, %v3223
      %3225 = vmatprep.mubr.f32.mxu0 0.0
      %3226 = vmatmul.mubr.f32.gmra.mrb[0].mxu0 %v2976
      %v3227 = vpop.f32.mrb[0].mxu0
      %v3228 = vadd.f32 0.0, %v3227
      %v3229 = vpop.f32.mrb[0].mxu0
      %v3230 = vadd.f32 0.0, %v3229
      %3231 = vmatprep.mubr.f32.mxu0 0.0
      %3232 = vmatmul.mubr.f32.gmra.mrb[0].mxu0 %v2979
      %v3233 = vpop.f32.mrb[0].mxu0
      %v3234 = vadd.f32 0.0, %v3233
      %v3235 = vpop.f32.mrb[0].mxu0
      %v3236 = vadd.f32 0.0, %v3235
      %3237 = vdwg.mxu0
      %v3238 = vmax.f32 %v3048, %v3050
      %3239 = vmax.xlane.f32.xlu0 %v3238
      %v3240 = vpop.xlane.xlu0 %3239
      %v3241 = vmax.f32 %v3054, %v3056
      %3242 = vmax.xlane.f32.xlu0 %v3241
      %v3243 = vpop.xlane.xlu0 %3242
      %v3244 = vmax.f32 %v3060, %v3062
      %3245 = vmax.xlane.f32.xlu0 %v3244
      %v3246 = vpop.xlane.xlu0 %3245
      %v3247 = vmax.f32 %v3066, %v3068
      %3248 = vmax.xlane.f32.xlu0 %v3247
      %v3249 = vpop.xlane.xlu0 %3248
      %v3250 = vmax.f32 %v3072, %v3074
      %3251 = vmax.xlane.f32.xlu0 %v3250
      %v3252 = vpop.xlane.xlu0 %3251
      %v3253 = vmax.f32 %v3078, %v3080
      %3254 = vmax.xlane.f32.xlu0 %v3253
      %v3255 = vpop.xlane.xlu0 %3254
      %v3256 = vmax.f32 %v3084, %v3086
      %3257 = vmax.xlane.f32.xlu0 %v3256
      %v3258 = vpop.xlane.xlu0 %3257
      %v3259 = vmax.f32 %v3090, %v3092
      %3260 = vmax.xlane.f32.xlu0 %v3259
      %v3261 = vpop.xlane.xlu0 %3260
      %v3262 = vmax.f32 %v3096, %v3098
      %3263 = vmax.xlane.f32.xlu0 %v3262
      %v3264 = vpop.xlane.xlu0 %3263
      %v3265 = vmax.f32 %v3102, %v3104
      %3266 = vmax.xlane.f32.xlu0 %v3265
      %v3267 = vpop.xlane.xlu0 %3266
      %v3268 = vmax.f32 %v3108, %v3110
      %3269 = vmax.xlane.f32.xlu0 %v3268
      %v3270 = vpop.xlane.xlu0 %3269
      %v3271 = vmax.f32 %v3114, %v3116
      %3272 = vmax.xlane.f32.xlu0 %v3271
      %v3273 = vpop.xlane.xlu0 %3272
      %v3274 = vmax.f32 %v3120, %v3122
      %3275 = vmax.xlane.f32.xlu0 %v3274
      %v3276 = vpop.xlane.xlu0 %3275
      %v3277 = vmax.f32 %v3126, %v3128
      %3278 = vmax.xlane.f32.xlu0 %v3277
      %v3279 = vpop.xlane.xlu0 %3278
      %v3280 = vmax.f32 %v3132, %v3134
      %3281 = vmax.xlane.f32.xlu0 %v3280
      %v3282 = vpop.xlane.xlu0 %3281
      %v3283 = vmax.f32 %v3138, %v3140
      %3284 = vmax.xlane.f32.xlu0 %v3283
      %v3285 = vpop.xlane.xlu0 %3284
      %v3286 = vmax.f32 %v3144, %v3146
      %3287 = vmax.xlane.f32.xlu0 %v3286
      %v3288 = vpop.xlane.xlu0 %3287
      %v3289 = vmax.f32 %v3150, %v3152
      %3290 = vmax.xlane.f32.xlu0 %v3289
      %v3291 = vpop.xlane.xlu0 %3290
      %v3292 = vmax.f32 %v3156, %v3158
      %3293 = vmax.xlane.f32.xlu0 %v3292
      %v3294 = vpop.xlane.xlu0 %3293
      %v3295 = vmax.f32 %v3162, %v3164
      %3296 = vmax.xlane.f32.xlu0 %v3295
      %v3297 = vpop.xlane.xlu0 %3296
      %v3298 = vmax.f32 %v3168, %v3170
      %3299 = vmax.xlane.f32.xlu0 %v3298
      %v3300 = vpop.xlane.xlu0 %3299
      %v3301 = vmax.f32 %v3174, %v3176
      %3302 = vmax.xlane.f32.xlu0 %v3301
      %v3303 = vpop.xlane.xlu0 %3302
      %v3304 = vmax.f32 %v3180, %v3182
      %3305 = vmax.xlane.f32.xlu0 %v3304
      %v3306 = vpop.xlane.xlu0 %3305
      %v3307 = vmax.f32 %v3186, %v3188
      %3308 = vmax.xlane.f32.xlu0 %v3307
      %v3309 = vpop.xlane.xlu0 %3308
      %v3310 = vmax.f32 %v3192, %v3194
      %3311 = vmax.xlane.f32.xlu0 %v3310
      %v3312 = vpop.xlane.xlu0 %3311
      %v3313 = vmax.f32 %v3198, %v3200
      %3314 = vmax.xlane.f32.xlu0 %v3313
      %v3315 = vpop.xlane.xlu0 %3314
      %v3316 = vmax.f32 %v3204, %v3206
      %3317 = vmax.xlane.f32.xlu0 %v3316
      %v3318 = vpop.xlane.xlu0 %3317
      %v3319 = vmax.f32 %v3210, %v3212
      %3320 = vmax.xlane.f32.xlu0 %v3319
      %v3321 = vpop.xlane.xlu0 %3320
      %v3322 = vmax.f32 %v3216, %v3218
      %3323 = vmax.xlane.f32.xlu0 %v3322
      %v3324 = vpop.xlane.xlu0 %3323
      %v3325 = vmax.f32 %v3222, %v3224
      %3326 = vmax.xlane.f32.xlu0 %v3325
      %v3327 = vpop.xlane.xlu0 %3326
      %v3328 = vmax.f32 %v3228, %v3230
      %3329 = vmax.xlane.f32.xlu0 %v3328
      %v3330 = vpop.xlane.xlu0 %3329
      %v3331 = vmax.f32 %v3234, %v3236
      %3332 = vmax.xlane.f32.xlu0 %v3331
      %v3333 = vpop.xlane.xlu0 %3332
      %v3334 = vsub.f32 %v3048, %v3240
      %v3335 = vsub.f32 %v3050, %v3240
      %v3336 = vsub.f32 %v3054, %v3243
      %v3337 = vsub.f32 %v3056, %v3243
      %v3338 = vsub.f32 %v3060, %v3246
      %v3339 = vsub.f32 %v3062, %v3246
      %v3340 = vsub.f32 %v3066, %v3249
      %v3341 = vsub.f32 %v3068, %v3249
      %v3342 = vsub.f32 %v3072, %v3252
      %v3343 = vsub.f32 %v3074, %v3252
      %v3344 = vsub.f32 %v3078, %v3255
      %v3345 = vsub.f32 %v3080, %v3255
      %v3346 = vsub.f32 %v3084, %v3258
      %v3347 = vsub.f32 %v3086, %v3258
      %v3348 = vsub.f32 %v3090, %v3261
      %v3349 = vsub.f32 %v3092, %v3261
      %v3350 = vsub.f32 %v3096, %v3264
      %v3351 = vsub.f32 %v3098, %v3264
      %v3352 = vsub.f32 %v3102, %v3267
      %v3353 = vsub.f32 %v3104, %v3267
      %v3354 = vsub.f32 %v3108, %v3270
      %v3355 = vsub.f32 %v3110, %v3270
      %v3356 = vsub.f32 %v3114, %v3273
      %v3357 = vsub.f32 %v3116, %v3273
      %v3358 = vsub.f32 %v3120, %v3276
      %v3359 = vsub.f32 %v3122, %v3276
      %v3360 = vsub.f32 %v3126, %v3279
      %v3361 = vsub.f32 %v3128, %v3279
      %v3362 = vsub.f32 %v3132, %v3282
      %v3363 = vsub.f32 %v3134, %v3282
      %v3364 = vsub.f32 %v3138, %v3285
      %v3365 = vsub.f32 %v3140, %v3285
      %v3366 = vsub.f32 %v3144, %v3288
      %v3367 = vsub.f32 %v3146, %v3288
      %v3368 = vsub.f32 %v3150, %v3291
      %v3369 = vsub.f32 %v3152, %v3291
      %v3370 = vsub.f32 %v3156, %v3294
      %v3371 = vsub.f32 %v3158, %v3294
      %v3372 = vsub.f32 %v3162, %v3297
      %v3373 = vsub.f32 %v3164, %v3297
      %v3374 = vsub.f32 %v3168, %v3300
      %v3375 = vsub.f32 %v3170, %v3300
      %v3376 = vsub.f32 %v3174, %v3303
      %v3377 = vsub.f32 %v3176, %v3303
      %v3378 = vsub.f32 %v3180, %v3306
      %v3379 = vsub.f32 %v3182, %v3306
      %v3380 = vsub.f32 %v3186, %v3309
      %v3381 = vsub.f32 %v3188, %v3309
      %v3382 = vsub.f32 %v3192, %v3312
      %v3383 = vsub.f32 %v3194, %v3312
      %v3384 = vsub.f32 %v3198, %v3315
      %v3385 = vsub.f32 %v3200, %v3315
      %v3386 = vsub.f32 %v3204, %v3318
      %v3387 = vsub.f32 %v3206, %v3318
      %v3388 = vsub.f32 %v3210, %v3321
      %v3389 = vsub.f32 %v3212, %v3321
      %v3390 = vsub.f32 %v3216, %v3324
      %v3391 = vsub.f32 %v3218, %v3324
      %v3392 = vsub.f32 %v3222, %v3327
      %v3393 = vsub.f32 %v3224, %v3327
      %v3394 = vsub.f32 %v3228, %v3330
      %v3395 = vsub.f32 %v3230, %v3330
      %v3396 = vsub.f32 %v3234, %v3333
      %v3397 = vsub.f32 %v3236, %v3333
      %v3398 = vmul.f32 %v3334, 1.442695
      %v3399 = vpow.pop %v3398
      %v3400 = vmul.f32 %v3335, 1.442695
      %v3401 = vpow.pop %v3400
      %v3402 = vmul.f32 %v3336, 1.442695
      %v3403 = vpow.pop %v3402
      %v3404 = vmul.f32 %v3337, 1.442695
      %v3405 = vpow.pop %v3404
      %v3406 = vmul.f32 %v3338, 1.442695
      %v3407 = vpow.pop %v3406
      %v3408 = vmul.f32 %v3339, 1.442695
      %v3409 = vpow.pop %v3408
      %v3410 = vmul.f32 %v3340, 1.442695
      %v3411 = vpow.pop %v3410
      %v3412 = vmul.f32 %v3341, 1.442695
      %v3413 = vpow.pop %v3412
      %v3414 = vmul.f32 %v3342, 1.442695
      %v3415 = vpow.pop %v3414
      %v3416 = vmul.f32 %v3343, 1.442695
      %v3417 = vpow.pop %v3416
      %v3418 = vmul.f32 %v3344, 1.442695
      %v3419 = vpow.pop %v3418
      %v3420 = vmul.f32 %v3345, 1.442695
      %v3421 = vpow.pop %v3420
      %v3422 = vmul.f32 %v3346, 1.442695
      %v3423 = vpow.pop %v3422
      %v3424 = vmul.f32 %v3347, 1.442695
      %v3425 = vpow.pop %v3424
      %v3426 = vmul.f32 %v3348, 1.442695
      %v3427 = vpow.pop %v3426
      %v3428 = vmul.f32 %v3349, 1.442695
      %v3429 = vpow.pop %v3428
      %v3430 = vmul.f32 %v3350, 1.442695
      %v3431 = vpow.pop %v3430
      %v3432 = vmul.f32 %v3351, 1.442695
      %v3433 = vpow.pop %v3432
      %v3434 = vmul.f32 %v3352, 1.442695
      %v3435 = vpow.pop %v3434
      %v3436 = vmul.f32 %v3353, 1.442695
      %v3437 = vpow.pop %v3436
      %v3438 = vmul.f32 %v3354, 1.442695
      %v3439 = vpow.pop %v3438
      %v3440 = vmul.f32 %v3355, 1.442695
      %v3441 = vpow.pop %v3440
      %v3442 = vmul.f32 %v3356, 1.442695
      %v3443 = vpow.pop %v3442
      %v3444 = vmul.f32 %v3357, 1.442695
      %v3445 = vpow.pop %v3444
      %v3446 = vmul.f32 %v3358, 1.442695
      %v3447 = vpow.pop %v3446
      %v3448 = vmul.f32 %v3359, 1.442695
      %v3449 = vpow.pop %v3448
      %v3450 = vmul.f32 %v3360, 1.442695
      %v3451 = vpow.pop %v3450
      %v3452 = vmul.f32 %v3361, 1.442695
      %v3453 = vpow.pop %v3452
      %v3454 = vmul.f32 %v3362, 1.442695
      %v3455 = vpow.pop %v3454
      %v3456 = vmul.f32 %v3363, 1.442695
      %v3457 = vpow.pop %v3456
      %v3458 = vmul.f32 %v3364, 1.442695
      %v3459 = vpow.pop %v3458
      %v3460 = vmul.f32 %v3365, 1.442695
      %v3461 = vpow.pop %v3460
      %v3462 = vmul.f32 %v3366, 1.442695
      %v3463 = vpow.pop %v3462
      %v3464 = vmul.f32 %v3367, 1.442695
      %v3465 = vpow.pop %v3464
      %v3466 = vmul.f32 %v3368, 1.442695
      %v3467 = vpow.pop %v3466
      %v3468 = vmul.f32 %v3369, 1.442695
      %v3469 = vpow.pop %v3468
      %v3470 = vmul.f32 %v3370, 1.442695
      %v3471 = vpow.pop %v3470
      %v3472 = vmul.f32 %v3371, 1.442695
      %v3473 = vpow.pop %v3472
      %v3474 = vmul.f32 %v3372, 1.442695
      %v3475 = vpow.pop %v3474
      %v3476 = vmul.f32 %v3373, 1.442695
      %v3477 = vpow.pop %v3476
      %v3478 = vmul.f32 %v3374, 1.442695
      %v3479 = vpow.pop %v3478
      %v3480 = vmul.f32 %v3375, 1.442695
      %v3481 = vpow.pop %v3480
      %v3482 = vmul.f32 %v3376, 1.442695
      %v3483 = vpow.pop %v3482
      %v3484 = vmul.f32 %v3377, 1.442695
      %v3485 = vpow.pop %v3484
      %v3486 = vmul.f32 %v3378, 1.442695
      %v3487 = vpow.pop %v3486
      %v3488 = vmul.f32 %v3379, 1.442695
      %v3489 = vpow.pop %v3488
      %v3490 = vmul.f32 %v3380, 1.442695
      %v3491 = vpow.pop %v3490
      %v3492 = vmul.f32 %v3381, 1.442695
      %v3493 = vpow.pop %v3492
      %v3494 = vmul.f32 %v3382, 1.442695
      %v3495 = vpow.pop %v3494
      %v3496 = vmul.f32 %v3383, 1.442695
      %v3497 = vpow.pop %v3496
      %v3498 = vmul.f32 %v3384, 1.442695
      %v3499 = vpow.pop %v3498
      %v3500 = vmul.f32 %v3385, 1.442695
      %v3501 = vpow.pop %v3500
      %v3502 = vmul.f32 %v3386, 1.442695
      %v3503 = vpow.pop %v3502
      %v3504 = vmul.f32 %v3387, 1.442695
      %v3505 = vpow.pop %v3504
      %v3506 = vmul.f32 %v3388, 1.442695
      %v3507 = vpow.pop %v3506
      %v3508 = vmul.f32 %v3389, 1.442695
      %v3509 = vpow.pop %v3508
      %v3510 = vmul.f32 %v3390, 1.442695
      %v3511 = vpow.pop %v3510
      %v3512 = vmul.f32 %v3391, 1.442695
      %v3513 = vpow.pop %v3512
      %v3514 = vmul.f32 %v3392, 1.442695
      %v3515 = vpow.pop %v3514
      %v3516 = vmul.f32 %v3393, 1.442695
      %v3517 = vpow.pop %v3516
      %v3518 = vmul.f32 %v3394, 1.442695
      %v3519 = vpow.pop %v3518
      %v3520 = vmul.f32 %v3395, 1.442695
      %v3521 = vpow.pop %v3520
      %v3522 = vmul.f32 %v3396, 1.442695
      %v3523 = vpow.pop %v3522
      %v3524 = vmul.f32 %v3397, 1.442695
      %v3525 = vpow.pop %v3524
      %v3526 = vadd.f32 %v3399, %v3401
      %3527 = vadd.xlane.f32.xlu0 %v3526
      %v3528 = vpop.xlane.xlu0 %3527
      %v3529 = vadd.f32 %v3403, %v3405
      %3530 = vadd.xlane.f32.xlu0 %v3529
      %v3531 = vpop.xlane.xlu0 %3530
      %v3532 = vadd.f32 %v3407, %v3409
      %3533 = vadd.xlane.f32.xlu0 %v3532
      %v3534 = vpop.xlane.xlu0 %3533
      %v3535 = vadd.f32 %v3411, %v3413
      %3536 = vadd.xlane.f32.xlu0 %v3535
      %v3537 = vpop.xlane.xlu0 %3536
      %v3538 = vadd.f32 %v3415, %v3417
      %3539 = vadd.xlane.f32.xlu0 %v3538
      %v3540 = vpop.xlane.xlu0 %3539
      %v3541 = vadd.f32 %v3419, %v3421
      %3542 = vadd.xlane.f32.xlu0 %v3541
      %v3543 = vpop.xlane.xlu0 %3542
      %v3544 = vadd.f32 %v3423, %v3425
      %3545 = vadd.xlane.f32.xlu0 %v3544
      %v3546 = vpop.xlane.xlu0 %3545
      %v3547 = vadd.f32 %v3427, %v3429
      %3548 = vadd.xlane.f32.xlu0 %v3547
      %v3549 = vpop.xlane.xlu0 %3548
      %v3550 = vadd.f32 %v3431, %v3433
      %3551 = vadd.xlane.f32.xlu0 %v3550
      %v3552 = vpop.xlane.xlu0 %3551
      %v3553 = vadd.f32 %v3435, %v3437
      %3554 = vadd.xlane.f32.xlu0 %v3553
      %v3555 = vpop.xlane.xlu0 %3554
      %v3556 = vadd.f32 %v3439, %v3441
      %3557 = vadd.xlane.f32.xlu0 %v3556
      %v3558 = vpop.xlane.xlu0 %3557
      %v3559 = vadd.f32 %v3443, %v3445
      %3560 = vadd.xlane.f32.xlu0 %v3559
      %v3561 = vpop.xlane.xlu0 %3560
      %v3562 = vadd.f32 %v3447, %v3449
      %3563 = vadd.xlane.f32.xlu0 %v3562
      %v3564 = vpop.xlane.xlu0 %3563
      %v3565 = vadd.f32 %v3451, %v3453
      %3566 = vadd.xlane.f32.xlu0 %v3565
      %v3567 = vpop.xlane.xlu0 %3566
      %v3568 = vadd.f32 %v3455, %v3457
      %3569 = vadd.xlane.f32.xlu0 %v3568
      %v3570 = vpop.xlane.xlu0 %3569
      %v3571 = vadd.f32 %v3459, %v3461
      %3572 = vadd.xlane.f32.xlu0 %v3571
      %v3573 = vpop.xlane.xlu0 %3572
      %v3574 = vadd.f32 %v3463, %v3465
      %3575 = vadd.xlane.f32.xlu0 %v3574
      %v3576 = vpop.xlane.xlu0 %3575
      %v3577 = vadd.f32 %v3467, %v3469
      %3578 = vadd.xlane.f32.xlu0 %v3577
      %v3579 = vpop.xlane.xlu0 %3578
      %v3580 = vadd.f32 %v3471, %v3473
      %3581 = vadd.xlane.f32.xlu0 %v3580
      %v3582 = vpop.xlane.xlu0 %3581
      %v3583 = vadd.f32 %v3475, %v3477
      %3584 = vadd.xlane.f32.xlu0 %v3583
      %v3585 = vpop.xlane.xlu0 %3584
      %v3586 = vadd.f32 %v3479, %v3481
      %3587 = vadd.xlane.f32.xlu0 %v3586
      %v3588 = vpop.xlane.xlu0 %3587
      %v3589 = vadd.f32 %v3483, %v3485
      %3590 = vadd.xlane.f32.xlu0 %v3589
      %v3591 = vpop.xlane.xlu0 %3590
      %v3592 = vadd.f32 %v3487, %v3489
      %3593 = vadd.xlane.f32.xlu0 %v3592
      %v3594 = vpop.xlane.xlu0 %3593
      %v3595 = vadd.f32 %v3491, %v3493
      %3596 = vadd.xlane.f32.xlu0 %v3595
      %v3597 = vpop.xlane.xlu0 %3596
      %v3598 = vadd.f32 %v3495, %v3497
      %3599 = vadd.xlane.f32.xlu0 %v3598
      %v3600 = vpop.xlane.xlu0 %3599
      %v3601 = vadd.f32 %v3499, %v3501
      %3602 = vadd.xlane.f32.xlu0 %v3601
      %v3603 = vpop.xlane.xlu0 %3602
      %v3604 = vadd.f32 %v3503, %v3505
      %3605 = vadd.xlane.f32.xlu0 %v3604
      %v3606 = vpop.xlane.xlu0 %3605
      %v3607 = vadd.f32 %v3507, %v3509
      %3608 = vadd.xlane.f32.xlu0 %v3607
      %v3609 = vpop.xlane.xlu0 %3608
      %v3610 = vadd.f32 %v3511, %v3513
      %3611 = vadd.xlane.f32.xlu0 %v3610
      %v3612 = vpop.xlane.xlu0 %3611
      %v3613 = vadd.f32 %v3515, %v3517
      %3614 = vadd.xlane.f32.xlu0 %v3613
      %v3615 = vpop.xlane.xlu0 %3614
      %v3616 = vadd.f32 %v3519, %v3521
      %3617 = vadd.xlane.f32.xlu0 %v3616
      %v3618 = vpop.xlane.xlu0 %3617
      %v3619 = vadd.f32 %v3523, %v3525
      %3620 = vadd.xlane.f32.xlu0 %v3619
      %v3621 = vpop.xlane.xlu0 %3620
      %v3622 = vrcp.pop %v3528
      %v3623 = vmul.f32 %v3399, %v3622
      %v3624 = vmul.f32 %v3401, %v3622
      %v3625 = vrcp.pop %v3531
      %v3626 = vmul.f32 %v3403, %v3625
      %v3627 = vmul.f32 %v3405, %v3625
      %v3628 = vrcp.pop %v3534
      %v3629 = vmul.f32 %v3407, %v3628
      %v3630 = vmul.f32 %v3409, %v3628
      %v3631 = vrcp.pop %v3537
      %v3632 = vmul.f32 %v3411, %v3631
      %v3633 = vmul.f32 %v3413, %v3631
      %v3634 = vrcp.pop %v3540
      %v3635 = vmul.f32 %v3415, %v3634
      %v3636 = vmul.f32 %v3417, %v3634
      %v3637 = vrcp.pop %v3543
      %v3638 = vmul.f32 %v3419, %v3637
      %v3639 = vmul.f32 %v3421, %v3637
      %v3640 = vrcp.pop %v3546
      %v3641 = vmul.f32 %v3423, %v3640
      %v3642 = vmul.f32 %v3425, %v3640
      %v3643 = vrcp.pop %v3549
      %v3644 = vmul.f32 %v3427, %v3643
      %v3645 = vmul.f32 %v3429, %v3643
      %v3646 = vrcp.pop %v3552
      %v3647 = vmul.f32 %v3431, %v3646
      %v3648 = vmul.f32 %v3433, %v3646
      %v3649 = vrcp.pop %v3555
      %v3650 = vmul.f32 %v3435, %v3649
      %v3651 = vmul.f32 %v3437, %v3649
      %v3652 = vrcp.pop %v3558
      %v3653 = vmul.f32 %v3439, %v3652
      %v3654 = vmul.f32 %v3441, %v3652
      %v3655 = vrcp.pop %v3561
      %v3656 = vmul.f32 %v3443, %v3655
      %v3657 = vmul.f32 %v3445, %v3655
      %v3658 = vrcp.pop %v3564
      %v3659 = vmul.f32 %v3447, %v3658
      %v3660 = vmul.f32 %v3449, %v3658
      %v3661 = vrcp.pop %v3567
      %v3662 = vmul.f32 %v3451, %v3661
      %v3663 = vmul.f32 %v3453, %v3661
      %v3664 = vrcp.pop %v3570
      %v3665 = vmul.f32 %v3455, %v3664
      %v3666 = vmul.f32 %v3457, %v3664
      %v3667 = vrcp.pop %v3573
      %v3668 = vmul.f32 %v3459, %v3667
      %v3669 = vmul.f32 %v3461, %v3667
      %v3670 = vrcp.pop %v3576
      %v3671 = vmul.f32 %v3463, %v3670
      %v3672 = vmul.f32 %v3465, %v3670
      %v3673 = vrcp.pop %v3579
      %v3674 = vmul.f32 %v3467, %v3673
      %v3675 = vmul.f32 %v3469, %v3673
      %v3676 = vrcp.pop %v3582
      %v3677 = vmul.f32 %v3471, %v3676
      %v3678 = vmul.f32 %v3473, %v3676
      %v3679 = vrcp.pop %v3585
      %v3680 = vmul.f32 %v3475, %v3679
      %v3681 = vmul.f32 %v3477, %v3679
      %v3682 = vrcp.pop %v3588
      %v3683 = vmul.f32 %v3479, %v3682
      %v3684 = vmul.f32 %v3481, %v3682
      %v3685 = vrcp.pop %v3591
      %v3686 = vmul.f32 %v3483, %v3685
      %v3687 = vmul.f32 %v3485, %v3685
      %v3688 = vrcp.pop %v3594
      %v3689 = vmul.f32 %v3487, %v3688
      %v3690 = vmul.f32 %v3489, %v3688
      %v3691 = vrcp.pop %v3597
      %v3692 = vmul.f32 %v3491, %v3691
      %v3693 = vmul.f32 %v3493, %v3691
      %v3694 = vrcp.pop %v3600
      %v3695 = vmul.f32 %v3495, %v3694
      %v3696 = vmul.f32 %v3497, %v3694
      %v3697 = vrcp.pop %v3603
      %v3698 = vmul.f32 %v3499, %v3697
      %v3699 = vmul.f32 %v3501, %v3697
      %v3700 = vrcp.pop %v3606
      %v3701 = vmul.f32 %v3503, %v3700
      %v3702 = vmul.f32 %v3505, %v3700
      %v3703 = vrcp.pop %v3609
      %v3704 = vmul.f32 %v3507, %v3703
      %v3705 = vmul.f32 %v3509, %v3703
      %v3706 = vrcp.pop %v3612
      %v3707 = vmul.f32 %v3511, %v3706
      %v3708 = vmul.f32 %v3513, %v3706
      %v3709 = vrcp.pop %v3615
      %v3710 = vmul.f32 %v3515, %v3709
      %v3711 = vmul.f32 %v3517, %v3709
      %v3712 = vrcp.pop %v3618
      %v3713 = vmul.f32 %v3519, %v3712
      %v3714 = vmul.f32 %v3521, %v3712
      %v3715 = vrcp.pop %v3621
      %v3716 = vmul.f32 %v3523, %v3715
      %v3717 = vmul.f32 %v3525, %v3715
      %3718 = vmatprep.subr.mxu0 %v3624
      %3719 = vmatpush1.xpose.msra.mxu0 %v3623
      %3720 = vmatprep.subr.mxu0 %v3627
      %3721 = vmatpush1.xpose.msra.mxu0 %v3626
      %3722 = vmatprep.subr.mxu0 %v3630
      %3723 = vmatpush1.xpose.msra.mxu0 %v3629
      %3724 = vmatprep.subr.mxu0 %v3633
      %3725 = vmatpush1.xpose.msra.mxu0 %v3632
      %3726 = vmatprep.subr.mxu0 %v3636
      %3727 = vmatpush1.xpose.msra.mxu0 %v3635
      %3728 = vmatprep.subr.mxu0 %v3639
      %3729 = vmatpush1.xpose.msra.mxu0 %v3638
      %3730 = vmatprep.subr.mxu0 %v3642
      %3731 = vmatpush1.xpose.msra.mxu0 %v3641
      %3732 = vmatprep.subr.mxu0 %v3645
      %3733 = vmatpush1.xpose.msra.mxu0 %v3644
      %3734 = vmatprep.subr.mxu0 %v3648
      %3735 = vmatpush1.xpose.msra.mxu0 %v3647
      %3736 = vmatprep.subr.mxu0 %v3651
      %3737 = vmatpush1.xpose.msra.mxu0 %v3650
      %3738 = vmatprep.subr.mxu0 %v3654
      %3739 = vmatpush1.xpose.msra.mxu0 %v3653
      %3740 = vmatprep.subr.mxu0 %v3657
      %3741 = vmatpush1.xpose.msra.mxu0 %v3656
      %3742 = vmatprep.subr.mxu0 %v3660
      %3743 = vmatpush1.xpose.msra.mxu0 %v3659
      %3744 = vmatprep.subr.mxu0 %v3663
      %3745 = vmatpush1.xpose.msra.mxu0 %v3662
      %3746 = vmatprep.subr.mxu0 %v3666
      %3747 = vmatpush1.xpose.msra.mxu0 %v3665
      %3748 = vmatprep.subr.mxu0 %v3669
      %3749 = vmatpush1.xpose.msra.mxu0 %v3668
      %3750 = vmatprep.subr.mxu0 %v3672
      %3751 = vmatpush1.xpose.msra.mxu0 %v3671
      %3752 = vmatprep.subr.mxu0 %v3675
      %3753 = vmatpush1.xpose.msra.mxu0 %v3674
      %3754 = vmatprep.subr.mxu0 %v3678
      %3755 = vmatpush1.xpose.msra.mxu0 %v3677
      %3756 = vmatprep.subr.mxu0 %v3681
      %3757 = vmatpush1.xpose.msra.mxu0 %v3680
      %3758 = vmatprep.subr.mxu0 %v3684
      %3759 = vmatpush1.xpose.msra.mxu0 %v3683
      %3760 = vmatprep.subr.mxu0 %v3687
      %3761 = vmatpush1.xpose.msra.mxu0 %v3686
      %3762 = vmatprep.subr.mxu0 %v3690
      %3763 = vmatpush1.xpose.msra.mxu0 %v3689
      %3764 = vmatprep.subr.mxu0 %v3693
      %3765 = vmatpush1.xpose.msra.mxu0 %v3692
      %3766 = vmatprep.subr.mxu0 %v3696
      %3767 = vmatpush1.xpose.msra.mxu0 %v3695
      %3768 = vmatprep.subr.mxu0 %v3699
      %3769 = vmatpush1.xpose.msra.mxu0 %v3698
      %3770 = vmatprep.subr.mxu0 %v3702
      %3771 = vmatpush1.xpose.msra.mxu0 %v3701
      %3772 = vmatprep.subr.mxu0 %v3705
      %3773 = vmatpush1.xpose.msra.mxu0 %v3704
      %3774 = vmatprep.subr.mxu0 %v3708
      %3775 = vmatpush1.xpose.msra.mxu0 %v3707
      %3776 = vmatprep.subr.mxu0 %v3711
      %3777 = vmatpush1.xpose.msra.mxu0 %v3710
      %3778 = vmatprep.subr.mxu0 %v3714
      %3779 = vmatpush1.xpose.msra.mxu0 %v3713
      %3780 = vmatprep.subr.mxu0 %v3717
      %3781 = vmatpush1.xpose.msra.mxu0 %v3716
      %3782 = vmatprep.mubr.f32.mxu0 %v708
      %3783 = vmatmul.mubr.f32.gmra.mrb[0].mxu0 %v706
      %v3784 = vpop.f32.mrb[0].mxu0
      %v3785 = vadd.f32 0.0, %v3784
      %v3786 = vpop.f32.mrb[0].mxu0
      %v3787 = vadd.f32 0.0, %v3786
      %3788 = vmatprep.mubr.f32.mxu0 %v714
      %3789 = vmatmul.mubr.f32.gmra.mrb[0].mxu0 %v712
      %v3790 = vpop.f32.mrb[0].mxu0
      %v3791 = vadd.f32 0.0, %v3790
      %v3792 = vpop.f32.mrb[0].mxu0
      %v3793 = vadd.f32 0.0, %v3792
      %3794 = vmatprep.mubr.f32.mxu0 %v720
      %3795 = vmatmul.mubr.f32.gmra.mrb[0].mxu0 %v718
      %v3796 = vpop.f32.mrb[0].mxu0
      %v3797 = vadd.f32 0.0, %v3796
      %v3798 = vpop.f32.mrb[0].mxu0
      %v3799 = vadd.f32 0.0, %v3798
      %3800 = vmatprep.mubr.f32.mxu0 %v726
      %3801 = vmatmul.mubr.f32.gmra.mrb[0].mxu0 %v724
      %v3802 = vpop.f32.mrb[0].mxu0
      %v3803 = vadd.f32 0.0, %v3802
      %v3804 = vpop.f32.mrb[0].mxu0
      %v3805 = vadd.f32 0.0, %v3804
      %3806 = vdwg.mxu0
      %3807 = vxpose.xlu0.b32.start [1/16] %v538, 128
      %3808 = vxpose.xlu0.b32.cont [2/16] %v544, 128
      %3809 = vxpose.xlu0.b32.cont [3/16] %v550, 128
      %3810 = vxpose.xlu0.b32.cont [4/16] %v556, 128
      %3811 = vxpose.xlu0.b32.cont [5/16] 0.0, 128
      %3812 = vxpose.xlu0.b32.cont [6/16] 0.0, 128
      %3813 = vxpose.xlu0.b32.cont [7/16] 0.0, 128
      %3814 = vxpose.xlu0.b32.cont [8/16] 0.0, 128
      %3815 = vxpose.xlu0.b32.cont [9/16] 0.0, 128
      %3816 = vxpose.xlu0.b32.cont [10/16] 0.0, 128
      %3817 = vxpose.xlu0.b32.cont [11/16] 0.0, 128
      %3818 = vxpose.xlu0.b32.cont [12/16] 0.0, 128
      %3819 = vxpose.xlu0.b32.cont [13/16] 0.0, 128
      %3820 = vxpose.xlu0.b32.cont [14/16] 0.0, 128
      %3821 = vxpose.xlu0.b32.cont [15/16] 0.0, 128
      %3822 = vxpose.xlu0.b32.end [16/16] 0.0, 128
      %v3823 = vpop.trf.xlu0
      %v3824 = vpop.trf.xlu0
      %v3825 = vpop.trf.xlu0
      %v3826 = vpop.trf.xlu0
      %v3827 = vpop.trf.xlu0
      %v3828 = vpop.trf.xlu0
      %v3829 = vpop.trf.xlu0
      %v3830 = vpop.trf.xlu0
      %v3831 = vpop.trf.xlu0
      %v3832 = vpop.trf.xlu0
      %v3833 = vpop.trf.xlu0
      %v3834 = vpop.trf.xlu0
      %v3835 = vpop.trf.xlu0
      %v3836 = vpop.trf.xlu0
      %v3837 = vpop.trf.xlu0
      %v3838 = vpop.trf.xlu0
      %3839 = vxpose.xlu0.b32.start [1/16] %v540, 128
      %3840 = vxpose.xlu0.b32.cont [2/16] %v546, 128
      %3841 = vxpose.xlu0.b32.cont [3/16] %v552, 128
      %3842 = vxpose.xlu0.b32.cont [4/16] %v558, 128
      %3843 = vxpose.xlu0.b32.cont [5/16] 0.0, 128
      %3844 = vxpose.xlu0.b32.cont [6/16] 0.0, 128
      %3845 = vxpose.xlu0.b32.cont [7/16] 0.0, 128
      %3846 = vxpose.xlu0.b32.cont [8/16] 0.0, 128
      %3847 = vxpose.xlu0.b32.cont [9/16] 0.0, 128
      %3848 = vxpose.xlu0.b32.cont [10/16] 0.0, 128
      %3849 = vxpose.xlu0.b32.cont [11/16] 0.0, 128
      %3850 = vxpose.xlu0.b32.cont [12/16] 0.0, 128
      %3851 = vxpose.xlu0.b32.cont [13/16] 0.0, 128
      %3852 = vxpose.xlu0.b32.cont [14/16] 0.0, 128
      %3853 = vxpose.xlu0.b32.cont [15/16] 0.0, 128
      %3854 = vxpose.xlu0.b32.end [16/16] 0.0, 128
      %v3855 = vpop.trf.xlu0
      %v3856 = vpop.trf.xlu0
      %v3857 = vpop.trf.xlu0
      %v3858 = vpop.trf.xlu0
      %v3859 = vpop.trf.xlu0
      %v3860 = vpop.trf.xlu0
      %v3861 = vpop.trf.xlu0
      %v3862 = vpop.trf.xlu0
      %v3863 = vpop.trf.xlu0
      %v3864 = vpop.trf.xlu0
      %v3865 = vpop.trf.xlu0
      %v3866 = vpop.trf.xlu0
      %v3867 = vpop.trf.xlu0
      %v3868 = vpop.trf.xlu0
      %v3869 = vpop.trf.xlu0
      %v3870 = vpop.trf.xlu0
      %v3871 = vmul.f32 %v3823, 0.17677669
      %v3872 = vmul.f32 %v3824, 0.17677669
      %v3873 = vmul.f32 %v3825, 0.17677669
      %v3874 = vmul.f32 %v3826, 0.17677669
      %v3875 = vmul.f32 %v3827, 0.17677669
      %v3876 = vmul.f32 %v3828, 0.17677669
      %v3877 = vmul.f32 %v3829, 0.17677669
      %v3878 = vmul.f32 %v3830, 0.17677669
      %v3879 = vmul.f32 %v3831, 0.17677669
      %v3880 = vmul.f32 %v3832, 0.17677669
      %v3881 = vmul.f32 %v3833, 0.17677669
      %v3882 = vmul.f32 %v3834, 0.17677669
      %v3883 = vmul.f32 %v3835, 0.17677669
      %v3884 = vmul.f32 %v3836, 0.17677669
      %v3885 = vmul.f32 %v3837, 0.17677669
      %v3886 = vmul.f32 %v3838, 0.17677669
      %v3887 = vmul.f32 %v3855, 0.17677669
      %v3888 = vmul.f32 %v3856, 0.17677669
      %v3889 = vmul.f32 %v3857, 0.17677669
      %v3890 = vmul.f32 %v3858, 0.17677669
      %v3891 = vmul.f32 %v3859, 0.17677669
      %v3892 = vmul.f32 %v3860, 0.17677669
      %v3893 = vmul.f32 %v3861, 0.17677669
      %v3894 = vmul.f32 %v3862, 0.17677669
      %v3895 = vmul.f32 %v3863, 0.17677669
      %v3896 = vmul.f32 %v3864, 0.17677669
      %v3897 = vmul.f32 %v3865, 0.17677669
      %v3898 = vmul.f32 %v3866, 0.17677669
      %v3899 = vmul.f32 %v3867, 0.17677669
      %v3900 = vmul.f32 %v3868, 0.17677669
      %v3901 = vmul.f32 %v3869, 0.17677669
      %v3902 = vmul.f32 %v3870, 0.17677669
      %v3904 = vsel %vm848, %v3871, 0
      %v3907 = vsel %vm848, %v3872, 0
      %v3910 = vsel %vm848, %v3873, 0
      %v3913 = vsel %vm848, %v3874, 0
      %v3916 = vsel %vm848, %v3875, 0
      %v3919 = vsel %vm848, %v3876, 0
      %v3922 = vsel %vm848, %v3877, 0
      %v3925 = vsel %vm848, %v3878, 0
      %v3928 = vsel %vm848, %v3879, 0
      %v3931 = vsel %vm848, %v3880, 0
      %v3934 = vsel %vm848, %v3881, 0
      %v3937 = vsel %vm848, %v3882, 0
      %v3940 = vsel %vm848, %v3883, 0
      %v3943 = vsel %vm848, %v3884, 0
      %v3946 = vsel %vm848, %v3885, 0
      %v3949 = vsel %vm848, %v3886, 0
      %v3952 = vsel %vm848, %v3887, 0
      %v3955 = vsel %vm848, %v3888, 0
      %v3958 = vsel %vm848, %v3889, 0
      %v3961 = vsel %vm848, %v3890, 0
      %v3964 = vsel %vm848, %v3891, 0
      %v3967 = vsel %vm848, %v3892, 0
      %v3970 = vsel %vm848, %v3893, 0
      %v3973 = vsel %vm848, %v3894, 0
      %v3976 = vsel %vm848, %v3895, 0
      %v3979 = vsel %vm848, %v3896, 0
      %v3982 = vsel %vm848, %v3897, 0
      %v3985 = vsel %vm848, %v3898, 0
      %v3988 = vsel %vm848, %v3899, 0
      %v3991 = vsel %vm848, %v3900, 0
      %v3994 = vsel %vm848, %v3901, 0
      %v3997 = vsel %vm848, %v3902, 0
      %3999 = vmatprep.subr.mxu0 %v636
      %4000 = vmatpush1.msra.mxu0 %v634
      %4001 = vmatprep.subr.mxu0 %v642
      %4002 = vmatpush1.msra.mxu0 %v640
      %4003 = vmatprep.subr.mxu0 %v648
      %4004 = vmatpush1.msra.mxu0 %v646
      %4005 = vmatprep.subr.mxu0 %v654
      %4006 = vmatpush1.msra.mxu0 %v652
      %4007 = vmatprep.subr.mxu0 0.0
      %4008 = vmatpush1.msra.mxu0 0.0
      %4009 = vmatprep.subr.mxu0 0.0
      %4010 = vmatpush1.msra.mxu0 0.0
      %4011 = vmatprep.subr.mxu0 0.0
      %4012 = vmatpush1.msra.mxu0 0.0
      %4013 = vmatprep.subr.mxu0 0.0
      %4014 = vmatpush1.msra.mxu0 0.0
      %4015 = vmatprep.subr.mxu0 0.0
      %4016 = vmatpush1.msra.mxu0 0.0
      %4017 = vmatprep.subr.mxu0 0.0
      %4018 = vmatpush1.msra.mxu0 0.0
      %4019 = vmatprep.subr.mxu0 0.0
      %4020 = vmatpush1.msra.mxu0 0.0
      %4021 = vmatprep.subr.mxu0 0.0
      %4022 = vmatpush1.msra.mxu0 0.0
      %4023 = vmatprep.subr.mxu0 0.0
      %4024 = vmatpush1.msra.mxu0 0.0
      %4025 = vmatprep.subr.mxu0 0.0
      %4026 = vmatpush1.msra.mxu0 0.0
      %4027 = vmatprep.subr.mxu0 0.0
      %4028 = vmatpush1.msra.mxu0 0.0
      %4029 = vmatprep.subr.mxu0 0.0
      %4030 = vmatpush1.msra.mxu0 0.0
      %4031 = vmatprep.subr.mxu0 0.0
      %4032 = vmatpush1.msra.mxu0 0.0
      %4033 = vmatprep.subr.mxu0 0.0
      %4034 = vmatpush1.msra.mxu0 0.0
      %4035 = vmatprep.subr.mxu0 0.0
      %4036 = vmatpush1.msra.mxu0 0.0
      %4037 = vmatprep.subr.mxu0 0.0
      %4038 = vmatpush1.msra.mxu0 0.0
      %4039 = vmatprep.subr.mxu0 0.0
      %4040 = vmatpush1.msra.mxu0 0.0
      %4041 = vmatprep.subr.mxu0 0.0
      %4042 = vmatpush1.msra.mxu0 0.0
      %4043 = vmatprep.subr.mxu0 0.0
      %4044 = vmatpush1.msra.mxu0 0.0
      %4045 = vmatprep.subr.mxu0 0.0
      %4046 = vmatpush1.msra.mxu0 0.0
      %4047 = vmatprep.subr.mxu0 0.0
      %4048 = vmatpush1.msra.mxu0 0.0
      %4049 = vmatprep.subr.mxu0 0.0
      %4050 = vmatpush1.msra.mxu0 0.0
      %4051 = vmatprep.subr.mxu0 0.0
      %4052 = vmatpush1.msra.mxu0 0.0
      %4053 = vmatprep.subr.mxu0 0.0
      %4054 = vmatpush1.msra.mxu0 0.0
      %4055 = vmatprep.subr.mxu0 0.0
      %4056 = vmatpush1.msra.mxu0 0.0
      %4057 = vmatprep.subr.mxu0 0.0
      %4058 = vmatpush1.msra.mxu0 0.0
      %4059 = vmatprep.subr.mxu0 0.0
      %4060 = vmatpush1.msra.mxu0 0.0
      %4061 = vmatprep.subr.mxu0 0.0
      %4062 = vmatpush1.msra.mxu0 0.0
      %4063 = vmatprep.mubr.f32.mxu0 0.0
      %4064 = vmatmul.mubr.f32.gmra.mrb[0].mxu0 %v3904
      %v4065 = vpop.f32.mrb[0].mxu0
      %v4066 = vadd.f32 0.0, %v4065
      %v4067 = vpop.f32.mrb[0].mxu0
      %v4068 = vadd.f32 0.0, %v4067
      %4069 = vmatprep.mubr.f32.mxu0 0.0
      %4070 = vmatmul.mubr.f32.gmra.mrb[0].mxu0 %v3907
      %v4071 = vpop.f32.mrb[0].mxu0
      %v4072 = vadd.f32 0.0, %v4071
      %v4073 = vpop.f32.mrb[0].mxu0
      %v4074 = vadd.f32 0.0, %v4073
      %4075 = vmatprep.mubr.f32.mxu0 0.0
      %4076 = vmatmul.mubr.f32.gmra.mrb[0].mxu0 %v3910
      %v4077 = vpop.f32.mrb[0].mxu0
      %v4078 = vadd.f32 0.0, %v4077
      %v4079 = vpop.f32.mrb[0].mxu0
      %v4080 = vadd.f32 0.0, %v4079
      %4081 = vmatprep.mubr.f32.mxu0 0.0
      %4082 = vmatmul.mubr.f32.gmra.mrb[0].mxu0 %v3913
      %v4083 = vpop.f32.mrb[0].mxu0
      %v4084 = vadd.f32 0.0, %v4083
      %v4085 = vpop.f32.mrb[0].mxu0
      %v4086 = vadd.f32 0.0, %v4085
      %4087 = vmatprep.mubr.f32.mxu0 0.0
      %4088 = vmatmul.mubr.f32.gmra.mrb[0].mxu0 %v3916
      %v4089 = vpop.f32.mrb[0].mxu0
      %v4090 = vadd.f32 0.0, %v4089
      %v4091 = vpop.f32.mrb[0].mxu0
      %v4092 = vadd.f32 0.0, %v4091
      %4093 = vmatprep.mubr.f32.mxu0 0.0
      %4094 = vmatmul.mubr.f32.gmra.mrb[0].mxu0 %v3919
      %v4095 = vpop.f32.mrb[0].mxu0
      %v4096 = vadd.f32 0.0, %v4095
      %v4097 = vpop.f32.mrb[0].mxu0
      %v4098 = vadd.f32 0.0, %v4097
      %4099 = vmatprep.mubr.f32.mxu0 0.0
      %4100 = vmatmul.mubr.f32.gmra.mrb[0].mxu0 %v3922
      %v4101 = vpop.f32.mrb[0].mxu0
      %v4102 = vadd.f32 0.0, %v4101
      %v4103 = vpop.f32.mrb[0].mxu0
      %v4104 = vadd.f32 0.0, %v4103
      %4105 = vmatprep.mubr.f32.mxu0 0.0
      %4106 = vmatmul.mubr.f32.gmra.mrb[0].mxu0 %v3925
      %v4107 = vpop.f32.mrb[0].mxu0
      %v4108 = vadd.f32 0.0, %v4107
      %v4109 = vpop.f32.mrb[0].mxu0
      %v4110 = vadd.f32 0.0, %v4109
      %4111 = vmatprep.mubr.f32.mxu0 0.0
      %4112 = vmatmul.mubr.f32.gmra.mrb[0].mxu0 %v3928
      %v4113 = vpop.f32.mrb[0].mxu0
      %v4114 = vadd.f32 0.0, %v4113
      %v4115 = vpop.f32.mrb[0].mxu0
      %v4116 = vadd.f32 0.0, %v4115
      %4117 = vmatprep.mubr.f32.mxu0 0.0
      %4118 = vmatmul.mubr.f32.gmra.mrb[0].mxu0 %v3931
      %v4119 = vpop.f32.mrb[0].mxu0
      %v4120 = vadd.f32 0.0, %v4119
      %v4121 = vpop.f32.mrb[0].mxu0
      %v4122 = vadd.f32 0.0, %v4121
      %4123 = vmatprep.mubr.f32.mxu0 0.0
      %4124 = vmatmul.mubr.f32.gmra.mrb[0].mxu0 %v3934
      %v4125 = vpop.f32.mrb[0].mxu0
      %v4126 = vadd.f32 0.0, %v4125
      %v4127 = vpop.f32.mrb[0].mxu0
      %v4128 = vadd.f32 0.0, %v4127
      %4129 = vmatprep.mubr.f32.mxu0 0.0
      %4130 = vmatmul.mubr.f32.gmra.mrb[0].mxu0 %v3937
      %v4131 = vpop.f32.mrb[0].mxu0
      %v4132 = vadd.f32 0.0, %v4131
      %v4133 = vpop.f32.mrb[0].mxu0
      %v4134 = vadd.f32 0.0, %v4133
      %4135 = vmatprep.mubr.f32.mxu0 0.0
      %4136 = vmatmul.mubr.f32.gmra.mrb[0].mxu0 %v3940
      %v4137 = vpop.f32.mrb[0].mxu0
      %v4138 = vadd.f32 0.0, %v4137
      %v4139 = vpop.f32.mrb[0].mxu0
      %v4140 = vadd.f32 0.0, %v4139
      %4141 = vmatprep.mubr.f32.mxu0 0.0
      %4142 = vmatmul.mubr.f32.gmra.mrb[0].mxu0 %v3943
      %v4143 = vpop.f32.mrb[0].mxu0
      %v4144 = vadd.f32 0.0, %v4143
      %v4145 = vpop.f32.mrb[0].mxu0
      %v4146 = vadd.f32 0.0, %v4145
      %4147 = vmatprep.mubr.f32.mxu0 0.0
      %4148 = vmatmul.mubr.f32.gmra.mrb[0].mxu0 %v3946
      %v4149 = vpop.f32.mrb[0].mxu0
      %v4150 = vadd.f32 0.0, %v4149
      %v4151 = vpop.f32.mrb[0].mxu0
      %v4152 = vadd.f32 0.0, %v4151
      %4153 = vmatprep.mubr.f32.mxu0 0.0
      %4154 = vmatmul.mubr.f32.gmra.mrb[0].mxu0 %v3949
      %v4155 = vpop.f32.mrb[0].mxu0
      %v4156 = vadd.f32 0.0, %v4155
      %v4157 = vpop.f32.mrb[0].mxu0
      %v4158 = vadd.f32 0.0, %v4157
      %4159 = vmatprep.mubr.f32.mxu0 0.0
      %4160 = vmatmul.mubr.f32.gmra.mrb[0].mxu0 %v3952
      %v4161 = vpop.f32.mrb[0].mxu0
      %v4162 = vadd.f32 0.0, %v4161
      %v4163 = vpop.f32.mrb[0].mxu0
      %v4164 = vadd.f32 0.0, %v4163
      %4165 = vmatprep.mubr.f32.mxu0 0.0
      %4166 = vmatmul.mubr.f32.gmra.mrb[0].mxu0 %v3955
      %v4167 = vpop.f32.mrb[0].mxu0
      %v4168 = vadd.f32 0.0, %v4167
      %v4169 = vpop.f32.mrb[0].mxu0
      %v4170 = vadd.f32 0.0, %v4169
      %4171 = vmatprep.mubr.f32.mxu0 0.0
      %4172 = vmatmul.mubr.f32.gmra.mrb[0].mxu0 %v3958
      %v4173 = vpop.f32.mrb[0].mxu0
      %v4174 = vadd.f32 0.0, %v4173
      %v4175 = vpop.f32.mrb[0].mxu0
      %v4176 = vadd.f32 0.0, %v4175
      %4177 = vmatprep.mubr.f32.mxu0 0.0
      %4178 = vmatmul.mubr.f32.gmra.mrb[0].mxu0 %v3961
      %v4179 = vpop.f32.mrb[0].mxu0
      %v4180 = vadd.f32 0.0, %v4179
      %v4181 = vpop.f32.mrb[0].mxu0
      %v4182 = vadd.f32 0.0, %v4181
      %4183 = vmatprep.mubr.f32.mxu0 0.0
      %4184 = vmatmul.mubr.f32.gmra.mrb[0].mxu0 %v3964
      %v4185 = vpop.f32.mrb[0].mxu0
      %v4186 = vadd.f32 0.0, %v4185
      %v4187 = vpop.f32.mrb[0].mxu0
      %v4188 = vadd.f32 0.0, %v4187
      %4189 = vmatprep.mubr.f32.mxu0 0.0
      %4190 = vmatmul.mubr.f32.gmra.mrb[0].mxu0 %v3967
      %v4191 = vpop.f32.mrb[0].mxu0
      %v4192 = vadd.f32 0.0, %v4191
      %v4193 = vpop.f32.mrb[0].mxu0
      %v4194 = vadd.f32 0.0, %v4193
      %4195 = vmatprep.mubr.f32.mxu0 0.0
      %4196 = vmatmul.mubr.f32.gmra.mrb[0].mxu0 %v3970
      %v4197 = vpop.f32.mrb[0].mxu0
      %v4198 = vadd.f32 0.0, %v4197
      %v4199 = vpop.f32.mrb[0].mxu0
      %v4200 = vadd.f32 0.0, %v4199
      %4201 = vmatprep.mubr.f32.mxu0 0.0
      %4202 = vmatmul.mubr.f32.gmra.mrb[0].mxu0 %v3973
      %v4203 = vpop.f32.mrb[0].mxu0
      %v4204 = vadd.f32 0.0, %v4203
      %v4205 = vpop.f32.mrb[0].mxu0
      %v4206 = vadd.f32 0.0, %v4205
      %4207 = vmatprep.mubr.f32.mxu0 0.0
      %4208 = vmatmul.mubr.f32.gmra.mrb[0].mxu0 %v3976
      %v4209 = vpop.f32.mrb[0].mxu0
      %v4210 = vadd.f32 0.0, %v4209
      %v4211 = vpop.f32.mrb[0].mxu0
      %v4212 = vadd.f32 0.0, %v4211
      %4213 = vmatprep.mubr.f32.mxu0 0.0
      %4214 = vmatmul.mubr.f32.gmra.mrb[0].mxu0 %v3979
      %v4215 = vpop.f32.mrb[0].mxu0
      %v4216 = vadd.f32 0.0, %v4215
      %v4217 = vpop.f32.mrb[0].mxu0
      %v4218 = vadd.f32 0.0, %v4217
      %4219 = vmatprep.mubr.f32.mxu0 0.0
      %4220 = vmatmul.mubr.f32.gmra.mrb[0].mxu0 %v3982
      %v4221 = vpop.f32.mrb[0].mxu0
      %v4222 = vadd.f32 0.0, %v4221
      %v4223 = vpop.f32.mrb[0].mxu0
      %v4224 = vadd.f32 0.0, %v4223
      %4225 = vmatprep.mubr.f32.mxu0 0.0
      %4226 = vmatmul.mubr.f32.gmra.mrb[0].mxu0 %v3985
      %v4227 = vpop.f32.mrb[0].mxu0
      %v4228 = vadd.f32 0.0, %v4227
      %v4229 = vpop.f32.mrb[0].mxu0
      %v4230 = vadd.f32 0.0, %v4229
      %4231 = vmatprep.mubr.f32.mxu0 0.0
      %4232 = vmatmul.mubr.f32.gmra.mrb[0].mxu0 %v3988
      %v4233 = vpop.f32.mrb[0].mxu0
      %v4234 = vadd.f32 0.0, %v4233
      %v4235 = vpop.f32.mrb[0].mxu0
      %v4236 = vadd.f32 0.0, %v4235
      %4237 = vmatprep.mubr.f32.mxu0 0.0
      %4238 = vmatmul.mubr.f32.gmra.mrb[0].mxu0 %v3991
      %v4239 = vpop.f32.mrb[0].mxu0
      %v4240 = vadd.f32 0.0, %v4239
      %v4241 = vpop.f32.mrb[0].mxu0
      %v4242 = vadd.f32 0.0, %v4241
      %4243 = vmatprep.mubr.f32.mxu0 0.0
      %4244 = vmatmul.mubr.f32.gmra.mrb[0].mxu0 %v3994
      %v4245 = vpop.f32.mrb[0].mxu0
      %v4246 = vadd.f32 0.0, %v4245
      %v4247 = vpop.f32.mrb[0].mxu0
      %v4248 = vadd.f32 0.0, %v4247
      %4249 = vmatprep.mubr.f32.mxu0 0.0
      %4250 = vmatmul.mubr.f32.gmra.mrb[0].mxu0 %v3997
      %v4251 = vpop.f32.mrb[0].mxu0
      %v4252 = vadd.f32 0.0, %v4251
      %v4253 = vpop.f32.mrb[0].mxu0
      %v4254 = vadd.f32 0.0, %v4253
      %4255 = vdwg.mxu0
      %v4256 = vmax.f32 %v4066, %v4068
      %4257 = vmax.xlane.f32.xlu0 %v4256
      %v4258 = vpop.xlane.xlu0 %4257
      %v4259 = vmax.f32 %v4072, %v4074
      %4260 = vmax.xlane.f32.xlu0 %v4259
      %v4261 = vpop.xlane.xlu0 %4260
      %v4262 = vmax.f32 %v4078, %v4080
      %4263 = vmax.xlane.f32.xlu0 %v4262
      %v4264 = vpop.xlane.xlu0 %4263
      %v4265 = vmax.f32 %v4084, %v4086
      %4266 = vmax.xlane.f32.xlu0 %v4265
      %v4267 = vpop.xlane.xlu0 %4266
      %v4268 = vmax.f32 %v4090, %v4092
      %4269 = vmax.xlane.f32.xlu0 %v4268
      %v4270 = vpop.xlane.xlu0 %4269
      %v4271 = vmax.f32 %v4096, %v4098
      %4272 = vmax.xlane.f32.xlu0 %v4271
      %v4273 = vpop.xlane.xlu0 %4272
      %v4274 = vmax.f32 %v4102, %v4104
      %4275 = vmax.xlane.f32.xlu0 %v4274
      %v4276 = vpop.xlane.xlu0 %4275
      %v4277 = vmax.f32 %v4108, %v4110
      %4278 = vmax.xlane.f32.xlu0 %v4277
      %v4279 = vpop.xlane.xlu0 %4278
      %v4280 = vmax.f32 %v4114, %v4116
      %4281 = vmax.xlane.f32.xlu0 %v4280
      %v4282 = vpop.xlane.xlu0 %4281
      %v4283 = vmax.f32 %v4120, %v4122
      %4284 = vmax.xlane.f32.xlu0 %v4283
      %v4285 = vpop.xlane.xlu0 %4284
      %v4286 = vmax.f32 %v4126, %v4128
      %4287 = vmax.xlane.f32.xlu0 %v4286
      %v4288 = vpop.xlane.xlu0 %4287
      %v4289 = vmax.f32 %v4132, %v4134
      %4290 = vmax.xlane.f32.xlu0 %v4289
      %v4291 = vpop.xlane.xlu0 %4290
      %v4292 = vmax.f32 %v4138, %v4140
      %4293 = vmax.xlane.f32.xlu0 %v4292
      %v4294 = vpop.xlane.xlu0 %4293
      %v4295 = vmax.f32 %v4144, %v4146
      %4296 = vmax.xlane.f32.xlu0 %v4295
      %v4297 = vpop.xlane.xlu0 %4296
      %v4298 = vmax.f32 %v4150, %v4152
      %4299 = vmax.xlane.f32.xlu0 %v4298
      %v4300 = vpop.xlane.xlu0 %4299
      %v4301 = vmax.f32 %v4156, %v4158
      %4302 = vmax.xlane.f32.xlu0 %v4301
      %v4303 = vpop.xlane.xlu0 %4302
      %v4304 = vmax.f32 %v4162, %v4164
      %4305 = vmax.xlane.f32.xlu0 %v4304
      %v4306 = vpop.xlane.xlu0 %4305
      %v4307 = vmax.f32 %v4168, %v4170
      %4308 = vmax.xlane.f32.xlu0 %v4307
      %v4309 = vpop.xlane.xlu0 %4308
      %v4310 = vmax.f32 %v4174, %v4176
      %4311 = vmax.xlane.f32.xlu0 %v4310
      %v4312 = vpop.xlane.xlu0 %4311
      %v4313 = vmax.f32 %v4180, %v4182
      %4314 = vmax.xlane.f32.xlu0 %v4313
      %v4315 = vpop.xlane.xlu0 %4314
      %v4316 = vmax.f32 %v4186, %v4188
      %4317 = vmax.xlane.f32.xlu0 %v4316
      %v4318 = vpop.xlane.xlu0 %4317
      %v4319 = vmax.f32 %v4192, %v4194
      %4320 = vmax.xlane.f32.xlu0 %v4319
      %v4321 = vpop.xlane.xlu0 %4320
      %v4322 = vmax.f32 %v4198, %v4200
      %4323 = vmax.xlane.f32.xlu0 %v4322
      %v4324 = vpop.xlane.xlu0 %4323
      %v4325 = vmax.f32 %v4204, %v4206
      %4326 = vmax.xlane.f32.xlu0 %v4325
      %v4327 = vpop.xlane.xlu0 %4326
      %v4328 = vmax.f32 %v4210, %v4212
      %4329 = vmax.xlane.f32.xlu0 %v4328
      %v4330 = vpop.xlane.xlu0 %4329
      %v4331 = vmax.f32 %v4216, %v4218
      %4332 = vmax.xlane.f32.xlu0 %v4331
      %v4333 = vpop.xlane.xlu0 %4332
      %v4334 = vmax.f32 %v4222, %v4224
      %4335 = vmax.xlane.f32.xlu0 %v4334
      %v4336 = vpop.xlane.xlu0 %4335
      %v4337 = vmax.f32 %v4228, %v4230
      %4338 = vmax.xlane.f32.xlu0 %v4337
      %v4339 = vpop.xlane.xlu0 %4338
      %v4340 = vmax.f32 %v4234, %v4236
      %4341 = vmax.xlane.f32.xlu0 %v4340
      %v4342 = vpop.xlane.xlu0 %4341
      %v4343 = vmax.f32 %v4240, %v4242
      %4344 = vmax.xlane.f32.xlu0 %v4343
      %v4345 = vpop.xlane.xlu0 %4344
      %v4346 = vmax.f32 %v4246, %v4248
      %4347 = vmax.xlane.f32.xlu0 %v4346
      %v4348 = vpop.xlane.xlu0 %4347
      %v4349 = vmax.f32 %v4252, %v4254
      %4350 = vmax.xlane.f32.xlu0 %v4349
      %v4351 = vpop.xlane.xlu0 %4350
      %v4352 = vsub.f32 %v4066, %v4258
      %v4353 = vsub.f32 %v4068, %v4258
      %v4354 = vsub.f32 %v4072, %v4261
      %v4355 = vsub.f32 %v4074, %v4261
      %v4356 = vsub.f32 %v4078, %v4264
      %v4357 = vsub.f32 %v4080, %v4264
      %v4358 = vsub.f32 %v4084, %v4267
      %v4359 = vsub.f32 %v4086, %v4267
      %v4360 = vsub.f32 %v4090, %v4270
      %v4361 = vsub.f32 %v4092, %v4270
      %v4362 = vsub.f32 %v4096, %v4273
      %v4363 = vsub.f32 %v4098, %v4273
      %v4364 = vsub.f32 %v4102, %v4276
      %v4365 = vsub.f32 %v4104, %v4276
      %v4366 = vsub.f32 %v4108, %v4279
      %v4367 = vsub.f32 %v4110, %v4279
      %v4368 = vsub.f32 %v4114, %v4282
      %v4369 = vsub.f32 %v4116, %v4282
      %v4370 = vsub.f32 %v4120, %v4285
      %v4371 = vsub.f32 %v4122, %v4285
      %v4372 = vsub.f32 %v4126, %v4288
      %v4373 = vsub.f32 %v4128, %v4288
      %v4374 = vsub.f32 %v4132, %v4291
      %v4375 = vsub.f32 %v4134, %v4291
      %v4376 = vsub.f32 %v4138, %v4294
      %v4377 = vsub.f32 %v4140, %v4294
      %v4378 = vsub.f32 %v4144, %v4297
      %v4379 = vsub.f32 %v4146, %v4297
      %v4380 = vsub.f32 %v4150, %v4300
      %v4381 = vsub.f32 %v4152, %v4300
      %v4382 = vsub.f32 %v4156, %v4303
      %v4383 = vsub.f32 %v4158, %v4303
      %v4384 = vsub.f32 %v4162, %v4306
      %v4385 = vsub.f32 %v4164, %v4306
      %v4386 = vsub.f32 %v4168, %v4309
      %v4387 = vsub.f32 %v4170, %v4309
      %v4388 = vsub.f32 %v4174, %v4312
      %v4389 = vsub.f32 %v4176, %v4312
      %v4390 = vsub.f32 %v4180, %v4315
      %v4391 = vsub.f32 %v4182, %v4315
      %v4392 = vsub.f32 %v4186, %v4318
      %v4393 = vsub.f32 %v4188, %v4318
      %v4394 = vsub.f32 %v4192, %v4321
      %v4395 = vsub.f32 %v4194, %v4321
      %v4396 = vsub.f32 %v4198, %v4324
      %v4397 = vsub.f32 %v4200, %v4324
      %v4398 = vsub.f32 %v4204, %v4327
      %v4399 = vsub.f32 %v4206, %v4327
      %v4400 = vsub.f32 %v4210, %v4330
      %v4401 = vsub.f32 %v4212, %v4330
      %v4402 = vsub.f32 %v4216, %v4333
      %v4403 = vsub.f32 %v4218, %v4333
      %v4404 = vsub.f32 %v4222, %v4336
      %v4405 = vsub.f32 %v4224, %v4336
      %v4406 = vsub.f32 %v4228, %v4339
      %v4407 = vsub.f32 %v4230, %v4339
      %v4408 = vsub.f32 %v4234, %v4342
      %v4409 = vsub.f32 %v4236, %v4342
      %v4410 = vsub.f32 %v4240, %v4345
      %v4411 = vsub.f32 %v4242, %v4345
      %v4412 = vsub.f32 %v4246, %v4348
      %v4413 = vsub.f32 %v4248, %v4348
      %v4414 = vsub.f32 %v4252, %v4351
      %v4415 = vsub.f32 %v4254, %v4351
      %v4416 = vmul.f32 %v4352, 1.442695
      %v4417 = vpow.pop %v4416
      %v4418 = vmul.f32 %v4353, 1.442695
      %v4419 = vpow.pop %v4418
      %v4420 = vmul.f32 %v4354, 1.442695
      %v4421 = vpow.pop %v4420
      %v4422 = vmul.f32 %v4355, 1.442695
      %v4423 = vpow.pop %v4422
      %v4424 = vmul.f32 %v4356, 1.442695
      %v4425 = vpow.pop %v4424
      %v4426 = vmul.f32 %v4357, 1.442695
      %v4427 = vpow.pop %v4426
      %v4428 = vmul.f32 %v4358, 1.442695
      %v4429 = vpow.pop %v4428
      %v4430 = vmul.f32 %v4359, 1.442695
      %v4431 = vpow.pop %v4430
      %v4432 = vmul.f32 %v4360, 1.442695
      %v4433 = vpow.pop %v4432
      %v4434 = vmul.f32 %v4361, 1.442695
      %v4435 = vpow.pop %v4434
      %v4436 = vmul.f32 %v4362, 1.442695
      %v4437 = vpow.pop %v4436
      %v4438 = vmul.f32 %v4363, 1.442695
      %v4439 = vpow.pop %v4438
      %v4440 = vmul.f32 %v4364, 1.442695
      %v4441 = vpow.pop %v4440
      %v4442 = vmul.f32 %v4365, 1.442695
      %v4443 = vpow.pop %v4442
      %v4444 = vmul.f32 %v4366, 1.442695
      %v4445 = vpow.pop %v4444
      %v4446 = vmul.f32 %v4367, 1.442695
      %v4447 = vpow.pop %v4446
      %v4448 = vmul.f32 %v4368, 1.442695
      %v4449 = vpow.pop %v4448
      %v4450 = vmul.f32 %v4369, 1.442695
      %v4451 = vpow.pop %v4450
      %v4452 = vmul.f32 %v4370, 1.442695
      %v4453 = vpow.pop %v4452
      %v4454 = vmul.f32 %v4371, 1.442695
      %v4455 = vpow.pop %v4454
      %v4456 = vmul.f32 %v4372, 1.442695
      %v4457 = vpow.pop %v4456
      %v4458 = vmul.f32 %v4373, 1.442695
      %v4459 = vpow.pop %v4458
      %v4460 = vmul.f32 %v4374, 1.442695
      %v4461 = vpow.pop %v4460
      %v4462 = vmul.f32 %v4375, 1.442695
      %v4463 = vpow.pop %v4462
      %v4464 = vmul.f32 %v4376, 1.442695
      %v4465 = vpow.pop %v4464
      %v4466 = vmul.f32 %v4377, 1.442695
      %v4467 = vpow.pop %v4466
      %v4468 = vmul.f32 %v4378, 1.442695
      %v4469 = vpow.pop %v4468
      %v4470 = vmul.f32 %v4379, 1.442695
      %v4471 = vpow.pop %v4470
      %v4472 = vmul.f32 %v4380, 1.442695
      %v4473 = vpow.pop %v4472
      %v4474 = vmul.f32 %v4381, 1.442695
      %v4475 = vpow.pop %v4474
      %v4476 = vmul.f32 %v4382, 1.442695
      %v4477 = vpow.pop %v4476
      %v4478 = vmul.f32 %v4383, 1.442695
      %v4479 = vpow.pop %v4478
      %v4480 = vmul.f32 %v4384, 1.442695
      %v4481 = vpow.pop %v4480
      %v4482 = vmul.f32 %v4385, 1.442695
      %v4483 = vpow.pop %v4482
      %v4484 = vmul.f32 %v4386, 1.442695
      %v4485 = vpow.pop %v4484
      %v4486 = vmul.f32 %v4387, 1.442695
      %v4487 = vpow.pop %v4486
      %v4488 = vmul.f32 %v4388, 1.442695
      %v4489 = vpow.pop %v4488
      %v4490 = vmul.f32 %v4389, 1.442695
      %v4491 = vpow.pop %v4490
      %v4492 = vmul.f32 %v4390, 1.442695
      %v4493 = vpow.pop %v4492
      %v4494 = vmul.f32 %v4391, 1.442695
      %v4495 = vpow.pop %v4494
      %v4496 = vmul.f32 %v4392, 1.442695
      %v4497 = vpow.pop %v4496
      %v4498 = vmul.f32 %v4393, 1.442695
      %v4499 = vpow.pop %v4498
      %v4500 = vmul.f32 %v4394, 1.442695
      %v4501 = vpow.pop %v4500
      %v4502 = vmul.f32 %v4395, 1.442695
      %v4503 = vpow.pop %v4502
      %v4504 = vmul.f32 %v4396, 1.442695
      %v4505 = vpow.pop %v4504
      %v4506 = vmul.f32 %v4397, 1.442695
      %v4507 = vpow.pop %v4506
      %v4508 = vmul.f32 %v4398, 1.442695
      %v4509 = vpow.pop %v4508
      %v4510 = vmul.f32 %v4399, 1.442695
      %v4511 = vpow.pop %v4510
      %v4512 = vmul.f32 %v4400, 1.442695
      %v4513 = vpow.pop %v4512
      %v4514 = vmul.f32 %v4401, 1.442695
      %v4515 = vpow.pop %v4514
      %v4516 = vmul.f32 %v4402, 1.442695
      %v4517 = vpow.pop %v4516
      %v4518 = vmul.f32 %v4403, 1.442695
      %v4519 = vpow.pop %v4518
      %v4520 = vmul.f32 %v4404, 1.442695
      %v4521 = vpow.pop %v4520
      %v4522 = vmul.f32 %v4405, 1.442695
      %v4523 = vpow.pop %v4522
      %v4524 = vmul.f32 %v4406, 1.442695
      %v4525 = vpow.pop %v4524
      %v4526 = vmul.f32 %v4407, 1.442695
      %v4527 = vpow.pop %v4526
      %v4528 = vmul.f32 %v4408, 1.442695
      %v4529 = vpow.pop %v4528
      %v4530 = vmul.f32 %v4409, 1.442695
      %v4531 = vpow.pop %v4530
      %v4532 = vmul.f32 %v4410, 1.442695
      %v4533 = vpow.pop %v4532
      %v4534 = vmul.f32 %v4411, 1.442695
      %v4535 = vpow.pop %v4534
      %v4536 = vmul.f32 %v4412, 1.442695
      %v4537 = vpow.pop %v4536
      %v4538 = vmul.f32 %v4413, 1.442695
      %v4539 = vpow.pop %v4538
      %v4540 = vmul.f32 %v4414, 1.442695
      %v4541 = vpow.pop %v4540
      %v4542 = vmul.f32 %v4415, 1.442695
      %v4543 = vpow.pop %v4542
      %v4544 = vadd.f32 %v4417, %v4419
      %4545 = vadd.xlane.f32.xlu0 %v4544
      %v4546 = vpop.xlane.xlu0 %4545
      %v4547 = vadd.f32 %v4421, %v4423
      %4548 = vadd.xlane.f32.xlu0 %v4547
      %v4549 = vpop.xlane.xlu0 %4548
      %v4550 = vadd.f32 %v4425, %v4427
      %4551 = vadd.xlane.f32.xlu0 %v4550
      %v4552 = vpop.xlane.xlu0 %4551
      %v4553 = vadd.f32 %v4429, %v4431
      %4554 = vadd.xlane.f32.xlu0 %v4553
      %v4555 = vpop.xlane.xlu0 %4554
      %v4556 = vadd.f32 %v4433, %v4435
      %4557 = vadd.xlane.f32.xlu0 %v4556
      %v4558 = vpop.xlane.xlu0 %4557
      %v4559 = vadd.f32 %v4437, %v4439
      %4560 = vadd.xlane.f32.xlu0 %v4559
      %v4561 = vpop.xlane.xlu0 %4560
      %v4562 = vadd.f32 %v4441, %v4443
      %4563 = vadd.xlane.f32.xlu0 %v4562
      %v4564 = vpop.xlane.xlu0 %4563
      %v4565 = vadd.f32 %v4445, %v4447
      %4566 = vadd.xlane.f32.xlu0 %v4565
      %v4567 = vpop.xlane.xlu0 %4566
      %v4568 = vadd.f32 %v4449, %v4451
      %4569 = vadd.xlane.f32.xlu0 %v4568
      %v4570 = vpop.xlane.xlu0 %4569
      %v4571 = vadd.f32 %v4453, %v4455
      %4572 = vadd.xlane.f32.xlu0 %v4571
      %v4573 = vpop.xlane.xlu0 %4572
      %v4574 = vadd.f32 %v4457, %v4459
      %4575 = vadd.xlane.f32.xlu0 %v4574
      %v4576 = vpop.xlane.xlu0 %4575
      %v4577 = vadd.f32 %v4461, %v4463
      %4578 = vadd.xlane.f32.xlu0 %v4577
      %v4579 = vpop.xlane.xlu0 %4578
      %v4580 = vadd.f32 %v4465, %v4467
      %4581 = vadd.xlane.f32.xlu0 %v4580
      %v4582 = vpop.xlane.xlu0 %4581
      %v4583 = vadd.f32 %v4469, %v4471
      %4584 = vadd.xlane.f32.xlu0 %v4583
      %v4585 = vpop.xlane.xlu0 %4584
      %v4586 = vadd.f32 %v4473, %v4475
      %4587 = vadd.xlane.f32.xlu0 %v4586
      %v4588 = vpop.xlane.xlu0 %4587
      %v4589 = vadd.f32 %v4477, %v4479
      %4590 = vadd.xlane.f32.xlu0 %v4589
      %v4591 = vpop.xlane.xlu0 %4590
      %v4592 = vadd.f32 %v4481, %v4483
      %4593 = vadd.xlane.f32.xlu0 %v4592
      %v4594 = vpop.xlane.xlu0 %4593
      %v4595 = vadd.f32 %v4485, %v4487
      %4596 = vadd.xlane.f32.xlu0 %v4595
      %v4597 = vpop.xlane.xlu0 %4596
      %v4598 = vadd.f32 %v4489, %v4491
      %4599 = vadd.xlane.f32.xlu0 %v4598
      %v4600 = vpop.xlane.xlu0 %4599
      %v4601 = vadd.f32 %v4493, %v4495
      %4602 = vadd.xlane.f32.xlu0 %v4601
      %v4603 = vpop.xlane.xlu0 %4602
      %v4604 = vadd.f32 %v4497, %v4499
      %4605 = vadd.xlane.f32.xlu0 %v4604
      %v4606 = vpop.xlane.xlu0 %4605
      %v4607 = vadd.f32 %v4501, %v4503
      %4608 = vadd.xlane.f32.xlu0 %v4607
      %v4609 = vpop.xlane.xlu0 %4608
      %v4610 = vadd.f32 %v4505, %v4507
      %4611 = vadd.xlane.f32.xlu0 %v4610
      %v4612 = vpop.xlane.xlu0 %4611
      %v4613 = vadd.f32 %v4509, %v4511
      %4614 = vadd.xlane.f32.xlu0 %v4613
      %v4615 = vpop.xlane.xlu0 %4614
      %v4616 = vadd.f32 %v4513, %v4515
      %4617 = vadd.xlane.f32.xlu0 %v4616
      %v4618 = vpop.xlane.xlu0 %4617
      %v4619 = vadd.f32 %v4517, %v4519
      %4620 = vadd.xlane.f32.xlu0 %v4619
      %v4621 = vpop.xlane.xlu0 %4620
      %v4622 = vadd.f32 %v4521, %v4523
      %4623 = vadd.xlane.f32.xlu0 %v4622
      %v4624 = vpop.xlane.xlu0 %4623
      %v4625 = vadd.f32 %v4525, %v4527
      %4626 = vadd.xlane.f32.xlu0 %v4625
      %v4627 = vpop.xlane.xlu0 %4626
      %v4628 = vadd.f32 %v4529, %v4531
      %4629 = vadd.xlane.f32.xlu0 %v4628
      %v4630 = vpop.xlane.xlu0 %4629
      %v4631 = vadd.f32 %v4533, %v4535
      %4632 = vadd.xlane.f32.xlu0 %v4631
      %v4633 = vpop.xlane.xlu0 %4632
      %v4634 = vadd.f32 %v4537, %v4539
      %4635 = vadd.xlane.f32.xlu0 %v4634
      %v4636 = vpop.xlane.xlu0 %4635
      %v4637 = vadd.f32 %v4541, %v4543
      %4638 = vadd.xlane.f32.xlu0 %v4637
      %v4639 = vpop.xlane.xlu0 %4638
      %v4640 = vrcp.pop %v4546
      %v4641 = vmul.f32 %v4417, %v4640
      %v4642 = vmul.f32 %v4419, %v4640
      %v4643 = vrcp.pop %v4549
      %v4644 = vmul.f32 %v4421, %v4643
      %v4645 = vmul.f32 %v4423, %v4643
      %v4646 = vrcp.pop %v4552
      %v4647 = vmul.f32 %v4425, %v4646
      %v4648 = vmul.f32 %v4427, %v4646
      %v4649 = vrcp.pop %v4555
      %v4650 = vmul.f32 %v4429, %v4649
      %v4651 = vmul.f32 %v4431, %v4649
      %v4652 = vrcp.pop %v4558
      %v4653 = vmul.f32 %v4433, %v4652
      %v4654 = vmul.f32 %v4435, %v4652
      %v4655 = vrcp.pop %v4561
      %v4656 = vmul.f32 %v4437, %v4655
      %v4657 = vmul.f32 %v4439, %v4655
      %v4658 = vrcp.pop %v4564
      %v4659 = vmul.f32 %v4441, %v4658
      %v4660 = vmul.f32 %v4443, %v4658
      %v4661 = vrcp.pop %v4567
      %v4662 = vmul.f32 %v4445, %v4661
      %v4663 = vmul.f32 %v4447, %v4661
      %v4664 = vrcp.pop %v4570
      %v4665 = vmul.f32 %v4449, %v4664
      %v4666 = vmul.f32 %v4451, %v4664
      %v4667 = vrcp.pop %v4573
      %v4668 = vmul.f32 %v4453, %v4667
      %v4669 = vmul.f32 %v4455, %v4667
      %v4670 = vrcp.pop %v4576
      %v4671 = vmul.f32 %v4457, %v4670
      %v4672 = vmul.f32 %v4459, %v4670
      %v4673 = vrcp.pop %v4579
      %v4674 = vmul.f32 %v4461, %v4673
      %v4675 = vmul.f32 %v4463, %v4673
      %v4676 = vrcp.pop %v4582
      %v4677 = vmul.f32 %v4465, %v4676
      %v4678 = vmul.f32 %v4467, %v4676
      %v4679 = vrcp.pop %v4585
      %v4680 = vmul.f32 %v4469, %v4679
      %v4681 = vmul.f32 %v4471, %v4679
      %v4682 = vrcp.pop %v4588
      %v4683 = vmul.f32 %v4473, %v4682
      %v4684 = vmul.f32 %v4475, %v4682
      %v4685 = vrcp.pop %v4591
      %v4686 = vmul.f32 %v4477, %v4685
      %v4687 = vmul.f32 %v4479, %v4685
      %v4688 = vrcp.pop %v4594
      %v4689 = vmul.f32 %v4481, %v4688
      %v4690 = vmul.f32 %v4483, %v4688
      %v4691 = vrcp.pop %v4597
      %v4692 = vmul.f32 %v4485, %v4691
      %v4693 = vmul.f32 %v4487, %v4691
      %v4694 = vrcp.pop %v4600
      %v4695 = vmul.f32 %v4489, %v4694
      %v4696 = vmul.f32 %v4491, %v4694
      %v4697 = vrcp.pop %v4603
      %v4698 = vmul.f32 %v4493, %v4697
      %v4699 = vmul.f32 %v4495, %v4697
      %v4700 = vrcp.pop %v4606
      %v4701 = vmul.f32 %v4497, %v4700
      %v4702 = vmul.f32 %v4499, %v4700
      %v4703 = vrcp.pop %v4609
      %v4704 = vmul.f32 %v4501, %v4703
      %v4705 = vmul.f32 %v4503, %v4703
      %v4706 = vrcp.pop %v4612
      %v4707 = vmul.f32 %v4505, %v4706
      %v4708 = vmul.f32 %v4507, %v4706
      %v4709 = vrcp.pop %v4615
      %v4710 = vmul.f32 %v4509, %v4709
      %v4711 = vmul.f32 %v4511, %v4709
      %v4712 = vrcp.pop %v4618
      %v4713 = vmul.f32 %v4513, %v4712
      %v4714 = vmul.f32 %v4515, %v4712
      %v4715 = vrcp.pop %v4621
      %v4716 = vmul.f32 %v4517, %v4715
      %v4717 = vmul.f32 %v4519, %v4715
      %v4718 = vrcp.pop %v4624
      %v4719 = vmul.f32 %v4521, %v4718
      %v4720 = vmul.f32 %v4523, %v4718
      %v4721 = vrcp.pop %v4627
      %v4722 = vmul.f32 %v4525, %v4721
      %v4723 = vmul.f32 %v4527, %v4721
      %v4724 = vrcp.pop %v4630
      %v4725 = vmul.f32 %v4529, %v4724
      %v4726 = vmul.f32 %v4531, %v4724
      %v4727 = vrcp.pop %v4633
      %v4728 = vmul.f32 %v4533, %v4727
      %v4729 = vmul.f32 %v4535, %v4727
      %v4730 = vrcp.pop %v4636
      %v4731 = vmul.f32 %v4537, %v4730
      %v4732 = vmul.f32 %v4539, %v4730
      %v4733 = vrcp.pop %v4639
      %v4734 = vmul.f32 %v4541, %v4733
      %v4735 = vmul.f32 %v4543, %v4733
      %4736 = vmatprep.subr.mxu0 %v4642
      %4737 = vmatpush1.xpose.msra.mxu0 %v4641
      %4738 = vmatprep.subr.mxu0 %v4645
      %4739 = vmatpush1.xpose.msra.mxu0 %v4644
      %4740 = vmatprep.subr.mxu0 %v4648
      %4741 = vmatpush1.xpose.msra.mxu0 %v4647
      %4742 = vmatprep.subr.mxu0 %v4651
      %4743 = vmatpush1.xpose.msra.mxu0 %v4650
      %4744 = vmatprep.subr.mxu0 %v4654
      %4745 = vmatpush1.xpose.msra.mxu0 %v4653
      %4746 = vmatprep.subr.mxu0 %v4657
      %4747 = vmatpush1.xpose.msra.mxu0 %v4656
      %4748 = vmatprep.subr.mxu0 %v4660
      %4749 = vmatpush1.xpose.msra.mxu0 %v4659
      %4750 = vmatprep.subr.mxu0 %v4663
      %4751 = vmatpush1.xpose.msra.mxu0 %v4662
      %4752 = vmatprep.subr.mxu0 %v4666
      %4753 = vmatpush1.xpose.msra.mxu0 %v4665
      %4754 = vmatprep.subr.mxu0 %v4669
      %4755 = vmatpush1.xpose.msra.mxu0 %v4668
      %4756 = vmatprep.subr.mxu0 %v4672
      %4757 = vmatpush1.xpose.msra.mxu0 %v4671
      %4758 = vmatprep.subr.mxu0 %v4675
      %4759 = vmatpush1.xpose.msra.mxu0 %v4674
      %4760 = vmatprep.subr.mxu0 %v4678
      %4761 = vmatpush1.xpose.msra.mxu0 %v4677
      %4762 = vmatprep.subr.mxu0 %v4681
      %4763 = vmatpush1.xpose.msra.mxu0 %v4680
      %4764 = vmatprep.subr.mxu0 %v4684
      %4765 = vmatpush1.xpose.msra.mxu0 %v4683
      %4766 = vmatprep.subr.mxu0 %v4687
      %4767 = vmatpush1.xpose.msra.mxu0 %v4686
      %4768 = vmatprep.subr.mxu0 %v4690
      %4769 = vmatpush1.xpose.msra.mxu0 %v4689
      %4770 = vmatprep.subr.mxu0 %v4693
      %4771 = vmatpush1.xpose.msra.mxu0 %v4692
      %4772 = vmatprep.subr.mxu0 %v4696
      %4773 = vmatpush1.xpose.msra.mxu0 %v4695
      %4774 = vmatprep.subr.mxu0 %v4699
      %4775 = vmatpush1.xpose.msra.mxu0 %v4698
      %4776 = vmatprep.subr.mxu0 %v4702
      %4777 = vmatpush1.xpose.msra.mxu0 %v4701
      %4778 = vmatprep.subr.mxu0 %v4705
      %4779 = vmatpush1.xpose.msra.mxu0 %v4704
      %4780 = vmatprep.subr.mxu0 %v4708
      %4781 = vmatpush1.xpose.msra.mxu0 %v4707
      %4782 = vmatprep.subr.mxu0 %v4711
      %4783 = vmatpush1.xpose.msra.mxu0 %v4710
      %4784 = vmatprep.subr.mxu0 %v4714
      %4785 = vmatpush1.xpose.msra.mxu0 %v4713
      %4786 = vmatprep.subr.mxu0 %v4717
      %4787 = vmatpush1.xpose.msra.mxu0 %v4716
      %4788 = vmatprep.subr.mxu0 %v4720
      %4789 = vmatpush1.xpose.msra.mxu0 %v4719
      %4790 = vmatprep.subr.mxu0 %v4723
      %4791 = vmatpush1.xpose.msra.mxu0 %v4722
      %4792 = vmatprep.subr.mxu0 %v4726
      %4793 = vmatpush1.xpose.msra.mxu0 %v4725
      %4794 = vmatprep.subr.mxu0 %v4729
      %4795 = vmatpush1.xpose.msra.mxu0 %v4728
      %4796 = vmatprep.subr.mxu0 %v4732
      %4797 = vmatpush1.xpose.msra.mxu0 %v4731
      %4798 = vmatprep.subr.mxu0 %v4735
      %4799 = vmatpush1.xpose.msra.mxu0 %v4734
      %4800 = vmatprep.mubr.f32.mxu0 %v732
      %4801 = vmatmul.mubr.f32.gmra.mrb[0].mxu0 %v730
      %v4802 = vpop.f32.mrb[0].mxu0
      %v4803 = vadd.f32 0.0, %v4802
      %v4804 = vpop.f32.mrb[0].mxu0
      %v4805 = vadd.f32 0.0, %v4804
      %4806 = vmatprep.mubr.f32.mxu0 %v738
      %4807 = vmatmul.mubr.f32.gmra.mrb[0].mxu0 %v736
      %v4808 = vpop.f32.mrb[0].mxu0
      %v4809 = vadd.f32 0.0, %v4808
      %v4810 = vpop.f32.mrb[0].mxu0
      %v4811 = vadd.f32 0.0, %v4810
      %4812 = vmatprep.mubr.f32.mxu0 %v744
      %4813 = vmatmul.mubr.f32.gmra.mrb[0].mxu0 %v742
      %v4814 = vpop.f32.mrb[0].mxu0
      %v4815 = vadd.f32 0.0, %v4814
      %v4816 = vpop.f32.mrb[0].mxu0
      %v4817 = vadd.f32 0.0, %v4816
      %4818 = vmatprep.mubr.f32.mxu0 %v750
      %4819 = vmatmul.mubr.f32.gmra.mrb[0].mxu0 %v748
      %v4820 = vpop.f32.mrb[0].mxu0
      %v4821 = vadd.f32 0.0, %v4820
      %v4822 = vpop.f32.mrb[0].mxu0
      %v4823 = vadd.f32 0.0, %v4822
      %4824 = vdwg.mxu0
      %v4825 = vld [vmem:[%s2] sm:$0xf]
      %v4826 = vld [vmem:[%s3] sm:$0xf]
      %4828 = vset.pattern.permute.xlu0 0
      %4829 = vperm.xlu0 %4828, %v4826
      %v4830 = vpop.permute.xlu0 %4829
      %4832 = vmatprep.subr.mxu0 %v1751
      %4833 = vmatpush1.msra.mxu0 %v1749
      %4834 = vmatprep.subr.mxu0 %v1757
      %4835 = vmatpush1.msra.mxu0 %v1755
      %4836 = vmatprep.subr.mxu0 %v1763
      %4837 = vmatpush1.msra.mxu0 %v1761
      %4838 = vmatprep.subr.mxu0 %v1769
      %4839 = vmatpush1.msra.mxu0 %v1767
      %4840 = vmatprep.subr.mxu0 %v2769
      %4841 = vmatpush1.msra.mxu0 %v2767
      %4842 = vmatprep.subr.mxu0 %v2775
      %4843 = vmatpush1.msra.mxu0 %v2773
      %4844 = vmatprep.subr.mxu0 %v2781
      %4845 = vmatpush1.msra.mxu0 %v2779
      %4846 = vmatprep.subr.mxu0 %v2787
      %4847 = vmatpush1.msra.mxu0 %v2785
      %4848 = vmatprep.subr.mxu0 %v3787
      %4849 = vmatpush1.msra.mxu0 %v3785
      %4850 = vmatprep.subr.mxu0 %v3793
      %4851 = vmatpush1.msra.mxu0 %v3791
      %4852 = vmatprep.subr.mxu0 %v3799
      %4853 = vmatpush1.msra.mxu0 %v3797
      %4854 = vmatprep.subr.mxu0 %v3805
      %4855 = vmatpush1.msra.mxu0 %v3803
      %4856 = vmatprep.subr.mxu0 %v4805
      %4857 = vmatpush1.msra.mxu0 %v4803
      %4858 = vmatprep.subr.mxu0 %v4811
      %4859 = vmatpush1.msra.mxu0 %v4809
      %4860 = vmatprep.subr.mxu0 %v4817
      %4861 = vmatpush1.msra.mxu0 %v4815
      %4862 = vmatprep.subr.mxu0 %v4823
      %4863 = vmatpush1.msra.mxu0 %v4821
      %4864 = vmatprep.subr.mxu0 0.0
      %4865 = vmatpush1.msra.mxu0 0.0
      %4866 = vmatprep.subr.mxu0 0.0
      %4867 = vmatpush1.msra.mxu0 0.0
      %4868 = vmatprep.subr.mxu0 0.0
      %4869 = vmatpush1.msra.mxu0 0.0
      %4870 = vmatprep.subr.mxu0 0.0
      %4871 = vmatpush1.msra.mxu0 0.0
      %4872 = vmatprep.subr.mxu0 0.0
      %4873 = vmatpush1.msra.mxu0 0.0
      %4874 = vmatprep.subr.mxu0 0.0
      %4875 = vmatpush1.msra.mxu0 0.0
      %4876 = vmatprep.subr.mxu0 0.0
      %4877 = vmatpush1.msra.mxu0 0.0
      %4878 = vmatprep.subr.mxu0 0.0
      %4879 = vmatpush1.msra.mxu0 0.0
      %4880 = vmatprep.subr.mxu0 0.0
      %4881 = vmatpush1.msra.mxu0 0.0
      %4882 = vmatprep.subr.mxu0 0.0
      %4883 = vmatpush1.msra.mxu0 0.0
      %4884 = vmatprep.subr.mxu0 0.0
      %4885 = vmatpush1.msra.mxu0 0.0
      %4886 = vmatprep.subr.mxu0 0.0
      %4887 = vmatpush1.msra.mxu0 0.0
      %4888 = vmatprep.subr.mxu0 0.0
      %4889 = vmatpush1.msra.mxu0 0.0
      %4890 = vmatprep.subr.mxu0 0.0
      %4891 = vmatpush1.msra.mxu0 0.0
      %4892 = vmatprep.subr.mxu0 0.0
      %4893 = vmatpush1.msra.mxu0 0.0
      %4894 = vmatprep.subr.mxu0 0.0
      %4895 = vmatpush1.msra.mxu0 0.0
      %4896 = vmatprep.mubr.f32.mxu0 0.0
      %4897 = vmatmul.mubr.f32.gmra.mrb[0].mxu0 %v4825
      %v4898 = vpop.f32.mrb[0].mxu0
      %v4899 = vadd.f32 %v4830, %v4898
      %v4900 = vpop.f32.mrb[0].mxu0
      %v4901 = vadd.f32 %v4830, %v4900
      %4902 = vdwg.mxu0
      %v4905 = vcombine.low %v4899, %v4901
      %4907 = vst [vmem:[%s197] sm:$0xff] %v4905
      %p4908 = scmp.lt.s32.totalorder %s15, 1
      %s4909 = scalar_select %p4908, %s15, 1
      %s4910 = smul.addr %s4909, 2
      %s4911 = smul.addr %s4910, 4
      %s4912 = scalar_lea.vmem %s4, %s4911
      // Predicated region
      $region37: #{attention_forward.1} parent=35 // pred_check
        %p4913 = pneg %p122
      $region38: #{attention_forward.1} parent=35 // pred_check_branch
        %4915 = sbr.rel (%p4913) target = $region40
      $region39: #{attention_forward.1} parent=35 // pred_region
        _
      $region40: #{attention_forward.1} parent=35 // pred_fallthru
        _
    $region36: #{attention_forward.1} parent=5 // pred_fallthru
      _
    %p4916 = scmp.le.s32.totalorder 2, %s10
    // Predicated region
    $region41: #{attention_forward.1} parent=5 // pred_check
      %p4917 = pneg %p4916
    $region42: #{attention_forward.1} parent=5 // pred_check_branch
      %4919 = sbr.rel (%p4917) target = $region44
    $region43: #{attention_forward.1} parent=5 // pred_region
      %s4920 = ssub.s32 %s10, 2
      // Predicated region
      $region45: #{attention_forward.1} parent=43 // pred_check
        %p4921 = pneg %p128
      $region46: #{attention_forward.1} parent=43 // pred_check_branch
        %4923 = sbr.rel (%p4921) target = $region48
      $region47: #{attention_forward.1} parent=43 // pred_region
        %p4924 = scmp.lt.s32.totalorder %s16, 1
        %s4925 = scalar_select %p4924, %s16, 1
        %s4926 = smul.addr %s4925, 2
        %s4927 = smul.addr %s4926, 4
        %s4928 = scalar_lea.vmem %s4, %s4927
      $region48: #{attention_forward.1} parent=43 // pred_fallthru
        _
    $region44: #{attention_forward.1} parent=5 // pred_fallthru
      _
  $region6: #{attention_forward.1} parent=0 // loop_footer
    %s14 = sadd.s32 1, %s10
  $region7: #{attention_forward.1} parent=0 // loop_footer_branch
    %9 = sbr.rel target = $region3
  $region8: #{attention_forward.1} parent=0 // loop_exit
    _

</llo_original>
